<compile_context>
chip_gen: v5e
topology: v5e:2x2
jax: 0.10.0
libtpu: 0.0.40
codegen_flags: <defaults>
</compile_context>

<pallas_src>
import functools

import jax
import jax.numpy as jnp
from jax import lax
from jax.experimental import pallas as pl
from jax.experimental.pallas import tpu as pltpu

_LANE = 128            # vreg lane width; channel dims padded to a multiple of this
_BF16 = jnp.bfloat16
_F32 = jnp.float32


def _round_up(x, m):
    return (x + m - 1) // m * m


# ----------------------------- Pallas kernels ------------------------------ #

def _gemm_bn_kernel(t_ref, w_ref, s_ref, b_ref, o_ref, *, relu):
    """o = relu?( (taps @ w) * scale + bias ) — one deep-K MXU GEMM per tile."""
    acc = jnp.dot(t_ref[...], w_ref[...], preferred_element_type=jnp.float32)
    out = acc * s_ref[...] + b_ref[...]
    if relu:
        out = jnp.maximum(out, 0.0)
    o_ref[...] = out.astype(o_ref.dtype)


def _gemm_bn_add_kernel(t_ref, w_ref, s_ref, b_ref, r_ref, o_ref, *, relu):
    """o = relu?( (taps @ w) * scale + bias + residual )  (identity shortcut)."""
    acc = jnp.dot(t_ref[...], w_ref[...], preferred_element_type=jnp.float32)
    out = acc * s_ref[...] + b_ref[...] + r_ref[...].astype(jnp.float32)
    if relu:
        out = jnp.maximum(out, 0.0)
    o_ref[...] = out.astype(o_ref.dtype)


def _gemm_bn_proj_kernel(t_ref, w_ref, s_ref, b_ref,
                         xs_ref, wsc_ref, ssc_ref, bsc_ref, o_ref, *, relu):
    """conv2 + bn2 with the projection shortcut (1x1 conv + BN) fused in."""
    acc = jnp.dot(t_ref[...], w_ref[...], preferred_element_type=jnp.float32)
    out = acc * s_ref[...] + b_ref[...]
    sc = jnp.dot(xs_ref[...], wsc_ref[...], preferred_element_type=jnp.float32)
    out = out + (sc * ssc_ref[...] + bsc_ref[...])
    if relu:
        out = jnp.maximum(out, 0.0)
    o_ref[...] = out.astype(o_ref.dtype)


# ----------------------------- kernel launcher ------------------------------ #

def _choose_tile_m(m):
    if m >= 1024:
        return 512            # halve for v7x-friendly VMEM budget vs. a 1024 tile
    if m >= 256:
        return 256
    return _round_up(m, 8)    # tiny problems: single tile (sublane-aligned)


def _launch(kernel, operands, row_tiled, *, m, cout, out_dtype, extra_flops=0):
    """Grid over M tiles; row_tiled[i] marks operands tiled over M (others are
    grid-invariant weights/scale/bias kept resident in VMEM)."""
    tile_m = _choose_tile_m(m)
    m_pad = _round_up(m, tile_m)

    ops, in_specs = [], []
    for a, tiled in zip(operands, row_tiled):
        if tiled and a.shape[0] != m_pad:
            a = jnp.pad(a, ((0, m_pad - a.shape[0]), (0, 0)))
        ops.append(a)
        if tiled:
            in_specs.append(pl.BlockSpec((tile_m, a.shape[1]), lambda i: (i, 0)))
        else:
            in_specs.append(pl.BlockSpec(a.shape, lambda i: (0, 0)))

    out_bytes = m_pad * cout * jnp.dtype(out_dtype).itemsize
    bytes_accessed = out_bytes + sum(int(a.size) * a.dtype.itemsize for a in ops)
    k = operands[0].shape[1]
    flops = 2 * m_pad * k * cout + extra_flops

    out = pl.pallas_call(
        kernel,
        out_shape=jax.ShapeDtypeStruct((m_pad, cout), out_dtype),
        grid_spec=pltpu.PrefetchScalarGridSpec(
            num_scalar_prefetch=0,
            grid=(m_pad // tile_m,),
            in_specs=in_specs,
            out_specs=pl.BlockSpec((tile_m, cout), lambda i: (i, 0)),
        ),
        compiler_params=pltpu.CompilerParams(
            dimension_semantics=("parallel",),      # v7x: both TCs split the M tiles
            vmem_limit_bytes=32 * 1024 * 1024,
        ),
        cost_estimate=pl.CostEstimate(
            flops=int(flops), transcendentals=0,
            bytes_accessed=int(bytes_accessed)),
    )(*ops)
    return out[:m]


def _conv_bn(taps, w, scale, bias, *, relu, out_dtype):
    kern = functools.partial(_gemm_bn_kernel, relu=relu)
    return _launch(kern, [taps, w, scale, bias], [True, False, False, False],
                   m=taps.shape[0], cout=w.shape[1], out_dtype=out_dtype)


def _conv_bn_add(taps, w, scale, bias, res, *, relu, out_dtype):
    kern = functools.partial(_gemm_bn_add_kernel, relu=relu)
    return _launch(kern, [taps, w, scale, bias, res],
                   [True, False, False, False, True],
                   m=taps.shape[0], cout=w.shape[1], out_dtype=out_dtype)


def _conv_bn_proj(taps, w, scale, bias, xs, wsc, ssc, bsc, *, relu, out_dtype):
    kern = functools.partial(_gemm_bn_proj_kernel, relu=relu)
    extra = 2 * taps.shape[0] * xs.shape[1] * w.shape[1]
    return _launch(kern, [taps, w, scale, bias, xs, wsc, ssc, bsc],
                   [True, False, False, False, True, False, False, False],
                   m=taps.shape[0], cout=w.shape[1], out_dtype=out_dtype,
                   extra_flops=extra)


# --------------------------------- glue ------------------------------------ #

def _im2col_3x3(x_nhwc, stride):
    """(N,H,W,C) -> (N*Ho*Wo, 9*C); column order (dy, dx, c) matches a HWIO
    weight reshaped to (9*C, Cout)."""
    n, h, w, c = x_nhwc.shape
    xp = jnp.pad(x_nhwc, ((0, 0), (1, 1), (1, 1), (0, 0)))
    ho = (h - 1) // stride + 1
    wo = (w - 1) // stride + 1
    cols = []
    for dy in range(3):
        for dx in range(3):
            v = xp[:, dy:dy + (ho - 1) * stride + 1:stride,
                      dx:dx + (wo - 1) * stride + 1:stride, :]
            cols.append(v.reshape(n * ho * wo, c))
    return jnp.concatenate(cols, axis=-1), (ho, wo)


def _pad_w3x3(w_hwio, cin_p, cout_p):
    kh, kw, cin, cout = w_hwio.shape
    w = jnp.pad(w_hwio, ((0, 0), (0, 0), (0, cin_p - cin), (0, cout_p - cout)))
    return w.reshape(kh * kw * cin_p, cout_p).astype(_BF16)


def _pad_w1x1(w_io, cin_p, cout_p):
    cin, cout = w_io.shape
    return jnp.pad(w_io, ((0, cin_p - cin), (0, cout_p - cout))).astype(_BF16)


def _fold_bn(bn, cout_p, eps=1e-5):
    gamma, beta, mean, var = bn
    scale = gamma / jnp.sqrt(var + eps)
    bias = beta - mean * scale
    scale = jnp.pad(scale, (0, cout_p - scale.shape[0]), constant_values=1.0)
    bias = jnp.pad(bias, (0, cout_p - bias.shape[0]))   # ghost channels stay 0
    return (scale.reshape(1, -1).astype(_F32), bias.reshape(1, -1).astype(_F32))


# ----------------------------- BasicBlock ----------------------------------- #

def _bn_params(key, c):
    kg, kb, km, kv = jax.random.split(key, 4)
    gamma = 1.0 + 0.1 * jax.random.normal(kg, (c,), jnp.float32)
    beta = 0.1 * jax.random.normal(kb, (c,), jnp.float32)
    mean = 0.1 * jax.random.normal(km, (c,), jnp.float32)
    var = jax.random.uniform(kv, (c,), jnp.float32, minval=0.5, maxval=1.5)
    return (gamma, beta, mean, var)


def init_basic_block_params(key, in_planes, planes, stride):
    k1, k2, k3, kb1, kb2, kb3 = jax.random.split(key, 6)
    params = {
        "stride": stride,
        "w1": jax.random.normal(k1, (3, 3, in_planes, planes), jnp.float32)
              / jnp.sqrt(9.0 * in_planes),                      # HWIO
        "bn1": _bn_params(kb1, planes),
        "w2": jax.random.normal(k2, (3, 3, planes, planes), jnp.float32)
              / jnp.sqrt(9.0 * planes),
        "bn2": _bn_params(kb2, planes),
        "wsc": None,
        "bnsc": None,
    }
    if stride != 1 or in_planes != planes:                      # projection shortcut
        params["wsc"] = (jax.random.normal(k3, (in_planes, planes), jnp.float32)
                         / jnp.sqrt(float(in_planes)))          # 1x1 conv, (Cin,Cout)
        params["bnsc"] = _bn_params(kb3, planes)
    return params


def basic_block_forward(params, x_nchw, isCulled=False, isTopThinned=False,
                        isBottomThinned=False):
    stride = params["stride"]
    relu1 = (not isCulled) and (not isTopThinned)
    relu2 = (not isCulled) and (not isBottomThinned)

    x = jnp.transpose(x_nchw, (0, 2, 3, 1)).astype(_F32)        # NCHW -> NHWC
    n, h, w_sz, cin = x.shape
    planes = params["w1"].shape[-1]
    cin_p = _round_up(cin, _LANE)
    cp = _round_up(planes, _LANE)

    # Channel-pad once; padded channels remain exactly zero through the block.
    xpc = jnp.pad(x, ((0, 0), (0, 0), (0, 0), (0, cin_p - cin)))

    # conv1 (3x3, stride) + bn1 (+ relu1); result kept bf16 (GEMM operand of conv2)
    taps1, (ho, wo) = _im2col_3x3(xpc.astype(_BF16), stride)    # (M, 9*cin_p)
    w1 = _pad_w3x3(params["w1"], cin_p, cp)                     # (9*cin_p, cp)
    s1, b1 = _fold_bn(params["bn1"], cp)
    out1 = _conv_bn(taps1, w1, s1, b1, relu=relu1, out_dtype=_BF16)   # (M, cp)

    m = n * ho * wo

    # conv2 (3x3, stride 1) + bn2 + shortcut (+ relu2), shortcut fused in-kernel
    taps2, _ = _im2col_3x3(out1.reshape(n, ho, wo, cp), 1)      # (M, 9*cp)
    w2 = _pad_w3x3(params["w2"], cp, cp)
    s2, b2 = _fold_bn(params["bn2"], cp)

    if params["wsc"] is not None:
        xs = xpc[:, ::stride, ::stride, :].reshape(m, cin_p).astype(_BF16)
        wsc = _pad_w1x1(params["wsc"], cin_p, cp)
        ssc, bsc = _fold_bn(params["bnsc"], cp)
        out2 = _conv_bn_proj(taps2, w2, s2, b2, xs, wsc, ssc, bsc,
                             relu=relu2, out_dtype=_F32)
    else:
        res = xpc.reshape(m, cp)          # identity: stride==1 and cin_p == cp
        out2 = _conv_bn_add(taps2, w2, s2, b2, res, relu=relu2, out_dtype=_F32)

    out = out2[:, :planes].reshape(n, ho, wo, planes)
    return jnp.transpose(out, (0, 3, 1, 2))                     # NHWC -> NCHW


# ------------------------- pure-JAX reference ------------------------------ #

def reference_forward(params, x_nchw, isCulled=False, isTopThinned=False,
                      isBottomThinned=False):
    stride = params["stride"]
    x = jnp.transpose(x_nchw, (0, 2, 3, 1)).astype(jnp.float32)
    dn = ("NHWC", "HWIO", "NHWC")

    def bn(y, p):
        g, b, m, v = p
        return (y - m) * (g / jnp.sqrt(v + 1e-5)) + b

    out = lax.conv_general_dilated(x, params["w1"], (stride, stride),
                                   ((1, 1), (1, 1)), dimension_numbers=dn,
                                   precision=lax.Precision.HIGHEST)
    out = bn(out, params["bn1"])
    if (not isCulled) and (not isTopThinned):
        out = jnp.maximum(out, 0.0)
    out = lax.conv_general_dilated(out, params["w2"], (1, 1),
                                   ((1, 1), (1, 1)), dimension_numbers=dn,
                                   precision=lax.Precision.HIGHEST)
    out = bn(out, params["bn2"])
    if params["wsc"] is not None:
        cin, cout = params["wsc"].shape
        sc = lax.conv_general_dilated(x, params["wsc"].reshape(1, 1, cin, cout),
                                      (stride, stride), ((0, 0), (0, 0)),
                                      dimension_numbers=dn,
                                      precision=lax.Precision.HIGHEST)
        sc = bn(sc, params["bnsc"])
    else:
        sc = x
    out = out + sc
    if (not isCulled) and (not isBottomThinned):
        out = jnp.maximum(out, 0.0)
    return jnp.transpose(out, (0, 3, 1, 2))


# --------------------------------- main ------------------------------------ #

def _check(name, got, want, atol=5e-2, rtol=5e-2):
    # bf16 MXU operands (f32 accumulation) vs. a HIGHEST-precision f32 reference
    # => expect ~1e-2 relative error; tolerance re-derived accordingly.
    if not jnp.allclose(got, want, atol=atol, rtol=rtol):
        raise AssertionError(
            f"{name} mismatch, max|diff|={float(jnp.max(jnp.abs(got - want)))}")


if __name__ == "__main__":
    key = jax.random.PRNGKey(0)
    kx1, kp1, kx2, kp2, kx3, kp3 = jax.random.split(key, 6)

    # 1) projection shortcut (1x1 conv + BN): in_planes=4 -> planes=8, stride 1.
    x1 = jax.random.normal(kx1, (2, 4, 16, 16), jnp.float32)     # NCHW
    p1 = init_basic_block_params(kp1, in_planes=4, planes=8, stride=1)
    fwd1 = jax.jit(lambda x: basic_block_forward(p1, x))
    out1 = jax.block_until_ready(fwd1(x1))
    assert out1.shape == (2, 8, 16, 16)
    _check("projection-shortcut block", out1, reference_forward(p1, x1))

    # 2) identity shortcut: in_planes = planes = 8, stride 1.
    x2 = jax.random.normal(kx2, (2, 8, 16, 16), jnp.float32)
    p2 = init_basic_block_params(kp2, in_planes=8, planes=8, stride=1)
    fwd2 = jax.jit(lambda x: basic_block_forward(p2, x))
    out2 = jax.block_until_ready(fwd2(x2))
    assert out2.shape == (2, 8, 16, 16)
    _check("identity-shortcut block", out2, reference_forward(p2, x2))

    # 3) strided projection shortcut: in_planes=4 -> planes=8, stride 2.
    x3 = jax.random.normal(kx3, (2, 4, 16, 16), jnp.float32)
    p3 = init_basic_block_params(kp3, in_planes=4, planes=8, stride=2)
    fwd3 = jax.jit(lambda x: basic_block_forward(p3, x))
    out3 = jax.block_until_ready(fwd3(x3))
    assert out3.shape == (2, 8, 8, 8)
    _check("strided projection block", out3, reference_forward(p3, x3))

    print("KERNEL_OK")
</pallas_src>

<mosaic_0001>
module attributes {stable_mosaic.version = 11 : i64} {
  func.func @_gemm_bn_kernel(%arg0: i32, %arg1: memref<256x1152xbf16, #tpu.memory_space<vmem>>, %arg2: memref<1152x128xbf16, #tpu.memory_space<vmem>>, %arg3: memref<1x128xf32, #tpu.memory_space<vmem>>, %arg4: memref<1x128xf32, #tpu.memory_space<vmem>>, %arg5: memref<256x128xbf16, #tpu.memory_space<vmem>>) attributes {dimension_semantics = [#tpu.dimension_semantics<parallel>], iteration_bounds = array<i64: 2>, scalar_prefetch = 0 : i64, scratch_operands = 0 : i64, tpu.core_type = #tpu.core_type<tc>, window_params = [{transform_indices = @transform_0, window_bounds = array<i64: 256, 1152>}, {pipeline_mode = #tpu.pipeline_mode<synchronous>, transform_indices = @transform_1, window_bounds = array<i64: 1152, 128>}, {pipeline_mode = #tpu.pipeline_mode<synchronous>, transform_indices = @transform_2, window_bounds = array<i64: 1, 128>}, {pipeline_mode = #tpu.pipeline_mode<synchronous>, transform_indices = @transform_3, window_bounds = array<i64: 1, 128>}, {transform_indices = @transform_4, window_bounds = array<i64: 256, 128>}]} {
    %c0 = arith.constant 0 : index
    %c0_0 = arith.constant 0 : index
    %0 = vector.load %arg1[%c0, %c0_0] : memref<256x1152xbf16, #tpu.memory_space<vmem>>, vector<256x1152xbf16>
    %c0_1 = arith.constant 0 : index
    %c0_2 = arith.constant 0 : index
    %1 = vector.load %arg2[%c0_1, %c0_2] : memref<1152x128xbf16, #tpu.memory_space<vmem>>, vector<1152x128xbf16>
    %cst = arith.constant dense<0.000000e+00> : vector<256x128xf32>
    %2 = tpu.matmul %0, %1, %cst {dimension_numbers = #tpu.dot_dimension_numbers<[1], [0], [0], [1], [0, 0, 1, 1], [], []>} : vector<256x1152xbf16>, vector<1152x128xbf16>, vector<256x128xf32> -> vector<256x128xf32>
    %c0_3 = arith.constant 0 : index
    %c0_4 = arith.constant 0 : index
    %3 = vector.load %arg3[%c0_3, %c0_4] : memref<1x128xf32, #tpu.memory_space<vmem>>, vector<1x128xf32>
    %4 = vector.broadcast %3 : vector<1x128xf32> to vector<256x128xf32>
    %5 = arith.mulf %2, %4 : vector<256x128xf32>
    %c0_5 = arith.constant 0 : index
    %c0_6 = arith.constant 0 : index
    %6 = vector.load %arg4[%c0_5, %c0_6] : memref<1x128xf32, #tpu.memory_space<vmem>>, vector<1x128xf32>
    %7 = vector.broadcast %6 : vector<1x128xf32> to vector<256x128xf32>
    %8 = arith.addf %5, %7 : vector<256x128xf32>
    %cst_7 = arith.constant 0.000000e+00 : f32
    %9 = vector.broadcast %cst_7 : f32 to vector<256x128xf32>
    %10 = arith.maximumf %8, %9 : vector<256x128xf32>
    %11 = arith.truncf %10 : vector<256x128xf32> to vector<256x128xbf16>
    %c0_8 = arith.constant 0 : index
    %c0_9 = arith.constant 0 : index
    %12 = vector.load %arg5[%c0_8, %c0_9] : memref<256x128xbf16, #tpu.memory_space<vmem>>, vector<256x128xbf16>
    tpu.vector_store %arg5[%c0_8, %c0_9], %11 {strides = array<i32>} : memref<256x128xbf16, #tpu.memory_space<vmem>>, vector<256x128xbf16>,
    return
  }
  func.func @transform_0(%arg0: i32) -> (i32, i32) {
    %c0_i32 = arith.constant 0 : i32
    %c0_i32_0 = arith.constant 0 : i32
    return %arg0, %c0_i32 : i32, i32
  }
  func.func @transform_1(%arg0: i32) -> (i32, i32) {
    %c0_i32 = arith.constant 0 : i32
    %c0_i32_0 = arith.constant 0 : i32
    %c0_i32_1 = arith.constant 0 : i32
    return %c0_i32, %c0_i32_0 : i32, i32
  }
  func.func @transform_2(%arg0: i32) -> (i32, i32) {
    %c0_i32 = arith.constant 0 : i32
    %c0_i32_0 = arith.constant 0 : i32
    %c0_i32_1 = arith.constant 0 : i32
    return %c0_i32, %c0_i32_0 : i32, i32
  }
  func.func @transform_3(%arg0: i32) -> (i32, i32) {
    %c0_i32 = arith.constant 0 : i32
    %c0_i32_0 = arith.constant 0 : i32
    %c0_i32_1 = arith.constant 0 : i32
    return %c0_i32, %c0_i32_0 : i32, i32
  }
  func.func @transform_4(%arg0: i32) -> (i32, i32) {
    %c0_i32 = arith.constant 0 : i32
    %c0_i32_0 = arith.constant 0 : i32
    return %arg0, %c0_i32 : i32, i32
  }
}

module attributes {stable_mosaic.version = 11 : i64} {
  func.func @_gemm_bn_proj_kernel(%arg0: i32, %arg1: memref<256x1152xbf16, #tpu.memory_space<vmem>>, %arg2: memref<1152x128xbf16, #tpu.memory_space<vmem>>, %arg3: memref<1x128xf32, #tpu.memory_space<vmem>>, %arg4: memref<1x128xf32, #tpu.memory_space<vmem>>, %arg5: memref<256x128xbf16, #tpu.memory_space<vmem>>, %arg6: memref<128x128xbf16, #tpu.memory_space<vmem>>, %arg7: memref<1x128xf32, #tpu.memory_space<vmem>>, %arg8: memref<1x128xf32, #tpu.memory_space<vmem>>, %arg9: memref<256x128xf32, #tpu.memory_space<vmem>>) attributes {dimension_semantics = [#tpu.dimension_semantics<parallel>], iteration_bounds = array<i64: 2>, scalar_prefetch = 0 : i64, scratch_operands = 0 : i64, tpu.core_type = #tpu.core_type<tc>, window_params = [{transform_indices = @transform_0, window_bounds = array<i64: 256, 1152>}, {pipeline_mode = #tpu.pipeline_mode<synchronous>, transform_indices = @transform_1, window_bounds = array<i64: 1152, 128>}, {pipeline_mode = #tpu.pipeline_mode<synchronous>, transform_indices = @transform_2, window_bounds = array<i64: 1, 128>}, {pipeline_mode = #tpu.pipeline_mode<synchronous>, transform_indices = @transform_3, window_bounds = array<i64: 1, 128>}, {transform_indices = @transform_4, window_bounds = array<i64: 256, 128>}, {pipeline_mode = #tpu.pipeline_mode<synchronous>, transform_indices = @transform_5, window_bounds = array<i64: 128, 128>}, {pipeline_mode = #tpu.pipeline_mode<synchronous>, transform_indices = @transform_6, window_bounds = array<i64: 1, 128>}, {pipeline_mode = #tpu.pipeline_mode<synchronous>, transform_indices = @transform_7, window_bounds = array<i64: 1, 128>}, {transform_indices = @transform_8, window_bounds = array<i64: 256, 128>}]} {
    %c0 = arith.constant 0 : index
    %c0_0 = arith.constant 0 : index
    %0 = vector.load %arg1[%c0, %c0_0] : memref<256x1152xbf16, #tpu.memory_space<vmem>>, vector<256x1152xbf16>
    %c0_1 = arith.constant 0 : index
    %c0_2 = arith.constant 0 : index
    %1 = vector.load %arg2[%c0_1, %c0_2] : memref<1152x128xbf16, #tpu.memory_space<vmem>>, vector<1152x128xbf16>
    %cst = arith.constant dense<0.000000e+00> : vector<256x128xf32>
    %2 = tpu.matmul %0, %1, %cst {dimension_numbers = #tpu.dot_dimension_numbers<[1], [0], [0], [1], [0, 0, 1, 1], [], []>} : vector<256x1152xbf16>, vector<1152x128xbf16>, vector<256x128xf32> -> vector<256x128xf32>
    %c0_3 = arith.constant 0 : index
    %c0_4 = arith.constant 0 : index
    %3 = vector.load %arg3[%c0_3, %c0_4] : memref<1x128xf32, #tpu.memory_space<vmem>>, vector<1x128xf32>
    %4 = vector.broadcast %3 : vector<1x128xf32> to vector<256x128xf32>
    %5 = arith.mulf %2, %4 : vector<256x128xf32>
    %c0_5 = arith.constant 0 : index
    %c0_6 = arith.constant 0 : index
    %6 = vector.load %arg4[%c0_5, %c0_6] : memref<1x128xf32, #tpu.memory_space<vmem>>, vector<1x128xf32>
    %7 = vector.broadcast %6 : vector<1x128xf32> to vector<256x128xf32>
    %8 = arith.addf %5, %7 : vector<256x128xf32>
    %c0_7 = arith.constant 0 : index
    %c0_8 = arith.constant 0 : index
    %9 = vector.load %arg5[%c0_7, %c0_8] : memref<256x128xbf16, #tpu.memory_space<vmem>>, vector<256x128xbf16>
    %c0_9 = arith.constant 0 : index
    %c0_10 = arith.constant 0 : index
    %10 = vector.load %arg6[%c0_9, %c0_10] : memref<128x128xbf16, #tpu.memory_space<vmem>>, vector<128x128xbf16>
    %cst_11 = arith.constant dense<0.000000e+00> : vector<256x128xf32>
    %11 = tpu.matmul %9, %10, %cst_11 {dimension_numbers = #tpu.dot_dimension_numbers<[1], [0], [0], [1], [0, 0, 1, 1], [], []>} : vector<256x128xbf16>, vector<128x128xbf16>, vector<256x128xf32> -> vector<256x128xf32>
    %c0_12 = arith.constant 0 : index
    %c0_13 = arith.constant 0 : index
    %12 = vector.load %arg7[%c0_12, %c0_13] : memref<1x128xf32, #tpu.memory_space<vmem>>, vector<1x128xf32>
    %13 = vector.broadcast %12 : vector<1x128xf32> to vector<256x128xf32>
    %14 = arith.mulf %11, %13 : vector<256x128xf32>
    %c0_14 = arith.constant 0 : index
    %c0_15 = arith.constant 0 : index
    %15 = vector.load %arg8[%c0_14, %c0_15] : memref<1x128xf32, #tpu.memory_space<vmem>>, vector<1x128xf32>
    %16 = vector.broadcast %15 : vector<1x128xf32> to vector<256x128xf32>
    %17 = arith.addf %14, %16 : vector<256x128xf32>
    %18 = arith.addf %8, %17 : vector<256x128xf32>
    %cst_16 = arith.constant 0.000000e+00 : f32
    %19 = vector.broadcast %cst_16 : f32 to vector<256x128xf32>
    %20 = arith.maximumf %18, %19 : vector<256x128xf32>
    %c0_17 = arith.constant 0 : index
    %c0_18 = arith.constant 0 : index
    %21 = vector.load %arg9[%c0_17, %c0_18] : memref<256x128xf32, #tpu.memory_space<vmem>>, vector<256x128xf32>
    tpu.vector_store %arg9[%c0_17, %c0_18], %20 {strides = array<i32>} : memref<256x128xf32, #tpu.memory_space<vmem>>, vector<256x128xf32>,
    return
  }
  func.func @transform_0(%arg0: i32) -> (i32, i32) {
    %c0_i32 = arith.constant 0 : i32
    %c0_i32_0 = arith.constant 0 : i32
    return %arg0, %c0_i32 : i32, i32
  }
  func.func @transform_1(%arg0: i32) -> (i32, i32) {
    %c0_i32 = arith.constant 0 : i32
    %c0_i32_0 = arith.constant 0 : i32
    %c0_i32_1 = arith.constant 0 : i32
    return %c0_i32, %c0_i32_0 : i32, i32
  }
  func.func @transform_2(%arg0: i32) -> (i32, i32) {
    %c0_i32 = arith.constant 0 : i32
    %c0_i32_0 = arith.constant 0 : i32
    %c0_i32_1 = arith.constant 0 : i32
    return %c0_i32, %c0_i32_0 : i32, i32
  }
  func.func @transform_3(%arg0: i32) -> (i32, i32) {
    %c0_i32 = arith.constant 0 : i32
    %c0_i32_0 = arith.constant 0 : i32
    %c0_i32_1 = arith.constant 0 : i32
    return %c0_i32, %c0_i32_0 : i32, i32
  }
  func.func @transform_4(%arg0: i32) -> (i32, i32) {
    %c0_i32 = arith.constant 0 : i32
    %c0_i32_0 = arith.constant 0 : i32
    return %arg0, %c0_i32 : i32, i32
  }
  func.func @transform_5(%arg0: i32) -> (i32, i32) {
    %c0_i32 = arith.constant 0 : i32
    %c0_i32_0 = arith.constant 0 : i32
    %c0_i32_1 = arith.constant 0 : i32
    return %c0_i32, %c0_i32_0 : i32, i32
  }
  func.func @transform_6(%arg0: i32) -> (i32, i32) {
    %c0_i32 = arith.constant 0 : i32
    %c0_i32_0 = arith.constant 0 : i32
    %c0_i32_1 = arith.constant 0 : i32
    return %c0_i32, %c0_i32_0 : i32, i32
  }
  func.func @transform_7(%arg0: i32) -> (i32, i32) {
    %c0_i32 = arith.constant 0 : i32
    %c0_i32_0 = arith.constant 0 : i32
    %c0_i32_1 = arith.constant 0 : i32
    return %c0_i32, %c0_i32_0 : i32, i32
  }
  func.func @transform_8(%arg0: i32) -> (i32, i32) {
    %c0_i32 = arith.constant 0 : i32
    %c0_i32_0 = arith.constant 0 : i32
    return %arg0, %c0_i32 : i32, i32
  }
}

</mosaic_0001>

<llo_original>
// kernel: _lambda_.2
$region0: #{_lambda_.2}
  #allocation0 [shape = 'u32[]', space=smem, size = 0x4, offset = 0x4, fixed_abs, tag = 'smem constant byte address 0x4 - core index']
  #allocation1 [shape = 'u32[72,128]{1,0:T(1,128)}', space=vmem, size = 0x9000, scoped, tag = 'internal scratch']
  %s0 = inlined_call_operand.vmem [shape: bf16[512,1152], index: 0, kind: input, shape index: {}]
  %s1 = inlined_call_operand.vmem [shape: bf16[1152,128], index: 1, kind: input, shape index: {}]
  %s2 = inlined_call_operand.vmem [shape: f32[1,128], index: 2, kind: input, shape index: {}]
  %s3 = inlined_call_operand.vmem [shape: f32[1,128], index: 3, kind: input, shape index: {}]
  %s4 = inlined_call_operand.vmem [shape: bf16[512,128], index: 4, kind: output, shape index: {}]
  %s5 = sld [smem:[#allocation0]]
  $region49: #{_lambda_.2} parent=0
    _
  %s7 = ssub.s32 1, %s5
  %s8 = scalar_select 0, %s7, %s5
  loop: start=0, step=1, limit=4
  $region2: #{_lambda_.2} parent=0 // loop_pre_header
    _
  $region3: #{_lambda_.2} parent=0 // loop_header
    %s10 = sphi 0, %s14
    %p11 = scmp.ge.s32.totalorder %s10, 4
    %s20 = sphi 0, %s22
    %s23 = sphi 0, %s20
    %s24 = sphi 0, %s23
    %s40 = sphi 0, %s24
    %s44 = sphi 0, %s44
    %s46 = sphi 0, %s44
    %s47 = sphi 0, %s46
    %s61 = sphi 0, %s47
    %s65 = sphi 0, %s65
    %s67 = sphi 0, %s65
    %s68 = sphi 0, %s67
    %s82 = sphi 0, %s68
    %s86 = sphi 0, %s86
    %s88 = sphi 0, %s86
    %s89 = sphi 0, %s88
    %s103 = sphi 0, %s89
    %s109 = sphi 0, %s111
    %s112 = sphi 0, %s109
    %s113 = sphi 0, %s112
    %s129 = sphi 0, %s113
  $region4: #{_lambda_.2} parent=0 // loop_header_branch
    %13 = sbr.rel (%p11) target = $region8
  $region5: #{_lambda_.2} parent=0 // loop_body
    %s15 = ssub.s32 %s10, 1
    %s16 = ssub.s32 %s10, 2
    %s17 = sadd.s32 %s10, 1
    %s18 = ssub.s32 %s10, %s17
    %p19 = scmp.eq.s32.totalorder %s18, 0
    %s21 = sadd.s32 %s20, 1
    %s22 = scalar_select %p19, %s20, %s21
    %p25 = pneg %p19
    %p26 = scmp.eq.s32.totalorder %s10, 1
    %p27 = por %p25, %p26
    %p28 = scmp.ne.s32.totalorder %s20, %s23
    %p29 = scmp.eq.s32.totalorder %s10, 0
    %p30 = por %p28, %p29
    %p31 = scmp.ne.s32.totalorder %s20, %s23
    %p32 = scmp.eq.s32.totalorder %s15, 1
    %p33 = por %p31, %p32
    %p34 = scmp.ne.s32.totalorder %s23, %s24
    %p35 = scmp.eq.s32.totalorder %s15, 0
    %p36 = por %p34, %p35
    %p37 = scmp.ne.s32.totalorder %s23, %s24
    %p38 = scmp.eq.s32.totalorder %s16, 1
    %p39 = por %p37, %p38
    %p41 = scmp.ne.s32.totalorder %s24, %s40
    %p42 = scmp.eq.s32.totalorder %s16, 0
    %p43 = por %p41, %p42
    %s45 = sadd.s32 %s44, 1
    %p48 = scmp.eq.s32.totalorder %s10, 1
    %p49 = scmp.ne.s32.totalorder %s44, %s46
    %p50 = scmp.eq.s32.totalorder %s10, 0
    %p51 = por %p49, %p50
    %p52 = scmp.ne.s32.totalorder %s44, %s46
    %p53 = scmp.eq.s32.totalorder %s15, 1
    %p54 = por %p52, %p53
    %p55 = scmp.ne.s32.totalorder %s46, %s47
    %p56 = scmp.eq.s32.totalorder %s15, 0
    %p57 = por %p55, %p56
    %p58 = scmp.ne.s32.totalorder %s46, %s47
    %p59 = scmp.eq.s32.totalorder %s16, 1
    %p60 = por %p58, %p59
    %p62 = scmp.ne.s32.totalorder %s47, %s61
    %p63 = scmp.eq.s32.totalorder %s16, 0
    %p64 = por %p62, %p63
    %s66 = sadd.s32 %s65, 1
    %p69 = scmp.eq.s32.totalorder %s10, 1
    %p70 = scmp.ne.s32.totalorder %s65, %s67
    %p71 = scmp.eq.s32.totalorder %s10, 0
    %p72 = por %p70, %p71
    %p73 = scmp.ne.s32.totalorder %s65, %s67
    %p74 = scmp.eq.s32.totalorder %s15, 1
    %p75 = por %p73, %p74
    %p76 = scmp.ne.s32.totalorder %s67, %s68
    %p77 = scmp.eq.s32.totalorder %s15, 0
    %p78 = por %p76, %p77
    %p79 = scmp.ne.s32.totalorder %s67, %s68
    %p80 = scmp.eq.s32.totalorder %s16, 1
    %p81 = por %p79, %p80
    %p83 = scmp.ne.s32.totalorder %s68, %s82
    %p84 = scmp.eq.s32.totalorder %s16, 0
    %p85 = por %p83, %p84
    %s87 = sadd.s32 %s86, 1
    %p90 = scmp.eq.s32.totalorder %s10, 1
    %p91 = scmp.ne.s32.totalorder %s86, %s88
    %p92 = scmp.eq.s32.totalorder %s10, 0
    %p93 = por %p91, %p92
    %p94 = scmp.ne.s32.totalorder %s86, %s88
    %p95 = scmp.eq.s32.totalorder %s15, 1
    %p96 = por %p94, %p95
    %p97 = scmp.ne.s32.totalorder %s88, %s89
    %p98 = scmp.eq.s32.totalorder %s15, 0
    %p99 = por %p97, %p98
    %p100 = scmp.ne.s32.totalorder %s88, %s89
    %p101 = scmp.eq.s32.totalorder %s16, 1
    %p102 = por %p100, %p101
    %p104 = scmp.ne.s32.totalorder %s89, %s103
    %p105 = scmp.eq.s32.totalorder %s16, 0
    %p106 = por %p104, %p105
    %s107 = ssub.s32 %s10, %s17
    %p108 = scmp.eq.s32.totalorder %s107, 0
    %s110 = sadd.s32 %s109, 1
    %s111 = scalar_select %p108, %s109, %s110
    %p114 = pneg %p108
    %p115 = scmp.eq.s32.totalorder %s10, 1
    %p116 = por %p114, %p115
    %p117 = scmp.ne.s32.totalorder %s109, %s112
    %p118 = scmp.eq.s32.totalorder %s10, 0
    %p119 = por %p117, %p118
    %p120 = scmp.ne.s32.totalorder %s109, %s112
    %p121 = scmp.eq.s32.totalorder %s15, 1
    %p122 = por %p120, %p121
    %p123 = scmp.ne.s32.totalorder %s112, %s113
    %p124 = scmp.eq.s32.totalorder %s15, 0
    %p125 = por %p123, %p124
    %p126 = scmp.ne.s32.totalorder %s112, %s113
    %p127 = scmp.eq.s32.totalorder %s16, 1
    %p128 = por %p126, %p127
    %p130 = scmp.ne.s32.totalorder %s113, %s129
    %p131 = scmp.eq.s32.totalorder %s16, 0
    %p132 = por %p130, %p131
    %p133 = scmp.le.s32.totalorder 1, %s10
    %p134 = scmp.lt.s32.totalorder %s10, 3
    %p135 = pnand %p133, %p134
    %p136 = pneg %p135
    // Predicated region
    $region9: #{_lambda_.2} parent=5 // pred_check
      _
    $region10: #{_lambda_.2} parent=5 // pred_check_branch
      %138 = sbr.rel (%p135) target = $region12
    $region11: #{_lambda_.2} parent=5 // pred_region
      %s139 = ssub.s32 %s10, 1
      // Predicated region
      $region13: #{_lambda_.2} parent=11 // pred_check
        %p140 = pneg %p57
      $region14: #{_lambda_.2} parent=11 // pred_check_branch
        %142 = sbr.rel (%p140) target = $region16
      $region15: #{_lambda_.2} parent=11 // pred_region
        _
      $region16: #{_lambda_.2} parent=11 // pred_fallthru
        _
      // Predicated region
      $region17: #{_lambda_.2} parent=11 // pred_check
        %p143 = pneg %p78
      $region18: #{_lambda_.2} parent=11 // pred_check_branch
        %145 = sbr.rel (%p143) target = $region20
      $region19: #{_lambda_.2} parent=11 // pred_region
        _
      $region20: #{_lambda_.2} parent=11 // pred_fallthru
        _
      // Predicated region
      $region21: #{_lambda_.2} parent=11 // pred_check
        %p146 = pneg %p99
      $region22: #{_lambda_.2} parent=11 // pred_check_branch
        %148 = sbr.rel (%p146) target = $region24
      $region23: #{_lambda_.2} parent=11 // pred_region
        _
      $region24: #{_lambda_.2} parent=11 // pred_fallthru
        _
    $region12: #{_lambda_.2} parent=5 // pred_fallthru
      _
    %p149 = scmp.lt.s32.totalorder %s10, 2
    // Predicated region
    $region25: #{_lambda_.2} parent=5 // pred_check
      %p150 = pneg %p149
    $region26: #{_lambda_.2} parent=5 // pred_check_branch
      %152 = sbr.rel (%p150) target = $region28
    $region27: #{_lambda_.2} parent=5 // pred_region
      // Predicated region
      $region29: #{_lambda_.2} parent=27 // pred_check
        %p153 = pneg %p30
      $region30: #{_lambda_.2} parent=27 // pred_check_branch
        %155 = sbr.rel (%p153) target = $region32
      $region31: #{_lambda_.2} parent=27 // pred_region
        %s156 = smul.u32 32, %s10
        %p157 = scmp.lt.s32.totalorder %s156, 63
        %s158 = scalar_select %p157, %s156, 63
        %s159 = smul.addr %s158, 9
        %s160 = smul.addr %s159, 4
        %s161 = scalar_lea.vmem %s0, %s160
        %s162 = smul.u32 32, %s10
      $region32: #{_lambda_.2} parent=27 // pred_fallthru
        _
    $region28: #{_lambda_.2} parent=5 // pred_fallthru
      _
    %p163 = scmp.le.s32.totalorder 1, %s10
    %p164 = scmp.lt.s32.totalorder %s10, 3
    %p165 = pnand %p163, %p164
    %p166 = pneg %p165
    // Predicated region
    $region33: #{_lambda_.2} parent=5 // pred_check
      _
    $region34: #{_lambda_.2} parent=5 // pred_check_branch
      %168 = sbr.rel (%p165) target = $region36
    $region35: #{_lambda_.2} parent=5 // pred_region
      %s169 = ssub.s32 %s10, 1
      %s170 = smul.u32 32, %s15
      %p171 = scmp.lt.s32.totalorder %s170, 63
      %s172 = scalar_select %p171, %s170, 63
      %s173 = smul.addr %s172, 9
      %s174 = smul.addr %s173, 4
      %s175 = scalar_lea.vmem %s0, %s174
      %p176 = pneg %p36
      %p177 = pneg %p33
      %p178 = pneg %p57
      %p179 = pneg %p54
      %p180 = pneg %p78
      %p181 = pneg %p75
      %p182 = pneg %p99
      %p183 = pneg %p96
      %p184 = pneg %p125
      %p185 = pneg %p122
      %s186 = smul.u32 32, %s15
      %p187 = scmp.lt.s32.totalorder %s186, 63
      %s188 = scalar_select %p187, %s186, 63
      %s189 = smul.addr %s188, 4
      %s190 = scalar_lea.vmem %s4, %s189
      %s191 = smul.u32 32, %s15
      %p192 = scmp.lt.s32.totalorder %s191, 63
      %s193 = scalar_select %p192, %s191, 63
      %s194 = smul.addr %s193, 9
      %s195 = smul.addr %s194, 4
      %s196 = scalar_lea.vmem %s0, %s195
      %s197 = smul.u32 32, %s15
      %s198 = smul.u32 32, %s15
      %p199 = scmp.lt.s32.totalorder %s198, 63
      %s200 = scalar_select %p199, %s198, 63
      %s201 = smul.addr %s200, 4
      %s202 = scalar_lea.vmem %s4, %s201
      %s203 = smul.u32 32, %s15
      %v204 = vld [vmem:[%s196] sm:$0xff]
      %v205 = vld [vmem:[%s196 + $0x8] sm:$0xff]
      %v206 = vld [vmem:[%s196 + $0x10] sm:$0xff]
      %v207 = vld [vmem:[%s196 + $0x18] sm:$0xff]
      %v208 = vld [vmem:[%s196 + $0x20] sm:$0xf]
      %v209 = vld [vmem:[%s196 + $0x24] sm:$0xff]
      %v210 = vld [vmem:[%s196 + $0x2c] sm:$0xff]
      %v211 = vld [vmem:[%s196 + $0x34] sm:$0xff]
      %v212 = vld [vmem:[%s196 + $0x3c] sm:$0xff]
      %v213 = vld [vmem:[%s196 + $0x44] sm:$0xf]
      %v214 = vld [vmem:[%s196 + $0x48] sm:$0xff]
      %v215 = vld [vmem:[%s196 + $0x50] sm:$0xff]
      %v216 = vld [vmem:[%s196 + $0x58] sm:$0xff]
      %v217 = vld [vmem:[%s196 + $0x60] sm:$0xff]
      %v218 = vld [vmem:[%s196 + $0x68] sm:$0xf]
      %v219 = vld [vmem:[%s196 + $0x6c] sm:$0xff]
      %v220 = vld [vmem:[%s196 + $0x74] sm:$0xff]
      %v221 = vld [vmem:[%s196 + $0x7c] sm:$0xff]
      %v222 = vld [vmem:[%s196 + $0x84] sm:$0xff]
      %v223 = vld [vmem:[%s196 + $0x8c] sm:$0xf]
      %v224 = vld [vmem:[%s196 + $0x90] sm:$0xff]
      %v225 = vld [vmem:[%s196 + $0x98] sm:$0xff]
      %v226 = vld [vmem:[%s196 + $0xa0] sm:$0xff]
      %v227 = vld [vmem:[%s196 + $0xa8] sm:$0xff]
      %v228 = vld [vmem:[%s196 + $0xb0] sm:$0xf]
      %v229 = vld [vmem:[%s196 + $0xb4] sm:$0xff]
      %v230 = vld [vmem:[%s196 + $0xbc] sm:$0xff]
      %v231 = vld [vmem:[%s196 + $0xc4] sm:$0xff]
      %v232 = vld [vmem:[%s196 + $0xcc] sm:$0xff]
      %v233 = vld [vmem:[%s196 + $0xd4] sm:$0xf]
      %v234 = vld [vmem:[%s196 + $0xd8] sm:$0xff]
      %v235 = vld [vmem:[%s196 + $0xe0] sm:$0xff]
      %v236 = vld [vmem:[%s196 + $0xe8] sm:$0xff]
      %v237 = vld [vmem:[%s196 + $0xf0] sm:$0xff]
      %v238 = vld [vmem:[%s196 + $0xf8] sm:$0xf]
      %v239 = vld [vmem:[%s196 + $0xfc] sm:$0xff]
      %v240 = vld [vmem:[%s196 + $0x104] sm:$0xff]
      %v241 = vld [vmem:[%s196 + $0x10c] sm:$0xff]
      %v242 = vld [vmem:[%s196 + $0x114] sm:$0xff]
      %v243 = vld [vmem:[%s196 + $0x11c] sm:$0xf]
      %v244 = vld [vmem:[%s196 + $0x120] sm:$0xff]
      %v245 = vld [vmem:[%s196 + $0x128] sm:$0xff]
      %v246 = vld [vmem:[%s196 + $0x130] sm:$0xff]
      %v247 = vld [vmem:[%s196 + $0x138] sm:$0xff]
      %v248 = vld [vmem:[%s196 + $0x140] sm:$0xf]
      %v249 = vld [vmem:[%s196 + $0x144] sm:$0xff]
      %v250 = vld [vmem:[%s196 + $0x14c] sm:$0xff]
      %v251 = vld [vmem:[%s196 + $0x154] sm:$0xff]
      %v252 = vld [vmem:[%s196 + $0x15c] sm:$0xff]
      %v253 = vld [vmem:[%s196 + $0x164] sm:$0xf]
      %v254 = vld [vmem:[%s196 + $0x168] sm:$0xff]
      %v255 = vld [vmem:[%s196 + $0x170] sm:$0xff]
      %v256 = vld [vmem:[%s196 + $0x178] sm:$0xff]
      %v257 = vld [vmem:[%s196 + $0x180] sm:$0xff]
      %v258 = vld [vmem:[%s196 + $0x188] sm:$0xf]
      %v259 = vld [vmem:[%s196 + $0x18c] sm:$0xff]
      %v260 = vld [vmem:[%s196 + $0x194] sm:$0xff]
      %v261 = vld [vmem:[%s196 + $0x19c] sm:$0xff]
      %v262 = vld [vmem:[%s196 + $0x1a4] sm:$0xff]
      %v263 = vld [vmem:[%s196 + $0x1ac] sm:$0xf]
      %v264 = vld [vmem:[%s196 + $0x1b0] sm:$0xff]
      %v265 = vld [vmem:[%s196 + $0x1b8] sm:$0xff]
      %v266 = vld [vmem:[%s196 + $0x1c0] sm:$0xff]
      %v267 = vld [vmem:[%s196 + $0x1c8] sm:$0xff]
      %v268 = vld [vmem:[%s196 + $0x1d0] sm:$0xf]
      %v269 = vld [vmem:[%s196 + $0x1d4] sm:$0xff]
      %v270 = vld [vmem:[%s196 + $0x1dc] sm:$0xff]
      %v271 = vld [vmem:[%s196 + $0x1e4] sm:$0xff]
      %v272 = vld [vmem:[%s196 + $0x1ec] sm:$0xff]
      %v273 = vld [vmem:[%s196 + $0x1f4] sm:$0xf]
      %v274 = vld [vmem:[%s196 + $0x1f8] sm:$0xff]
      %v275 = vld [vmem:[%s196 + $0x200] sm:$0xff]
      %v276 = vld [vmem:[%s196 + $0x208] sm:$0xff]
      %v277 = vld [vmem:[%s196 + $0x210] sm:$0xff]
      %v278 = vld [vmem:[%s196 + $0x218] sm:$0xf]
      %v279 = vld [vmem:[%s196 + $0x21c] sm:$0xff]
      %v280 = vld [vmem:[%s196 + $0x224] sm:$0xff]
      %v281 = vld [vmem:[%s196 + $0x22c] sm:$0xff]
      %v282 = vld [vmem:[%s196 + $0x234] sm:$0xff]
      %v283 = vld [vmem:[%s196 + $0x23c] sm:$0xf]
      %v284 = vld [vmem:[%s196 + $0x240] sm:$0xff]
      %v285 = vld [vmem:[%s196 + $0x248] sm:$0xff]
      %v286 = vld [vmem:[%s196 + $0x250] sm:$0xff]
      %v287 = vld [vmem:[%s196 + $0x258] sm:$0xff]
      %v288 = vld [vmem:[%s196 + $0x260] sm:$0xf]
      %v289 = vld [vmem:[%s196 + $0x264] sm:$0xff]
      %v290 = vld [vmem:[%s196 + $0x26c] sm:$0xff]
      %v291 = vld [vmem:[%s196 + $0x274] sm:$0xff]
      %v292 = vld [vmem:[%s196 + $0x27c] sm:$0xff]
      %v293 = vld [vmem:[%s196 + $0x284] sm:$0xf]
      %v294 = vld [vmem:[%s196 + $0x288] sm:$0xff]
      %v295 = vld [vmem:[%s196 + $0x290] sm:$0xff]
      %v296 = vld [vmem:[%s196 + $0x298] sm:$0xff]
      %v297 = vld [vmem:[%s196 + $0x2a0] sm:$0xff]
      %v298 = vld [vmem:[%s196 + $0x2a8] sm:$0xf]
      %v299 = vld [vmem:[%s196 + $0x2ac] sm:$0xff]
      %v300 = vld [vmem:[%s196 + $0x2b4] sm:$0xff]
      %v301 = vld [vmem:[%s196 + $0x2bc] sm:$0xff]
      %v302 = vld [vmem:[%s196 + $0x2c4] sm:$0xff]
      %v303 = vld [vmem:[%s196 + $0x2cc] sm:$0xf]
      %v304 = vld [vmem:[%s196 + $0x2d0] sm:$0xff]
      %v305 = vld [vmem:[%s196 + $0x2d8] sm:$0xff]
      %v306 = vld [vmem:[%s196 + $0x2e0] sm:$0xff]
      %v307 = vld [vmem:[%s196 + $0x2e8] sm:$0xff]
      %v308 = vld [vmem:[%s196 + $0x2f0] sm:$0xf]
      %v309 = vld [vmem:[%s196 + $0x2f4] sm:$0xff]
      %v310 = vld [vmem:[%s196 + $0x2fc] sm:$0xff]
      %v311 = vld [vmem:[%s196 + $0x304] sm:$0xff]
      %v312 = vld [vmem:[%s196 + $0x30c] sm:$0xff]
      %v313 = vld [vmem:[%s196 + $0x314] sm:$0xf]
      %v314 = vld [vmem:[%s196 + $0x318] sm:$0xff]
      %v315 = vld [vmem:[%s196 + $0x320] sm:$0xff]
      %v316 = vld [vmem:[%s196 + $0x328] sm:$0xff]
      %v317 = vld [vmem:[%s196 + $0x330] sm:$0xff]
      %v318 = vld [vmem:[%s196 + $0x338] sm:$0xf]
      %v319 = vld [vmem:[%s196 + $0x33c] sm:$0xff]
      %v320 = vld [vmem:[%s196 + $0x344] sm:$0xff]
      %v321 = vld [vmem:[%s196 + $0x34c] sm:$0xff]
      %v322 = vld [vmem:[%s196 + $0x354] sm:$0xff]
      %v323 = vld [vmem:[%s196 + $0x35c] sm:$0xf]
      %v324 = vld [vmem:[%s196 + $0x360] sm:$0xff]
      %v325 = vld [vmem:[%s196 + $0x368] sm:$0xff]
      %v326 = vld [vmem:[%s196 + $0x370] sm:$0xff]
      %v327 = vld [vmem:[%s196 + $0x378] sm:$0xff]
      %v328 = vld [vmem:[%s196 + $0x380] sm:$0xf]
      %v329 = vld [vmem:[%s196 + $0x384] sm:$0xff]
      %v330 = vld [vmem:[%s196 + $0x38c] sm:$0xff]
      %v331 = vld [vmem:[%s196 + $0x394] sm:$0xff]
      %v332 = vld [vmem:[%s196 + $0x39c] sm:$0xff]
      %v333 = vld [vmem:[%s196 + $0x3a4] sm:$0xf]
      %v334 = vld [vmem:[%s196 + $0x3a8] sm:$0xff]
      %v335 = vld [vmem:[%s196 + $0x3b0] sm:$0xff]
      %v336 = vld [vmem:[%s196 + $0x3b8] sm:$0xff]
      %v337 = vld [vmem:[%s196 + $0x3c0] sm:$0xff]
      %v338 = vld [vmem:[%s196 + $0x3c8] sm:$0xf]
      %v339 = vld [vmem:[%s196 + $0x3cc] sm:$0xff]
      %v340 = vld [vmem:[%s196 + $0x3d4] sm:$0xff]
      %v341 = vld [vmem:[%s196 + $0x3dc] sm:$0xff]
      %v342 = vld [vmem:[%s196 + $0x3e4] sm:$0xff]
      %v343 = vld [vmem:[%s196 + $0x3ec] sm:$0xf]
      %v344 = vld [vmem:[%s196 + $0x3f0] sm:$0xff]
      %v345 = vld [vmem:[%s196 + $0x3f8] sm:$0xff]
      %v346 = vld [vmem:[%s196 + $0x400] sm:$0xff]
      %v347 = vld [vmem:[%s196 + $0x408] sm:$0xff]
      %v348 = vld [vmem:[%s196 + $0x410] sm:$0xf]
      %v349 = vld [vmem:[%s196 + $0x414] sm:$0xff]
      %v350 = vld [vmem:[%s196 + $0x41c] sm:$0xff]
      %v351 = vld [vmem:[%s196 + $0x424] sm:$0xff]
      %v352 = vld [vmem:[%s196 + $0x42c] sm:$0xff]
      %v353 = vld [vmem:[%s196 + $0x434] sm:$0xf]
      %v354 = vld [vmem:[%s196 + $0x438] sm:$0xff]
      %v355 = vld [vmem:[%s196 + $0x440] sm:$0xff]
      %v356 = vld [vmem:[%s196 + $0x448] sm:$0xff]
      %v357 = vld [vmem:[%s196 + $0x450] sm:$0xff]
      %v358 = vld [vmem:[%s196 + $0x458] sm:$0xf]
      %v359 = vld [vmem:[%s196 + $0x45c] sm:$0xff]
      %v360 = vld [vmem:[%s196 + $0x464] sm:$0xff]
      %v361 = vld [vmem:[%s196 + $0x46c] sm:$0xff]
      %v362 = vld [vmem:[%s196 + $0x474] sm:$0xff]
      %v363 = vld [vmem:[%s196 + $0x47c] sm:$0xf]
      %v364 = vld [vmem:[%s1] sm:$0xf]
      %v365 = vld [vmem:[%s1 + $0x4] sm:$0xf]
      %v366 = vld [vmem:[%s1 + $0x8] sm:$0xf]
      %v367 = vld [vmem:[%s1 + $0xc] sm:$0xf]
      %v368 = vld [vmem:[%s1 + $0x10] sm:$0xf]
      %v369 = vld [vmem:[%s1 + $0x14] sm:$0xf]
      %v370 = vld [vmem:[%s1 + $0x18] sm:$0xf]
      %v371 = vld [vmem:[%s1 + $0x1c] sm:$0xf]
      %v372 = vld [vmem:[%s1 + $0x20] sm:$0xf]
      %v373 = vld [vmem:[%s1 + $0x24] sm:$0xf]
      %v374 = vld [vmem:[%s1 + $0x28] sm:$0xf]
      %v375 = vld [vmem:[%s1 + $0x2c] sm:$0xf]
      %v376 = vld [vmem:[%s1 + $0x30] sm:$0xf]
      %v377 = vld [vmem:[%s1 + $0x34] sm:$0xf]
      %v378 = vld [vmem:[%s1 + $0x38] sm:$0xf]
      %v379 = vld [vmem:[%s1 + $0x3c] sm:$0xf]
      %v380 = vld [vmem:[%s1 + $0x40] sm:$0xf]
      %v381 = vld [vmem:[%s1 + $0x44] sm:$0xf]
      %v382 = vld [vmem:[%s1 + $0x48] sm:$0xf]
      %v383 = vld [vmem:[%s1 + $0x4c] sm:$0xf]
      %v384 = vld [vmem:[%s1 + $0x50] sm:$0xf]
      %v385 = vld [vmem:[%s1 + $0x54] sm:$0xf]
      %v386 = vld [vmem:[%s1 + $0x58] sm:$0xf]
      %v387 = vld [vmem:[%s1 + $0x5c] sm:$0xf]
      %v388 = vld [vmem:[%s1 + $0x60] sm:$0xf]
      %v389 = vld [vmem:[%s1 + $0x64] sm:$0xf]
      %v390 = vld [vmem:[%s1 + $0x68] sm:$0xf]
      %v391 = vld [vmem:[%s1 + $0x6c] sm:$0xf]
      %v392 = vld [vmem:[%s1 + $0x70] sm:$0xf]
      %v393 = vld [vmem:[%s1 + $0x74] sm:$0xf]
      %v394 = vld [vmem:[%s1 + $0x78] sm:$0xf]
      %v395 = vld [vmem:[%s1 + $0x7c] sm:$0xf]
      %v396 = vld [vmem:[%s1 + $0x80] sm:$0xf]
      %v397 = vld [vmem:[%s1 + $0x84] sm:$0xf]
      %v398 = vld [vmem:[%s1 + $0x88] sm:$0xf]
      %v399 = vld [vmem:[%s1 + $0x8c] sm:$0xf]
      %v400 = vld [vmem:[%s1 + $0x90] sm:$0xf]
      %v401 = vld [vmem:[%s1 + $0x94] sm:$0xf]
      %v402 = vld [vmem:[%s1 + $0x98] sm:$0xf]
      %v403 = vld [vmem:[%s1 + $0x9c] sm:$0xf]
      %v404 = vld [vmem:[%s1 + $0xa0] sm:$0xf]
      %v405 = vld [vmem:[%s1 + $0xa4] sm:$0xf]
      %v406 = vld [vmem:[%s1 + $0xa8] sm:$0xf]
      %v407 = vld [vmem:[%s1 + $0xac] sm:$0xf]
      %v408 = vld [vmem:[%s1 + $0xb0] sm:$0xf]
      %v409 = vld [vmem:[%s1 + $0xb4] sm:$0xf]
      %v410 = vld [vmem:[%s1 + $0xb8] sm:$0xf]
      %v411 = vld [vmem:[%s1 + $0xbc] sm:$0xf]
      %v412 = vld [vmem:[%s1 + $0xc0] sm:$0xf]
      %v413 = vld [vmem:[%s1 + $0xc4] sm:$0xf]
      %v414 = vld [vmem:[%s1 + $0xc8] sm:$0xf]
      %v415 = vld [vmem:[%s1 + $0xcc] sm:$0xf]
      %v416 = vld [vmem:[%s1 + $0xd0] sm:$0xf]
      %v417 = vld [vmem:[%s1 + $0xd4] sm:$0xf]
      %v418 = vld [vmem:[%s1 + $0xd8] sm:$0xf]
      %v419 = vld [vmem:[%s1 + $0xdc] sm:$0xf]
      %v420 = vld [vmem:[%s1 + $0xe0] sm:$0xf]
      %v421 = vld [vmem:[%s1 + $0xe4] sm:$0xf]
      %v422 = vld [vmem:[%s1 + $0xe8] sm:$0xf]
      %v423 = vld [vmem:[%s1 + $0xec] sm:$0xf]
      %v424 = vld [vmem:[%s1 + $0xf0] sm:$0xf]
      %v425 = vld [vmem:[%s1 + $0xf4] sm:$0xf]
      %v426 = vld [vmem:[%s1 + $0xf8] sm:$0xf]
      %v427 = vld [vmem:[%s1 + $0xfc] sm:$0xf]
      %v428 = vld [vmem:[%s1 + $0x100] sm:$0xf]
      %v429 = vld [vmem:[%s1 + $0x104] sm:$0xf]
      %v430 = vld [vmem:[%s1 + $0x108] sm:$0xf]
      %v431 = vld [vmem:[%s1 + $0x10c] sm:$0xf]
      %v432 = vld [vmem:[%s1 + $0x110] sm:$0xf]
      %v433 = vld [vmem:[%s1 + $0x114] sm:$0xf]
      %v434 = vld [vmem:[%s1 + $0x118] sm:$0xf]
      %v435 = vld [vmem:[%s1 + $0x11c] sm:$0xf]
      %v436 = vld [vmem:[%s1 + $0x120] sm:$0xf]
      %v437 = vld [vmem:[%s1 + $0x124] sm:$0xf]
      %v438 = vld [vmem:[%s1 + $0x128] sm:$0xf]
      %v439 = vld [vmem:[%s1 + $0x12c] sm:$0xf]
      %v440 = vld [vmem:[%s1 + $0x130] sm:$0xf]
      %v441 = vld [vmem:[%s1 + $0x134] sm:$0xf]
      %v442 = vld [vmem:[%s1 + $0x138] sm:$0xf]
      %v443 = vld [vmem:[%s1 + $0x13c] sm:$0xf]
      %v444 = vld [vmem:[%s1 + $0x140] sm:$0xf]
      %v445 = vld [vmem:[%s1 + $0x144] sm:$0xf]
      %v446 = vld [vmem:[%s1 + $0x148] sm:$0xf]
      %v447 = vld [vmem:[%s1 + $0x14c] sm:$0xf]
      %v448 = vld [vmem:[%s1 + $0x150] sm:$0xf]
      %v449 = vld [vmem:[%s1 + $0x154] sm:$0xf]
      %v450 = vld [vmem:[%s1 + $0x158] sm:$0xf]
      %v451 = vld [vmem:[%s1 + $0x15c] sm:$0xf]
      %v452 = vld [vmem:[%s1 + $0x160] sm:$0xf]
      %v453 = vld [vmem:[%s1 + $0x164] sm:$0xf]
      %v454 = vld [vmem:[%s1 + $0x168] sm:$0xf]
      %v455 = vld [vmem:[%s1 + $0x16c] sm:$0xf]
      %v456 = vld [vmem:[%s1 + $0x170] sm:$0xf]
      %v457 = vld [vmem:[%s1 + $0x174] sm:$0xf]
      %v458 = vld [vmem:[%s1 + $0x178] sm:$0xf]
      %v459 = vld [vmem:[%s1 + $0x17c] sm:$0xf]
      %v460 = vld [vmem:[%s1 + $0x180] sm:$0xf]
      %v461 = vld [vmem:[%s1 + $0x184] sm:$0xf]
      %v462 = vld [vmem:[%s1 + $0x188] sm:$0xf]
      %v463 = vld [vmem:[%s1 + $0x18c] sm:$0xf]
      %v464 = vld [vmem:[%s1 + $0x190] sm:$0xf]
      %v465 = vld [vmem:[%s1 + $0x194] sm:$0xf]
      %v466 = vld [vmem:[%s1 + $0x198] sm:$0xf]
      %v467 = vld [vmem:[%s1 + $0x19c] sm:$0xf]
      %v468 = vld [vmem:[%s1 + $0x1a0] sm:$0xf]
      %v469 = vld [vmem:[%s1 + $0x1a4] sm:$0xf]
      %v470 = vld [vmem:[%s1 + $0x1a8] sm:$0xf]
      %v471 = vld [vmem:[%s1 + $0x1ac] sm:$0xf]
      %v472 = vld [vmem:[%s1 + $0x1b0] sm:$0xf]
      %v473 = vld [vmem:[%s1 + $0x1b4] sm:$0xf]
      %v474 = vld [vmem:[%s1 + $0x1b8] sm:$0xf]
      %v475 = vld [vmem:[%s1 + $0x1bc] sm:$0xf]
      %v476 = vld [vmem:[%s1 + $0x1c0] sm:$0xf]
      %v477 = vld [vmem:[%s1 + $0x1c4] sm:$0xf]
      %v478 = vld [vmem:[%s1 + $0x1c8] sm:$0xf]
      %v479 = vld [vmem:[%s1 + $0x1cc] sm:$0xf]
      %v480 = vld [vmem:[%s1 + $0x1d0] sm:$0xf]
      %v481 = vld [vmem:[%s1 + $0x1d4] sm:$0xf]
      %v482 = vld [vmem:[%s1 + $0x1d8] sm:$0xf]
      %v483 = vld [vmem:[%s1 + $0x1dc] sm:$0xf]
      %v484 = vld [vmem:[%s1 + $0x1e0] sm:$0xf]
      %v485 = vld [vmem:[%s1 + $0x1e4] sm:$0xf]
      %v486 = vld [vmem:[%s1 + $0x1e8] sm:$0xf]
      %v487 = vld [vmem:[%s1 + $0x1ec] sm:$0xf]
      %v488 = vld [vmem:[%s1 + $0x1f0] sm:$0xf]
      %v489 = vld [vmem:[%s1 + $0x1f4] sm:$0xf]
      %v490 = vld [vmem:[%s1 + $0x1f8] sm:$0xf]
      %v491 = vld [vmem:[%s1 + $0x1fc] sm:$0xf]
      %v492 = vld [vmem:[%s1 + $0x200] sm:$0xf]
      %v493 = vld [vmem:[%s1 + $0x204] sm:$0xf]
      %v494 = vld [vmem:[%s1 + $0x208] sm:$0xf]
      %v495 = vld [vmem:[%s1 + $0x20c] sm:$0xf]
      %v496 = vld [vmem:[%s1 + $0x210] sm:$0xf]
      %v497 = vld [vmem:[%s1 + $0x214] sm:$0xf]
      %v498 = vld [vmem:[%s1 + $0x218] sm:$0xf]
      %v499 = vld [vmem:[%s1 + $0x21c] sm:$0xf]
      %v500 = vld [vmem:[%s1 + $0x220] sm:$0xf]
      %v501 = vld [vmem:[%s1 + $0x224] sm:$0xf]
      %v502 = vld [vmem:[%s1 + $0x228] sm:$0xf]
      %v503 = vld [vmem:[%s1 + $0x22c] sm:$0xf]
      %v504 = vld [vmem:[%s1 + $0x230] sm:$0xf]
      %v505 = vld [vmem:[%s1 + $0x234] sm:$0xf]
      %v506 = vld [vmem:[%s1 + $0x238] sm:$0xf]
      %v507 = vld [vmem:[%s1 + $0x23c] sm:$0xf]
      %v668 = vunpack.c.l.b16 %v204
      %v669 = vunpack.c.h.b16 %v204
      %v670 = vunpack.c.l.b16 %v205
      %v671 = vunpack.c.h.b16 %v205
      %v672 = vunpack.c.l.b16 %v206
      %v673 = vunpack.c.h.b16 %v206
      %v674 = vunpack.c.l.b16 %v207
      %v675 = vunpack.c.h.b16 %v207
      %v676 = vunpack.c.l.b16 %v208
      %v677 = vunpack.c.l.b16 %v209
      %v678 = vunpack.c.h.b16 %v209
      %v679 = vunpack.c.l.b16 %v210
      %v680 = vunpack.c.h.b16 %v210
      %v681 = vunpack.c.l.b16 %v211
      %v682 = vunpack.c.h.b16 %v211
      %v683 = vunpack.c.l.b16 %v212
      %v684 = vunpack.c.h.b16 %v212
      %v685 = vunpack.c.l.b16 %v213
      %v686 = vunpack.c.l.b16 %v214
      %v687 = vunpack.c.h.b16 %v214
      %v688 = vunpack.c.l.b16 %v215
      %v689 = vunpack.c.h.b16 %v215
      %v690 = vunpack.c.l.b16 %v216
      %v691 = vunpack.c.h.b16 %v216
      %v692 = vunpack.c.l.b16 %v217
      %v693 = vunpack.c.h.b16 %v217
      %v694 = vunpack.c.l.b16 %v218
      %v695 = vunpack.c.l.b16 %v219
      %v696 = vunpack.c.h.b16 %v219
      %v697 = vunpack.c.l.b16 %v220
      %v698 = vunpack.c.h.b16 %v220
      %v699 = vunpack.c.l.b16 %v221
      %v700 = vunpack.c.h.b16 %v221
      %v701 = vunpack.c.l.b16 %v222
      %v702 = vunpack.c.h.b16 %v222
      %v703 = vunpack.c.l.b16 %v223
      %v704 = vunpack.c.l.b16 %v224
      %v705 = vunpack.c.h.b16 %v224
      %v706 = vunpack.c.l.b16 %v225
      %v707 = vunpack.c.h.b16 %v225
      %v708 = vunpack.c.l.b16 %v226
      %v709 = vunpack.c.h.b16 %v226
      %v710 = vunpack.c.l.b16 %v227
      %v711 = vunpack.c.h.b16 %v227
      %v712 = vunpack.c.l.b16 %v228
      %v713 = vunpack.c.l.b16 %v229
      %v714 = vunpack.c.h.b16 %v229
      %v715 = vunpack.c.l.b16 %v230
      %v716 = vunpack.c.h.b16 %v230
      %v717 = vunpack.c.l.b16 %v231
      %v718 = vunpack.c.h.b16 %v231
      %v719 = vunpack.c.l.b16 %v232
      %v720 = vunpack.c.h.b16 %v232
      %v721 = vunpack.c.l.b16 %v233
      %v722 = vunpack.c.l.b16 %v234
      %v723 = vunpack.c.h.b16 %v234
      %v724 = vunpack.c.l.b16 %v235
      %v725 = vunpack.c.h.b16 %v235
      %v726 = vunpack.c.l.b16 %v236
      %v727 = vunpack.c.h.b16 %v236
      %v728 = vunpack.c.l.b16 %v237
      %v729 = vunpack.c.h.b16 %v237
      %v730 = vunpack.c.l.b16 %v238
      %v731 = vunpack.c.l.b16 %v239
      %v732 = vunpack.c.h.b16 %v239
      %v733 = vunpack.c.l.b16 %v240
      %v734 = vunpack.c.h.b16 %v240
      %v735 = vunpack.c.l.b16 %v241
      %v736 = vunpack.c.h.b16 %v241
      %v737 = vunpack.c.l.b16 %v242
      %v738 = vunpack.c.h.b16 %v242
      %v739 = vunpack.c.l.b16 %v243
      %v740 = vunpack.c.l.b16 %v244
      %v741 = vunpack.c.h.b16 %v244
      %v742 = vunpack.c.l.b16 %v245
      %v743 = vunpack.c.h.b16 %v245
      %v744 = vunpack.c.l.b16 %v246
      %v745 = vunpack.c.h.b16 %v246
      %v746 = vunpack.c.l.b16 %v247
      %v747 = vunpack.c.h.b16 %v247
      %v748 = vunpack.c.l.b16 %v248
      %v749 = vunpack.c.l.b16 %v249
      %v750 = vunpack.c.h.b16 %v249
      %v751 = vunpack.c.l.b16 %v250
      %v752 = vunpack.c.h.b16 %v250
      %v753 = vunpack.c.l.b16 %v251
      %v754 = vunpack.c.h.b16 %v251
      %v755 = vunpack.c.l.b16 %v252
      %v756 = vunpack.c.h.b16 %v252
      %v757 = vunpack.c.l.b16 %v253
      %v758 = vunpack.c.l.b16 %v254
      %v759 = vunpack.c.h.b16 %v254
      %v760 = vunpack.c.l.b16 %v255
      %v761 = vunpack.c.h.b16 %v255
      %v762 = vunpack.c.l.b16 %v256
      %v763 = vunpack.c.h.b16 %v256
      %v764 = vunpack.c.l.b16 %v257
      %v765 = vunpack.c.h.b16 %v257
      %v766 = vunpack.c.l.b16 %v258
      %v767 = vunpack.c.l.b16 %v259
      %v768 = vunpack.c.h.b16 %v259
      %v769 = vunpack.c.l.b16 %v260
      %v770 = vunpack.c.h.b16 %v260
      %v771 = vunpack.c.l.b16 %v261
      %v772 = vunpack.c.h.b16 %v261
      %v773 = vunpack.c.l.b16 %v262
      %v774 = vunpack.c.h.b16 %v262
      %v775 = vunpack.c.l.b16 %v263
      %v776 = vunpack.c.l.b16 %v264
      %v777 = vunpack.c.h.b16 %v264
      %v778 = vunpack.c.l.b16 %v265
      %v779 = vunpack.c.h.b16 %v265
      %v780 = vunpack.c.l.b16 %v266
      %v781 = vunpack.c.h.b16 %v266
      %v782 = vunpack.c.l.b16 %v267
      %v783 = vunpack.c.h.b16 %v267
      %v784 = vunpack.c.l.b16 %v268
      %v785 = vunpack.c.l.b16 %v269
      %v786 = vunpack.c.h.b16 %v269
      %v787 = vunpack.c.l.b16 %v270
      %v788 = vunpack.c.h.b16 %v270
      %v789 = vunpack.c.l.b16 %v271
      %v790 = vunpack.c.h.b16 %v271
      %v791 = vunpack.c.l.b16 %v272
      %v792 = vunpack.c.h.b16 %v272
      %v793 = vunpack.c.l.b16 %v273
      %v794 = vunpack.c.l.b16 %v274
      %v795 = vunpack.c.h.b16 %v274
      %v796 = vunpack.c.l.b16 %v275
      %v797 = vunpack.c.h.b16 %v275
      %v798 = vunpack.c.l.b16 %v276
      %v799 = vunpack.c.h.b16 %v276
      %v800 = vunpack.c.l.b16 %v277
      %v801 = vunpack.c.h.b16 %v277
      %v802 = vunpack.c.l.b16 %v278
      %v803 = vunpack.c.l.b16 %v279
      %v804 = vunpack.c.h.b16 %v279
      %v805 = vunpack.c.l.b16 %v280
      %v806 = vunpack.c.h.b16 %v280
      %v807 = vunpack.c.l.b16 %v281
      %v808 = vunpack.c.h.b16 %v281
      %v809 = vunpack.c.l.b16 %v282
      %v810 = vunpack.c.h.b16 %v282
      %v811 = vunpack.c.l.b16 %v283
      %v812 = vunpack.c.l.b16 %v284
      %v813 = vunpack.c.h.b16 %v284
      %v814 = vunpack.c.l.b16 %v285
      %v815 = vunpack.c.h.b16 %v285
      %v816 = vunpack.c.l.b16 %v286
      %v817 = vunpack.c.h.b16 %v286
      %v818 = vunpack.c.l.b16 %v287
      %v819 = vunpack.c.h.b16 %v287
      %v820 = vunpack.c.l.b16 %v288
      %v821 = vunpack.c.l.b16 %v289
      %v822 = vunpack.c.h.b16 %v289
      %v823 = vunpack.c.l.b16 %v290
      %v824 = vunpack.c.h.b16 %v290
      %v825 = vunpack.c.l.b16 %v291
      %v826 = vunpack.c.h.b16 %v291
      %v827 = vunpack.c.l.b16 %v292
      %v828 = vunpack.c.h.b16 %v292
      %v829 = vunpack.c.l.b16 %v293
      %v830 = vunpack.c.l.b16 %v294
      %v831 = vunpack.c.h.b16 %v294
      %v832 = vunpack.c.l.b16 %v295
      %v833 = vunpack.c.h.b16 %v295
      %v834 = vunpack.c.l.b16 %v296
      %v835 = vunpack.c.h.b16 %v296
      %v836 = vunpack.c.l.b16 %v297
      %v837 = vunpack.c.h.b16 %v297
      %v838 = vunpack.c.l.b16 %v298
      %v839 = vunpack.c.l.b16 %v299
      %v840 = vunpack.c.h.b16 %v299
      %v841 = vunpack.c.l.b16 %v300
      %v842 = vunpack.c.h.b16 %v300
      %v843 = vunpack.c.l.b16 %v301
      %v844 = vunpack.c.h.b16 %v301
      %v845 = vunpack.c.l.b16 %v302
      %v846 = vunpack.c.h.b16 %v302
      %v847 = vunpack.c.l.b16 %v303
      %v848 = vunpack.c.l.b16 %v304
      %v849 = vunpack.c.h.b16 %v304
      %v850 = vunpack.c.l.b16 %v305
      %v851 = vunpack.c.h.b16 %v305
      %v852 = vunpack.c.l.b16 %v306
      %v853 = vunpack.c.h.b16 %v306
      %v854 = vunpack.c.l.b16 %v307
      %v855 = vunpack.c.h.b16 %v307
      %v856 = vunpack.c.l.b16 %v308
      %v857 = vunpack.c.l.b16 %v309
      %v858 = vunpack.c.h.b16 %v309
      %v859 = vunpack.c.l.b16 %v310
      %v860 = vunpack.c.h.b16 %v310
      %v861 = vunpack.c.l.b16 %v311
      %v862 = vunpack.c.h.b16 %v311
      %v863 = vunpack.c.l.b16 %v312
      %v864 = vunpack.c.h.b16 %v312
      %v865 = vunpack.c.l.b16 %v313
      %v866 = vunpack.c.l.b16 %v314
      %v867 = vunpack.c.h.b16 %v314
      %v868 = vunpack.c.l.b16 %v315
      %v869 = vunpack.c.h.b16 %v315
      %v870 = vunpack.c.l.b16 %v316
      %v871 = vunpack.c.h.b16 %v316
      %v872 = vunpack.c.l.b16 %v317
      %v873 = vunpack.c.h.b16 %v317
      %v874 = vunpack.c.l.b16 %v318
      %v875 = vunpack.c.l.b16 %v319
      %v876 = vunpack.c.h.b16 %v319
      %v877 = vunpack.c.l.b16 %v320
      %v878 = vunpack.c.h.b16 %v320
      %v879 = vunpack.c.l.b16 %v321
      %v880 = vunpack.c.h.b16 %v321
      %v881 = vunpack.c.l.b16 %v322
      %v882 = vunpack.c.h.b16 %v322
      %v883 = vunpack.c.l.b16 %v323
      %v884 = vunpack.c.l.b16 %v324
      %v885 = vunpack.c.h.b16 %v324
      %v886 = vunpack.c.l.b16 %v325
      %v887 = vunpack.c.h.b16 %v325
      %v888 = vunpack.c.l.b16 %v326
      %v889 = vunpack.c.h.b16 %v326
      %v890 = vunpack.c.l.b16 %v327
      %v891 = vunpack.c.h.b16 %v327
      %v892 = vunpack.c.l.b16 %v328
      %v893 = vunpack.c.l.b16 %v329
      %v894 = vunpack.c.h.b16 %v329
      %v895 = vunpack.c.l.b16 %v330
      %v896 = vunpack.c.h.b16 %v330
      %v897 = vunpack.c.l.b16 %v331
      %v898 = vunpack.c.h.b16 %v331
      %v899 = vunpack.c.l.b16 %v332
      %v900 = vunpack.c.h.b16 %v332
      %v901 = vunpack.c.l.b16 %v333
      %v902 = vunpack.c.l.b16 %v334
      %v903 = vunpack.c.h.b16 %v334
      %v904 = vunpack.c.l.b16 %v335
      %v905 = vunpack.c.h.b16 %v335
      %v906 = vunpack.c.l.b16 %v336
      %v907 = vunpack.c.h.b16 %v336
      %v908 = vunpack.c.l.b16 %v337
      %v909 = vunpack.c.h.b16 %v337
      %v910 = vunpack.c.l.b16 %v338
      %v911 = vunpack.c.l.b16 %v339
      %v912 = vunpack.c.h.b16 %v339
      %v913 = vunpack.c.l.b16 %v340
      %v914 = vunpack.c.h.b16 %v340
      %v915 = vunpack.c.l.b16 %v341
      %v916 = vunpack.c.h.b16 %v341
      %v917 = vunpack.c.l.b16 %v342
      %v918 = vunpack.c.h.b16 %v342
      %v919 = vunpack.c.l.b16 %v343
      %v920 = vunpack.c.l.b16 %v344
      %v921 = vunpack.c.h.b16 %v344
      %v922 = vunpack.c.l.b16 %v345
      %v923 = vunpack.c.h.b16 %v345
      %v924 = vunpack.c.l.b16 %v346
      %v925 = vunpack.c.h.b16 %v346
      %v926 = vunpack.c.l.b16 %v347
      %v927 = vunpack.c.h.b16 %v347
      %v928 = vunpack.c.l.b16 %v348
      %v929 = vunpack.c.l.b16 %v349
      %v930 = vunpack.c.h.b16 %v349
      %v931 = vunpack.c.l.b16 %v350
      %v932 = vunpack.c.h.b16 %v350
      %v933 = vunpack.c.l.b16 %v351
      %v934 = vunpack.c.h.b16 %v351
      %v935 = vunpack.c.l.b16 %v352
      %v936 = vunpack.c.h.b16 %v352
      %v937 = vunpack.c.l.b16 %v353
      %v938 = vunpack.c.l.b16 %v354
      %v939 = vunpack.c.h.b16 %v354
      %v940 = vunpack.c.l.b16 %v355
      %v941 = vunpack.c.h.b16 %v355
      %v942 = vunpack.c.l.b16 %v356
      %v943 = vunpack.c.h.b16 %v356
      %v944 = vunpack.c.l.b16 %v357
      %v945 = vunpack.c.h.b16 %v357
      %v946 = vunpack.c.l.b16 %v358
      %v947 = vunpack.c.l.b16 %v359
      %v948 = vunpack.c.h.b16 %v359
      %v949 = vunpack.c.l.b16 %v360
      %v950 = vunpack.c.h.b16 %v360
      %v951 = vunpack.c.l.b16 %v361
      %v952 = vunpack.c.h.b16 %v361
      %v953 = vunpack.c.l.b16 %v362
      %v954 = vunpack.c.h.b16 %v362
      %v955 = vunpack.c.l.b16 %v363
      %v956 = vpack.c.b16 %v677, %v668
      %v957 = vpack.c.b16 %v678, %v669
      %v958 = vpack.c.b16 %v679, %v670
      %v959 = vpack.c.b16 %v680, %v671
      %v960 = vpack.c.b16 %v681, %v672
      %v961 = vpack.c.b16 %v682, %v673
      %v962 = vpack.c.b16 %v683, %v674
      %v963 = vpack.c.b16 %v684, %v675
      %v964 = vpack.c.b16 %v685, %v676
      %v965 = vpack.c.b16 %v695, %v686
      %v966 = vpack.c.b16 %v696, %v687
      %v967 = vpack.c.b16 %v697, %v688
      %v968 = vpack.c.b16 %v698, %v689
      %v969 = vpack.c.b16 %v699, %v690
      %v970 = vpack.c.b16 %v700, %v691
      %v971 = vpack.c.b16 %v701, %v692
      %v972 = vpack.c.b16 %v702, %v693
      %v973 = vpack.c.b16 %v703, %v694
      %v974 = vpack.c.b16 %v713, %v704
      %v975 = vpack.c.b16 %v714, %v705
      %v976 = vpack.c.b16 %v715, %v706
      %v977 = vpack.c.b16 %v716, %v707
      %v978 = vpack.c.b16 %v717, %v708
      %v979 = vpack.c.b16 %v718, %v709
      %v980 = vpack.c.b16 %v719, %v710
      %v981 = vpack.c.b16 %v720, %v711
      %v982 = vpack.c.b16 %v721, %v712
      %v983 = vpack.c.b16 %v731, %v722
      %v984 = vpack.c.b16 %v732, %v723
      %v985 = vpack.c.b16 %v733, %v724
      %v986 = vpack.c.b16 %v734, %v725
      %v987 = vpack.c.b16 %v735, %v726
      %v988 = vpack.c.b16 %v736, %v727
      %v989 = vpack.c.b16 %v737, %v728
      %v990 = vpack.c.b16 %v738, %v729
      %v991 = vpack.c.b16 %v739, %v730
      %v992 = vpack.c.b16 %v749, %v740
      %v993 = vpack.c.b16 %v750, %v741
      %v994 = vpack.c.b16 %v751, %v742
      %v995 = vpack.c.b16 %v752, %v743
      %v996 = vpack.c.b16 %v753, %v744
      %v997 = vpack.c.b16 %v754, %v745
      %v998 = vpack.c.b16 %v755, %v746
      %v999 = vpack.c.b16 %v756, %v747
      %v1000 = vpack.c.b16 %v757, %v748
      %v1001 = vpack.c.b16 %v767, %v758
      %v1002 = vpack.c.b16 %v768, %v759
      %v1003 = vpack.c.b16 %v769, %v760
      %v1004 = vpack.c.b16 %v770, %v761
      %v1005 = vpack.c.b16 %v771, %v762
      %v1006 = vpack.c.b16 %v772, %v763
      %v1007 = vpack.c.b16 %v773, %v764
      %v1008 = vpack.c.b16 %v774, %v765
      %v1009 = vpack.c.b16 %v775, %v766
      %v1010 = vpack.c.b16 %v785, %v776
      %v1011 = vpack.c.b16 %v786, %v777
      %v1012 = vpack.c.b16 %v787, %v778
      %v1013 = vpack.c.b16 %v788, %v779
      %v1014 = vpack.c.b16 %v789, %v780
      %v1015 = vpack.c.b16 %v790, %v781
      %v1016 = vpack.c.b16 %v791, %v782
      %v1017 = vpack.c.b16 %v792, %v783
      %v1018 = vpack.c.b16 %v793, %v784
      %v1019 = vpack.c.b16 %v803, %v794
      %v1020 = vpack.c.b16 %v804, %v795
      %v1021 = vpack.c.b16 %v805, %v796
      %v1022 = vpack.c.b16 %v806, %v797
      %v1023 = vpack.c.b16 %v807, %v798
      %v1024 = vpack.c.b16 %v808, %v799
      %v1025 = vpack.c.b16 %v809, %v800
      %v1026 = vpack.c.b16 %v810, %v801
      %v1027 = vpack.c.b16 %v811, %v802
      %v1028 = vpack.c.b16 %v821, %v812
      %v1029 = vpack.c.b16 %v822, %v813
      %v1030 = vpack.c.b16 %v823, %v814
      %v1031 = vpack.c.b16 %v824, %v815
      %v1032 = vpack.c.b16 %v825, %v816
      %v1033 = vpack.c.b16 %v826, %v817
      %v1034 = vpack.c.b16 %v827, %v818
      %v1035 = vpack.c.b16 %v828, %v819
      %v1036 = vpack.c.b16 %v829, %v820
      %v1037 = vpack.c.b16 %v839, %v830
      %v1038 = vpack.c.b16 %v840, %v831
      %v1039 = vpack.c.b16 %v841, %v832
      %v1040 = vpack.c.b16 %v842, %v833
      %v1041 = vpack.c.b16 %v843, %v834
      %v1042 = vpack.c.b16 %v844, %v835
      %v1043 = vpack.c.b16 %v845, %v836
      %v1044 = vpack.c.b16 %v846, %v837
      %v1045 = vpack.c.b16 %v847, %v838
      %v1046 = vpack.c.b16 %v857, %v848
      %v1047 = vpack.c.b16 %v858, %v849
      %v1048 = vpack.c.b16 %v859, %v850
      %v1049 = vpack.c.b16 %v860, %v851
      %v1050 = vpack.c.b16 %v861, %v852
      %v1051 = vpack.c.b16 %v862, %v853
      %v1052 = vpack.c.b16 %v863, %v854
      %v1053 = vpack.c.b16 %v864, %v855
      %v1054 = vpack.c.b16 %v865, %v856
      %v1055 = vpack.c.b16 %v875, %v866
      %v1056 = vpack.c.b16 %v876, %v867
      %v1057 = vpack.c.b16 %v877, %v868
      %v1058 = vpack.c.b16 %v878, %v869
      %v1059 = vpack.c.b16 %v879, %v870
      %v1060 = vpack.c.b16 %v880, %v871
      %v1061 = vpack.c.b16 %v881, %v872
      %v1062 = vpack.c.b16 %v882, %v873
      %v1063 = vpack.c.b16 %v883, %v874
      %v1064 = vpack.c.b16 %v893, %v884
      %v1065 = vpack.c.b16 %v894, %v885
      %v1066 = vpack.c.b16 %v895, %v886
      %v1067 = vpack.c.b16 %v896, %v887
      %v1068 = vpack.c.b16 %v897, %v888
      %v1069 = vpack.c.b16 %v898, %v889
      %v1070 = vpack.c.b16 %v899, %v890
      %v1071 = vpack.c.b16 %v900, %v891
      %v1072 = vpack.c.b16 %v901, %v892
      %v1073 = vpack.c.b16 %v911, %v902
      %v1074 = vpack.c.b16 %v912, %v903
      %v1075 = vpack.c.b16 %v913, %v904
      %v1076 = vpack.c.b16 %v914, %v905
      %v1077 = vpack.c.b16 %v915, %v906
      %v1078 = vpack.c.b16 %v916, %v907
      %v1079 = vpack.c.b16 %v917, %v908
      %v1080 = vpack.c.b16 %v918, %v909
      %v1081 = vpack.c.b16 %v919, %v910
      %v1082 = vpack.c.b16 %v929, %v920
      %v1083 = vpack.c.b16 %v930, %v921
      %v1084 = vpack.c.b16 %v931, %v922
      %v1085 = vpack.c.b16 %v932, %v923
      %v1086 = vpack.c.b16 %v933, %v924
      %v1087 = vpack.c.b16 %v934, %v925
      %v1088 = vpack.c.b16 %v935, %v926
      %v1089 = vpack.c.b16 %v936, %v927
      %v1090 = vpack.c.b16 %v937, %v928
      %v1091 = vpack.c.b16 %v947, %v938
      %v1092 = vpack.c.b16 %v948, %v939
      %v1093 = vpack.c.b16 %v949, %v940
      %v1094 = vpack.c.b16 %v950, %v941
      %v1095 = vpack.c.b16 %v951, %v942
      %v1096 = vpack.c.b16 %v952, %v943
      %v1097 = vpack.c.b16 %v953, %v944
      %v1098 = vpack.c.b16 %v954, %v945
      %v1099 = vpack.c.b16 %v955, %v946
      %v1388 = vunpack.c.l.b16 %v364
      %v1389 = vunpack.c.l.b16 %v365
      %v1390 = vunpack.c.l.b16 %v366
      %v1391 = vunpack.c.l.b16 %v367
      %v1392 = vunpack.c.l.b16 %v368
      %v1393 = vunpack.c.l.b16 %v369
      %v1394 = vunpack.c.l.b16 %v370
      %v1395 = vunpack.c.l.b16 %v371
      %v1396 = vunpack.c.l.b16 %v372
      %v1397 = vunpack.c.l.b16 %v373
      %v1398 = vunpack.c.l.b16 %v374
      %v1399 = vunpack.c.l.b16 %v375
      %v1400 = vunpack.c.l.b16 %v376
      %v1401 = vunpack.c.l.b16 %v377
      %v1402 = vunpack.c.l.b16 %v378
      %v1403 = vunpack.c.l.b16 %v379
      %v1404 = vunpack.c.l.b16 %v380
      %v1405 = vunpack.c.l.b16 %v381
      %v1406 = vunpack.c.l.b16 %v382
      %v1407 = vunpack.c.l.b16 %v383
      %v1408 = vunpack.c.l.b16 %v384
      %v1409 = vunpack.c.l.b16 %v385
      %v1410 = vunpack.c.l.b16 %v386
      %v1411 = vunpack.c.l.b16 %v387
      %v1412 = vunpack.c.l.b16 %v388
      %v1413 = vunpack.c.l.b16 %v389
      %v1414 = vunpack.c.l.b16 %v390
      %v1415 = vunpack.c.l.b16 %v391
      %v1416 = vunpack.c.l.b16 %v392
      %v1417 = vunpack.c.l.b16 %v393
      %v1418 = vunpack.c.l.b16 %v394
      %v1419 = vunpack.c.l.b16 %v395
      %v1420 = vunpack.c.l.b16 %v396
      %v1421 = vunpack.c.l.b16 %v397
      %v1422 = vunpack.c.l.b16 %v398
      %v1423 = vunpack.c.l.b16 %v399
      %v1424 = vunpack.c.l.b16 %v400
      %v1425 = vunpack.c.l.b16 %v401
      %v1426 = vunpack.c.l.b16 %v402
      %v1427 = vunpack.c.l.b16 %v403
      %v1428 = vunpack.c.l.b16 %v404
      %v1429 = vunpack.c.l.b16 %v405
      %v1430 = vunpack.c.l.b16 %v406
      %v1431 = vunpack.c.l.b16 %v407
      %v1432 = vunpack.c.l.b16 %v408
      %v1433 = vunpack.c.l.b16 %v409
      %v1434 = vunpack.c.l.b16 %v410
      %v1435 = vunpack.c.l.b16 %v411
      %v1436 = vunpack.c.l.b16 %v412
      %v1437 = vunpack.c.l.b16 %v413
      %v1438 = vunpack.c.l.b16 %v414
      %v1439 = vunpack.c.l.b16 %v415
      %v1440 = vunpack.c.l.b16 %v416
      %v1441 = vunpack.c.l.b16 %v417
      %v1442 = vunpack.c.l.b16 %v418
      %v1443 = vunpack.c.l.b16 %v419
      %v1444 = vunpack.c.l.b16 %v420
      %v1445 = vunpack.c.l.b16 %v421
      %v1446 = vunpack.c.l.b16 %v422
      %v1447 = vunpack.c.l.b16 %v423
      %v1448 = vunpack.c.l.b16 %v424
      %v1449 = vunpack.c.l.b16 %v425
      %v1450 = vunpack.c.l.b16 %v426
      %v1451 = vunpack.c.l.b16 %v427
      %v1452 = vunpack.c.l.b16 %v428
      %v1453 = vunpack.c.l.b16 %v429
      %v1454 = vunpack.c.l.b16 %v430
      %v1455 = vunpack.c.l.b16 %v431
      %v1456 = vunpack.c.l.b16 %v432
      %v1457 = vunpack.c.l.b16 %v433
      %v1458 = vunpack.c.l.b16 %v434
      %v1459 = vunpack.c.l.b16 %v435
      %v1460 = vunpack.c.l.b16 %v436
      %v1461 = vunpack.c.l.b16 %v437
      %v1462 = vunpack.c.l.b16 %v438
      %v1463 = vunpack.c.l.b16 %v439
      %v1464 = vunpack.c.l.b16 %v440
      %v1465 = vunpack.c.l.b16 %v441
      %v1466 = vunpack.c.l.b16 %v442
      %v1467 = vunpack.c.l.b16 %v443
      %v1468 = vunpack.c.l.b16 %v444
      %v1469 = vunpack.c.l.b16 %v445
      %v1470 = vunpack.c.l.b16 %v446
      %v1471 = vunpack.c.l.b16 %v447
      %v1472 = vunpack.c.l.b16 %v448
      %v1473 = vunpack.c.l.b16 %v449
      %v1474 = vunpack.c.l.b16 %v450
      %v1475 = vunpack.c.l.b16 %v451
      %v1476 = vunpack.c.l.b16 %v452
      %v1477 = vunpack.c.l.b16 %v453
      %v1478 = vunpack.c.l.b16 %v454
      %v1479 = vunpack.c.l.b16 %v455
      %v1480 = vunpack.c.l.b16 %v456
      %v1481 = vunpack.c.l.b16 %v457
      %v1482 = vunpack.c.l.b16 %v458
      %v1483 = vunpack.c.l.b16 %v459
      %v1484 = vunpack.c.l.b16 %v460
      %v1485 = vunpack.c.l.b16 %v461
      %v1486 = vunpack.c.l.b16 %v462
      %v1487 = vunpack.c.l.b16 %v463
      %v1488 = vunpack.c.l.b16 %v464
      %v1489 = vunpack.c.l.b16 %v465
      %v1490 = vunpack.c.l.b16 %v466
      %v1491 = vunpack.c.l.b16 %v467
      %v1492 = vunpack.c.l.b16 %v468
      %v1493 = vunpack.c.l.b16 %v469
      %v1494 = vunpack.c.l.b16 %v470
      %v1495 = vunpack.c.l.b16 %v471
      %v1496 = vunpack.c.l.b16 %v472
      %v1497 = vunpack.c.l.b16 %v473
      %v1498 = vunpack.c.l.b16 %v474
      %v1499 = vunpack.c.l.b16 %v475
      %v1500 = vunpack.c.l.b16 %v476
      %v1501 = vunpack.c.l.b16 %v477
      %v1502 = vunpack.c.l.b16 %v478
      %v1503 = vunpack.c.l.b16 %v479
      %v1504 = vunpack.c.l.b16 %v480
      %v1505 = vunpack.c.l.b16 %v481
      %v1506 = vunpack.c.l.b16 %v482
      %v1507 = vunpack.c.l.b16 %v483
      %v1508 = vunpack.c.l.b16 %v484
      %v1509 = vunpack.c.l.b16 %v485
      %v1510 = vunpack.c.l.b16 %v486
      %v1511 = vunpack.c.l.b16 %v487
      %v1512 = vunpack.c.l.b16 %v488
      %v1513 = vunpack.c.l.b16 %v489
      %v1514 = vunpack.c.l.b16 %v490
      %v1515 = vunpack.c.l.b16 %v491
      %v1516 = vunpack.c.l.b16 %v492
      %v1517 = vunpack.c.l.b16 %v493
      %v1518 = vunpack.c.l.b16 %v494
      %v1519 = vunpack.c.l.b16 %v495
      %v1520 = vunpack.c.l.b16 %v496
      %v1521 = vunpack.c.l.b16 %v497
      %v1522 = vunpack.c.l.b16 %v498
      %v1523 = vunpack.c.l.b16 %v499
      %v1524 = vunpack.c.l.b16 %v500
      %v1525 = vunpack.c.l.b16 %v501
      %v1526 = vunpack.c.l.b16 %v502
      %v1527 = vunpack.c.l.b16 %v503
      %v1528 = vunpack.c.l.b16 %v504
      %v1529 = vunpack.c.l.b16 %v505
      %v1530 = vunpack.c.l.b16 %v506
      %v1531 = vunpack.c.l.b16 %v507
      %v1532 = vpack.c.b16 %v1389, %v1388
      %v1533 = vpack.c.b16 %v1391, %v1390
      %v1534 = vpack.c.b16 %v1393, %v1392
      %v1535 = vpack.c.b16 %v1395, %v1394
      %v1536 = vpack.c.b16 %v1397, %v1396
      %v1537 = vpack.c.b16 %v1399, %v1398
      %v1538 = vpack.c.b16 %v1401, %v1400
      %v1539 = vpack.c.b16 %v1403, %v1402
      %v1540 = vpack.c.b16 %v1405, %v1404
      %v1541 = vpack.c.b16 %v1407, %v1406
      %v1542 = vpack.c.b16 %v1409, %v1408
      %v1543 = vpack.c.b16 %v1411, %v1410
      %v1544 = vpack.c.b16 %v1413, %v1412
      %v1545 = vpack.c.b16 %v1415, %v1414
      %v1546 = vpack.c.b16 %v1417, %v1416
      %v1547 = vpack.c.b16 %v1419, %v1418
      %v1548 = vpack.c.b16 %v1421, %v1420
      %v1549 = vpack.c.b16 %v1423, %v1422
      %v1550 = vpack.c.b16 %v1425, %v1424
      %v1551 = vpack.c.b16 %v1427, %v1426
      %v1552 = vpack.c.b16 %v1429, %v1428
      %v1553 = vpack.c.b16 %v1431, %v1430
      %v1554 = vpack.c.b16 %v1433, %v1432
      %v1555 = vpack.c.b16 %v1435, %v1434
      %v1556 = vpack.c.b16 %v1437, %v1436
      %v1557 = vpack.c.b16 %v1439, %v1438
      %v1558 = vpack.c.b16 %v1441, %v1440
      %v1559 = vpack.c.b16 %v1443, %v1442
      %v1560 = vpack.c.b16 %v1445, %v1444
      %v1561 = vpack.c.b16 %v1447, %v1446
      %v1562 = vpack.c.b16 %v1449, %v1448
      %v1563 = vpack.c.b16 %v1451, %v1450
      %v1564 = vpack.c.b16 %v1453, %v1452
      %v1565 = vpack.c.b16 %v1455, %v1454
      %v1566 = vpack.c.b16 %v1457, %v1456
      %v1567 = vpack.c.b16 %v1459, %v1458
      %v1568 = vpack.c.b16 %v1461, %v1460
      %v1569 = vpack.c.b16 %v1463, %v1462
      %v1570 = vpack.c.b16 %v1465, %v1464
      %v1571 = vpack.c.b16 %v1467, %v1466
      %v1572 = vpack.c.b16 %v1469, %v1468
      %v1573 = vpack.c.b16 %v1471, %v1470
      %v1574 = vpack.c.b16 %v1473, %v1472
      %v1575 = vpack.c.b16 %v1475, %v1474
      %v1576 = vpack.c.b16 %v1477, %v1476
      %v1577 = vpack.c.b16 %v1479, %v1478
      %v1578 = vpack.c.b16 %v1481, %v1480
      %v1579 = vpack.c.b16 %v1483, %v1482
      %v1580 = vpack.c.b16 %v1485, %v1484
      %v1581 = vpack.c.b16 %v1487, %v1486
      %v1582 = vpack.c.b16 %v1489, %v1488
      %v1583 = vpack.c.b16 %v1491, %v1490
      %v1584 = vpack.c.b16 %v1493, %v1492
      %v1585 = vpack.c.b16 %v1495, %v1494
      %v1586 = vpack.c.b16 %v1497, %v1496
      %v1587 = vpack.c.b16 %v1499, %v1498
      %v1588 = vpack.c.b16 %v1501, %v1500
      %v1589 = vpack.c.b16 %v1503, %v1502
      %v1590 = vpack.c.b16 %v1505, %v1504
      %v1591 = vpack.c.b16 %v1507, %v1506
      %v1592 = vpack.c.b16 %v1509, %v1508
      %v1593 = vpack.c.b16 %v1511, %v1510
      %v1594 = vpack.c.b16 %v1513, %v1512
      %v1595 = vpack.c.b16 %v1515, %v1514
      %v1596 = vpack.c.b16 %v1517, %v1516
      %v1597 = vpack.c.b16 %v1519, %v1518
      %v1598 = vpack.c.b16 %v1521, %v1520
      %v1599 = vpack.c.b16 %v1523, %v1522
      %v1600 = vpack.c.b16 %v1525, %v1524
      %v1601 = vpack.c.b16 %v1527, %v1526
      %v1602 = vpack.c.b16 %v1529, %v1528
      %v1603 = vpack.c.b16 %v1531, %v1530
      %1676 = vmatpush.bf16.msra.mxu0 %v1539
      %1677 = vmatpush.bf16.msra.mxu0 %v1538
      %1678 = vmatpush.bf16.msra.mxu0 %v1537
      %1679 = vmatpush.bf16.msra.mxu0 %v1536
      %1680 = vmatpush.bf16.msra.mxu0 %v1535
      %1681 = vmatpush.bf16.msra.mxu0 %v1534
      %1682 = vmatpush.bf16.msra.mxu0 %v1533
      %1683 = vmatpush.bf16.msra.mxu0 %v1532
      %1684 = vmatmul.bf16.gmra.mxu0 %v956
      %v1685 = vpop.f32.mrf.mxu0
      %v1686 = vadd.f32 0.0, %v1685
      %v1687 = vpop.f32.mrf.mxu0
      %v1688 = vadd.f32 0.0, %v1687
      %1689 = vmatmul.bf16.gmra.mxu0 %v965
      %v1690 = vpop.f32.mrf.mxu0
      %v1691 = vadd.f32 0.0, %v1690
      %v1692 = vpop.f32.mrf.mxu0
      %v1693 = vadd.f32 0.0, %v1692
      %1694 = vmatmul.bf16.gmra.mxu0 %v974
      %v1695 = vpop.f32.mrf.mxu0
      %v1696 = vadd.f32 0.0, %v1695
      %v1697 = vpop.f32.mrf.mxu0
      %v1698 = vadd.f32 0.0, %v1697
      %1699 = vmatmul.bf16.gmra.mxu0 %v983
      %v1700 = vpop.f32.mrf.mxu0
      %v1701 = vadd.f32 0.0, %v1700
      %v1702 = vpop.f32.mrf.mxu0
      %v1703 = vadd.f32 0.0, %v1702
      %1704 = vmatmul.bf16.gmra.mxu0 %v992
      %v1705 = vpop.f32.mrf.mxu0
      %v1706 = vadd.f32 0.0, %v1705
      %v1707 = vpop.f32.mrf.mxu0
      %v1708 = vadd.f32 0.0, %v1707
      %1709 = vmatmul.bf16.gmra.mxu0 %v1001
      %v1710 = vpop.f32.mrf.mxu0
      %v1711 = vadd.f32 0.0, %v1710
      %v1712 = vpop.f32.mrf.mxu0
      %v1713 = vadd.f32 0.0, %v1712
      %1714 = vmatmul.bf16.gmra.mxu0 %v1010
      %v1715 = vpop.f32.mrf.mxu0
      %v1716 = vadd.f32 0.0, %v1715
      %v1717 = vpop.f32.mrf.mxu0
      %v1718 = vadd.f32 0.0, %v1717
      %1719 = vmatmul.bf16.gmra.mxu0 %v1019
      %v1720 = vpop.f32.mrf.mxu0
      %v1721 = vadd.f32 0.0, %v1720
      %v1722 = vpop.f32.mrf.mxu0
      %v1723 = vadd.f32 0.0, %v1722
      %1724 = vmatmul.bf16.gmra.mxu0 %v1028
      %v1725 = vpop.f32.mrf.mxu0
      %v1726 = vadd.f32 0.0, %v1725
      %v1727 = vpop.f32.mrf.mxu0
      %v1728 = vadd.f32 0.0, %v1727
      %1729 = vmatmul.bf16.gmra.mxu0 %v1037
      %v1730 = vpop.f32.mrf.mxu0
      %v1731 = vadd.f32 0.0, %v1730
      %v1732 = vpop.f32.mrf.mxu0
      %v1733 = vadd.f32 0.0, %v1732
      %1734 = vmatmul.bf16.gmra.mxu0 %v1046
      %v1735 = vpop.f32.mrf.mxu0
      %v1736 = vadd.f32 0.0, %v1735
      %v1737 = vpop.f32.mrf.mxu0
      %v1738 = vadd.f32 0.0, %v1737
      %1739 = vmatmul.bf16.gmra.mxu0 %v1055
      %v1740 = vpop.f32.mrf.mxu0
      %v1741 = vadd.f32 0.0, %v1740
      %v1742 = vpop.f32.mrf.mxu0
      %v1743 = vadd.f32 0.0, %v1742
      %1744 = vmatmul.bf16.gmra.mxu0 %v1064
      %v1745 = vpop.f32.mrf.mxu0
      %v1746 = vadd.f32 0.0, %v1745
      %v1747 = vpop.f32.mrf.mxu0
      %v1748 = vadd.f32 0.0, %v1747
      %1749 = vmatmul.bf16.gmra.mxu0 %v1073
      %v1750 = vpop.f32.mrf.mxu0
      %v1751 = vadd.f32 0.0, %v1750
      %v1752 = vpop.f32.mrf.mxu0
      %v1753 = vadd.f32 0.0, %v1752
      %1754 = vmatmul.bf16.gmra.mxu0 %v1082
      %v1755 = vpop.f32.mrf.mxu0
      %v1756 = vadd.f32 0.0, %v1755
      %v1757 = vpop.f32.mrf.mxu0
      %v1758 = vadd.f32 0.0, %v1757
      %1759 = vmatmul.bf16.gmra.mxu0 %v1091
      %v1760 = vpop.f32.mrf.mxu0
      %v1761 = vadd.f32 0.0, %v1760
      %v1762 = vpop.f32.mrf.mxu0
      %v1763 = vadd.f32 0.0, %v1762
      %1764 = vdwg.mxu0
      %1765 = vmatpush.bf16.msra.mxu0 %v1547
      %1766 = vmatpush.bf16.msra.mxu0 %v1546
      %1767 = vmatpush.bf16.msra.mxu0 %v1545
      %1768 = vmatpush.bf16.msra.mxu0 %v1544
      %1769 = vmatpush.bf16.msra.mxu0 %v1543
      %1770 = vmatpush.bf16.msra.mxu0 %v1542
      %1771 = vmatpush.bf16.msra.mxu0 %v1541
      %1772 = vmatpush.bf16.msra.mxu0 %v1540
      %1773 = vmatmul.bf16.gmra.mxu0 %v957
      %v1774 = vpop.f32.mrf.mxu0
      %v1775 = vadd.f32 %v1686, %v1774
      %v1776 = vpop.f32.mrf.mxu0
      %v1777 = vadd.f32 %v1688, %v1776
      %1778 = vmatmul.bf16.gmra.mxu0 %v966
      %v1779 = vpop.f32.mrf.mxu0
      %v1780 = vadd.f32 %v1691, %v1779
      %v1781 = vpop.f32.mrf.mxu0
      %v1782 = vadd.f32 %v1693, %v1781
      %1783 = vmatmul.bf16.gmra.mxu0 %v975
      %v1784 = vpop.f32.mrf.mxu0
      %v1785 = vadd.f32 %v1696, %v1784
      %v1786 = vpop.f32.mrf.mxu0
      %v1787 = vadd.f32 %v1698, %v1786
      %1788 = vmatmul.bf16.gmra.mxu0 %v984
      %v1789 = vpop.f32.mrf.mxu0
      %v1790 = vadd.f32 %v1701, %v1789
      %v1791 = vpop.f32.mrf.mxu0
      %v1792 = vadd.f32 %v1703, %v1791
      %1793 = vmatmul.bf16.gmra.mxu0 %v993
      %v1794 = vpop.f32.mrf.mxu0
      %v1795 = vadd.f32 %v1706, %v1794
      %v1796 = vpop.f32.mrf.mxu0
      %v1797 = vadd.f32 %v1708, %v1796
      %1798 = vmatmul.bf16.gmra.mxu0 %v1002
      %v1799 = vpop.f32.mrf.mxu0
      %v1800 = vadd.f32 %v1711, %v1799
      %v1801 = vpop.f32.mrf.mxu0
      %v1802 = vadd.f32 %v1713, %v1801
      %1803 = vmatmul.bf16.gmra.mxu0 %v1011
      %v1804 = vpop.f32.mrf.mxu0
      %v1805 = vadd.f32 %v1716, %v1804
      %v1806 = vpop.f32.mrf.mxu0
      %v1807 = vadd.f32 %v1718, %v1806
      %1808 = vmatmul.bf16.gmra.mxu0 %v1020
      %v1809 = vpop.f32.mrf.mxu0
      %v1810 = vadd.f32 %v1721, %v1809
      %v1811 = vpop.f32.mrf.mxu0
      %v1812 = vadd.f32 %v1723, %v1811
      %1813 = vmatmul.bf16.gmra.mxu0 %v1029
      %v1814 = vpop.f32.mrf.mxu0
      %v1815 = vadd.f32 %v1726, %v1814
      %v1816 = vpop.f32.mrf.mxu0
      %v1817 = vadd.f32 %v1728, %v1816
      %1818 = vmatmul.bf16.gmra.mxu0 %v1038
      %v1819 = vpop.f32.mrf.mxu0
      %v1820 = vadd.f32 %v1731, %v1819
      %v1821 = vpop.f32.mrf.mxu0
      %v1822 = vadd.f32 %v1733, %v1821
      %1823 = vmatmul.bf16.gmra.mxu0 %v1047
      %v1824 = vpop.f32.mrf.mxu0
      %v1825 = vadd.f32 %v1736, %v1824
      %v1826 = vpop.f32.mrf.mxu0
      %v1827 = vadd.f32 %v1738, %v1826
      %1828 = vmatmul.bf16.gmra.mxu0 %v1056
      %v1829 = vpop.f32.mrf.mxu0
      %v1830 = vadd.f32 %v1741, %v1829
      %v1831 = vpop.f32.mrf.mxu0
      %v1832 = vadd.f32 %v1743, %v1831
      %1833 = vmatmul.bf16.gmra.mxu0 %v1065
      %v1834 = vpop.f32.mrf.mxu0
      %v1835 = vadd.f32 %v1746, %v1834
      %v1836 = vpop.f32.mrf.mxu0
      %v1837 = vadd.f32 %v1748, %v1836
      %1838 = vmatmul.bf16.gmra.mxu0 %v1074
      %v1839 = vpop.f32.mrf.mxu0
      %v1840 = vadd.f32 %v1751, %v1839
      %v1841 = vpop.f32.mrf.mxu0
      %v1842 = vadd.f32 %v1753, %v1841
      %1843 = vmatmul.bf16.gmra.mxu0 %v1083
      %v1844 = vpop.f32.mrf.mxu0
      %v1845 = vadd.f32 %v1756, %v1844
      %v1846 = vpop.f32.mrf.mxu0
      %v1847 = vadd.f32 %v1758, %v1846
      %1848 = vmatmul.bf16.gmra.mxu0 %v1092
      %v1849 = vpop.f32.mrf.mxu0
      %v1850 = vadd.f32 %v1761, %v1849
      %v1851 = vpop.f32.mrf.mxu0
      %v1852 = vadd.f32 %v1763, %v1851
      %1853 = vdwg.mxu0
      %1854 = vmatpush.bf16.msra.mxu0 %v1555
      %1855 = vmatpush.bf16.msra.mxu0 %v1554
      %1856 = vmatpush.bf16.msra.mxu0 %v1553
      %1857 = vmatpush.bf16.msra.mxu0 %v1552
      %1858 = vmatpush.bf16.msra.mxu0 %v1551
      %1859 = vmatpush.bf16.msra.mxu0 %v1550
      %1860 = vmatpush.bf16.msra.mxu0 %v1549
      %1861 = vmatpush.bf16.msra.mxu0 %v1548
      %1862 = vmatmul.bf16.gmra.mxu0 %v958
      %v1863 = vpop.f32.mrf.mxu0
      %v1864 = vadd.f32 %v1775, %v1863
      %v1865 = vpop.f32.mrf.mxu0
      %v1866 = vadd.f32 %v1777, %v1865
      %1867 = vmatmul.bf16.gmra.mxu0 %v967
      %v1868 = vpop.f32.mrf.mxu0
      %v1869 = vadd.f32 %v1780, %v1868
      %v1870 = vpop.f32.mrf.mxu0
      %v1871 = vadd.f32 %v1782, %v1870
      %1872 = vmatmul.bf16.gmra.mxu0 %v976
      %v1873 = vpop.f32.mrf.mxu0
      %v1874 = vadd.f32 %v1785, %v1873
      %v1875 = vpop.f32.mrf.mxu0
      %v1876 = vadd.f32 %v1787, %v1875
      %1877 = vmatmul.bf16.gmra.mxu0 %v985
      %v1878 = vpop.f32.mrf.mxu0
      %v1879 = vadd.f32 %v1790, %v1878
      %v1880 = vpop.f32.mrf.mxu0
      %v1881 = vadd.f32 %v1792, %v1880
      %1882 = vmatmul.bf16.gmra.mxu0 %v994
      %v1883 = vpop.f32.mrf.mxu0
      %v1884 = vadd.f32 %v1795, %v1883
      %v1885 = vpop.f32.mrf.mxu0
      %v1886 = vadd.f32 %v1797, %v1885
      %1887 = vmatmul.bf16.gmra.mxu0 %v1003
      %v1888 = vpop.f32.mrf.mxu0
      %v1889 = vadd.f32 %v1800, %v1888
      %v1890 = vpop.f32.mrf.mxu0
      %v1891 = vadd.f32 %v1802, %v1890
      %1892 = vmatmul.bf16.gmra.mxu0 %v1012
      %v1893 = vpop.f32.mrf.mxu0
      %v1894 = vadd.f32 %v1805, %v1893
      %v1895 = vpop.f32.mrf.mxu0
      %v1896 = vadd.f32 %v1807, %v1895
      %1897 = vmatmul.bf16.gmra.mxu0 %v1021
      %v1898 = vpop.f32.mrf.mxu0
      %v1899 = vadd.f32 %v1810, %v1898
      %v1900 = vpop.f32.mrf.mxu0
      %v1901 = vadd.f32 %v1812, %v1900
      %1902 = vmatmul.bf16.gmra.mxu0 %v1030
      %v1903 = vpop.f32.mrf.mxu0
      %v1904 = vadd.f32 %v1815, %v1903
      %v1905 = vpop.f32.mrf.mxu0
      %v1906 = vadd.f32 %v1817, %v1905
      %1907 = vmatmul.bf16.gmra.mxu0 %v1039
      %v1908 = vpop.f32.mrf.mxu0
      %v1909 = vadd.f32 %v1820, %v1908
      %v1910 = vpop.f32.mrf.mxu0
      %v1911 = vadd.f32 %v1822, %v1910
      %1912 = vmatmul.bf16.gmra.mxu0 %v1048
      %v1913 = vpop.f32.mrf.mxu0
      %v1914 = vadd.f32 %v1825, %v1913
      %v1915 = vpop.f32.mrf.mxu0
      %v1916 = vadd.f32 %v1827, %v1915
      %1917 = vmatmul.bf16.gmra.mxu0 %v1057
      %v1918 = vpop.f32.mrf.mxu0
      %v1919 = vadd.f32 %v1830, %v1918
      %v1920 = vpop.f32.mrf.mxu0
      %v1921 = vadd.f32 %v1832, %v1920
      %1922 = vmatmul.bf16.gmra.mxu0 %v1066
      %v1923 = vpop.f32.mrf.mxu0
      %v1924 = vadd.f32 %v1835, %v1923
      %v1925 = vpop.f32.mrf.mxu0
      %v1926 = vadd.f32 %v1837, %v1925
      %1927 = vmatmul.bf16.gmra.mxu0 %v1075
      %v1928 = vpop.f32.mrf.mxu0
      %v1929 = vadd.f32 %v1840, %v1928
      %v1930 = vpop.f32.mrf.mxu0
      %v1931 = vadd.f32 %v1842, %v1930
      %1932 = vmatmul.bf16.gmra.mxu0 %v1084
      %v1933 = vpop.f32.mrf.mxu0
      %v1934 = vadd.f32 %v1845, %v1933
      %v1935 = vpop.f32.mrf.mxu0
      %v1936 = vadd.f32 %v1847, %v1935
      %1937 = vmatmul.bf16.gmra.mxu0 %v1093
      %v1938 = vpop.f32.mrf.mxu0
      %v1939 = vadd.f32 %v1850, %v1938
      %v1940 = vpop.f32.mrf.mxu0
      %v1941 = vadd.f32 %v1852, %v1940
      %1942 = vdwg.mxu0
      %1943 = vmatpush.bf16.msra.mxu0 %v1563
      %1944 = vmatpush.bf16.msra.mxu0 %v1562
      %1945 = vmatpush.bf16.msra.mxu0 %v1561
      %1946 = vmatpush.bf16.msra.mxu0 %v1560
      %1947 = vmatpush.bf16.msra.mxu0 %v1559
      %1948 = vmatpush.bf16.msra.mxu0 %v1558
      %1949 = vmatpush.bf16.msra.mxu0 %v1557
      %1950 = vmatpush.bf16.msra.mxu0 %v1556
      %1951 = vmatmul.bf16.gmra.mxu0 %v959
      %v1952 = vpop.f32.mrf.mxu0
      %v1953 = vadd.f32 %v1864, %v1952
      %v1954 = vpop.f32.mrf.mxu0
      %v1955 = vadd.f32 %v1866, %v1954
      %1956 = vmatmul.bf16.gmra.mxu0 %v968
      %v1957 = vpop.f32.mrf.mxu0
      %v1958 = vadd.f32 %v1869, %v1957
      %v1959 = vpop.f32.mrf.mxu0
      %v1960 = vadd.f32 %v1871, %v1959
      %1961 = vmatmul.bf16.gmra.mxu0 %v977
      %v1962 = vpop.f32.mrf.mxu0
      %v1963 = vadd.f32 %v1874, %v1962
      %v1964 = vpop.f32.mrf.mxu0
      %v1965 = vadd.f32 %v1876, %v1964
      %1966 = vmatmul.bf16.gmra.mxu0 %v986
      %v1967 = vpop.f32.mrf.mxu0
      %v1968 = vadd.f32 %v1879, %v1967
      %v1969 = vpop.f32.mrf.mxu0
      %v1970 = vadd.f32 %v1881, %v1969
      %1971 = vmatmul.bf16.gmra.mxu0 %v995
      %v1972 = vpop.f32.mrf.mxu0
      %v1973 = vadd.f32 %v1884, %v1972
      %v1974 = vpop.f32.mrf.mxu0
      %v1975 = vadd.f32 %v1886, %v1974
      %1976 = vmatmul.bf16.gmra.mxu0 %v1004
      %v1977 = vpop.f32.mrf.mxu0
      %v1978 = vadd.f32 %v1889, %v1977
      %v1979 = vpop.f32.mrf.mxu0
      %v1980 = vadd.f32 %v1891, %v1979
      %1981 = vmatmul.bf16.gmra.mxu0 %v1013
      %v1982 = vpop.f32.mrf.mxu0
      %v1983 = vadd.f32 %v1894, %v1982
      %v1984 = vpop.f32.mrf.mxu0
      %v1985 = vadd.f32 %v1896, %v1984
      %1986 = vmatmul.bf16.gmra.mxu0 %v1022
      %v1987 = vpop.f32.mrf.mxu0
      %v1988 = vadd.f32 %v1899, %v1987
      %v1989 = vpop.f32.mrf.mxu0
      %v1990 = vadd.f32 %v1901, %v1989
      %1991 = vmatmul.bf16.gmra.mxu0 %v1031
      %v1992 = vpop.f32.mrf.mxu0
      %v1993 = vadd.f32 %v1904, %v1992
      %v1994 = vpop.f32.mrf.mxu0
      %v1995 = vadd.f32 %v1906, %v1994
      %1996 = vmatmul.bf16.gmra.mxu0 %v1040
      %v1997 = vpop.f32.mrf.mxu0
      %v1998 = vadd.f32 %v1909, %v1997
      %v1999 = vpop.f32.mrf.mxu0
      %v2000 = vadd.f32 %v1911, %v1999
      %2001 = vmatmul.bf16.gmra.mxu0 %v1049
      %v2002 = vpop.f32.mrf.mxu0
      %v2003 = vadd.f32 %v1914, %v2002
      %v2004 = vpop.f32.mrf.mxu0
      %v2005 = vadd.f32 %v1916, %v2004
      %2006 = vmatmul.bf16.gmra.mxu0 %v1058
      %v2007 = vpop.f32.mrf.mxu0
      %v2008 = vadd.f32 %v1919, %v2007
      %v2009 = vpop.f32.mrf.mxu0
      %v2010 = vadd.f32 %v1921, %v2009
      %2011 = vmatmul.bf16.gmra.mxu0 %v1067
      %v2012 = vpop.f32.mrf.mxu0
      %v2013 = vadd.f32 %v1924, %v2012
      %v2014 = vpop.f32.mrf.mxu0
      %v2015 = vadd.f32 %v1926, %v2014
      %2016 = vmatmul.bf16.gmra.mxu0 %v1076
      %v2017 = vpop.f32.mrf.mxu0
      %v2018 = vadd.f32 %v1929, %v2017
      %v2019 = vpop.f32.mrf.mxu0
      %v2020 = vadd.f32 %v1931, %v2019
      %2021 = vmatmul.bf16.gmra.mxu0 %v1085
      %v2022 = vpop.f32.mrf.mxu0
      %v2023 = vadd.f32 %v1934, %v2022
      %v2024 = vpop.f32.mrf.mxu0
      %v2025 = vadd.f32 %v1936, %v2024
      %2026 = vmatmul.bf16.gmra.mxu0 %v1094
      %v2027 = vpop.f32.mrf.mxu0
      %v2028 = vadd.f32 %v1939, %v2027
      %v2029 = vpop.f32.mrf.mxu0
      %v2030 = vadd.f32 %v1941, %v2029
      %2031 = vdwg.mxu0
      %2032 = vmatpush.bf16.msra.mxu0 %v1571
      %2033 = vmatpush.bf16.msra.mxu0 %v1570
      %2034 = vmatpush.bf16.msra.mxu0 %v1569
      %2035 = vmatpush.bf16.msra.mxu0 %v1568
      %2036 = vmatpush.bf16.msra.mxu0 %v1567
      %2037 = vmatpush.bf16.msra.mxu0 %v1566
      %2038 = vmatpush.bf16.msra.mxu0 %v1565
      %2039 = vmatpush.bf16.msra.mxu0 %v1564
      %2040 = vmatmul.bf16.gmra.mxu0 %v960
      %v2041 = vpop.f32.mrf.mxu0
      %v2042 = vadd.f32 %v1953, %v2041
      %v2043 = vpop.f32.mrf.mxu0
      %v2044 = vadd.f32 %v1955, %v2043
      %2045 = vmatmul.bf16.gmra.mxu0 %v969
      %v2046 = vpop.f32.mrf.mxu0
      %v2047 = vadd.f32 %v1958, %v2046
      %v2048 = vpop.f32.mrf.mxu0
      %v2049 = vadd.f32 %v1960, %v2048
      %2050 = vmatmul.bf16.gmra.mxu0 %v978
      %v2051 = vpop.f32.mrf.mxu0
      %v2052 = vadd.f32 %v1963, %v2051
      %v2053 = vpop.f32.mrf.mxu0
      %v2054 = vadd.f32 %v1965, %v2053
      %2055 = vmatmul.bf16.gmra.mxu0 %v987
      %v2056 = vpop.f32.mrf.mxu0
      %v2057 = vadd.f32 %v1968, %v2056
      %v2058 = vpop.f32.mrf.mxu0
      %v2059 = vadd.f32 %v1970, %v2058
      %2060 = vmatmul.bf16.gmra.mxu0 %v996
      %v2061 = vpop.f32.mrf.mxu0
      %v2062 = vadd.f32 %v1973, %v2061
      %v2063 = vpop.f32.mrf.mxu0
      %v2064 = vadd.f32 %v1975, %v2063
      %2065 = vmatmul.bf16.gmra.mxu0 %v1005
      %v2066 = vpop.f32.mrf.mxu0
      %v2067 = vadd.f32 %v1978, %v2066
      %v2068 = vpop.f32.mrf.mxu0
      %v2069 = vadd.f32 %v1980, %v2068
      %2070 = vmatmul.bf16.gmra.mxu0 %v1014
      %v2071 = vpop.f32.mrf.mxu0
      %v2072 = vadd.f32 %v1983, %v2071
      %v2073 = vpop.f32.mrf.mxu0
      %v2074 = vadd.f32 %v1985, %v2073
      %2075 = vmatmul.bf16.gmra.mxu0 %v1023
      %v2076 = vpop.f32.mrf.mxu0
      %v2077 = vadd.f32 %v1988, %v2076
      %v2078 = vpop.f32.mrf.mxu0
      %v2079 = vadd.f32 %v1990, %v2078
      %2080 = vmatmul.bf16.gmra.mxu0 %v1032
      %v2081 = vpop.f32.mrf.mxu0
      %v2082 = vadd.f32 %v1993, %v2081
      %v2083 = vpop.f32.mrf.mxu0
      %v2084 = vadd.f32 %v1995, %v2083
      %2085 = vmatmul.bf16.gmra.mxu0 %v1041
      %v2086 = vpop.f32.mrf.mxu0
      %v2087 = vadd.f32 %v1998, %v2086
      %v2088 = vpop.f32.mrf.mxu0
      %v2089 = vadd.f32 %v2000, %v2088
      %2090 = vmatmul.bf16.gmra.mxu0 %v1050
      %v2091 = vpop.f32.mrf.mxu0
      %v2092 = vadd.f32 %v2003, %v2091
      %v2093 = vpop.f32.mrf.mxu0
      %v2094 = vadd.f32 %v2005, %v2093
      %2095 = vmatmul.bf16.gmra.mxu0 %v1059
      %v2096 = vpop.f32.mrf.mxu0
      %v2097 = vadd.f32 %v2008, %v2096
      %v2098 = vpop.f32.mrf.mxu0
      %v2099 = vadd.f32 %v2010, %v2098
      %2100 = vmatmul.bf16.gmra.mxu0 %v1068
      %v2101 = vpop.f32.mrf.mxu0
      %v2102 = vadd.f32 %v2013, %v2101
      %v2103 = vpop.f32.mrf.mxu0
      %v2104 = vadd.f32 %v2015, %v2103
      %2105 = vmatmul.bf16.gmra.mxu0 %v1077
      %v2106 = vpop.f32.mrf.mxu0
      %v2107 = vadd.f32 %v2018, %v2106
      %v2108 = vpop.f32.mrf.mxu0
      %v2109 = vadd.f32 %v2020, %v2108
      %2110 = vmatmul.bf16.gmra.mxu0 %v1086
      %v2111 = vpop.f32.mrf.mxu0
      %v2112 = vadd.f32 %v2023, %v2111
      %v2113 = vpop.f32.mrf.mxu0
      %v2114 = vadd.f32 %v2025, %v2113
      %2115 = vmatmul.bf16.gmra.mxu0 %v1095
      %v2116 = vpop.f32.mrf.mxu0
      %v2117 = vadd.f32 %v2028, %v2116
      %v2118 = vpop.f32.mrf.mxu0
      %v2119 = vadd.f32 %v2030, %v2118
      %2120 = vdwg.mxu0
      %2121 = vmatpush.bf16.msra.mxu0 %v1579
      %2122 = vmatpush.bf16.msra.mxu0 %v1578
      %2123 = vmatpush.bf16.msra.mxu0 %v1577
      %2124 = vmatpush.bf16.msra.mxu0 %v1576
      %2125 = vmatpush.bf16.msra.mxu0 %v1575
      %2126 = vmatpush.bf16.msra.mxu0 %v1574
      %2127 = vmatpush.bf16.msra.mxu0 %v1573
      %2128 = vmatpush.bf16.msra.mxu0 %v1572
      %2129 = vmatmul.bf16.gmra.mxu0 %v961
      %v2130 = vpop.f32.mrf.mxu0
      %v2131 = vadd.f32 %v2042, %v2130
      %v2132 = vpop.f32.mrf.mxu0
      %v2133 = vadd.f32 %v2044, %v2132
      %2134 = vmatmul.bf16.gmra.mxu0 %v970
      %v2135 = vpop.f32.mrf.mxu0
      %v2136 = vadd.f32 %v2047, %v2135
      %v2137 = vpop.f32.mrf.mxu0
      %v2138 = vadd.f32 %v2049, %v2137
      %2139 = vmatmul.bf16.gmra.mxu0 %v979
      %v2140 = vpop.f32.mrf.mxu0
      %v2141 = vadd.f32 %v2052, %v2140
      %v2142 = vpop.f32.mrf.mxu0
      %v2143 = vadd.f32 %v2054, %v2142
      %2144 = vmatmul.bf16.gmra.mxu0 %v988
      %v2145 = vpop.f32.mrf.mxu0
      %v2146 = vadd.f32 %v2057, %v2145
      %v2147 = vpop.f32.mrf.mxu0
      %v2148 = vadd.f32 %v2059, %v2147
      %2149 = vmatmul.bf16.gmra.mxu0 %v997
      %v2150 = vpop.f32.mrf.mxu0
      %v2151 = vadd.f32 %v2062, %v2150
      %v2152 = vpop.f32.mrf.mxu0
      %v2153 = vadd.f32 %v2064, %v2152
      %2154 = vmatmul.bf16.gmra.mxu0 %v1006
      %v2155 = vpop.f32.mrf.mxu0
      %v2156 = vadd.f32 %v2067, %v2155
      %v2157 = vpop.f32.mrf.mxu0
      %v2158 = vadd.f32 %v2069, %v2157
      %2159 = vmatmul.bf16.gmra.mxu0 %v1015
      %v2160 = vpop.f32.mrf.mxu0
      %v2161 = vadd.f32 %v2072, %v2160
      %v2162 = vpop.f32.mrf.mxu0
      %v2163 = vadd.f32 %v2074, %v2162
      %2164 = vmatmul.bf16.gmra.mxu0 %v1024
      %v2165 = vpop.f32.mrf.mxu0
      %v2166 = vadd.f32 %v2077, %v2165
      %v2167 = vpop.f32.mrf.mxu0
      %v2168 = vadd.f32 %v2079, %v2167
      %2169 = vmatmul.bf16.gmra.mxu0 %v1033
      %v2170 = vpop.f32.mrf.mxu0
      %v2171 = vadd.f32 %v2082, %v2170
      %v2172 = vpop.f32.mrf.mxu0
      %v2173 = vadd.f32 %v2084, %v2172
      %2174 = vmatmul.bf16.gmra.mxu0 %v1042
      %v2175 = vpop.f32.mrf.mxu0
      %v2176 = vadd.f32 %v2087, %v2175
      %v2177 = vpop.f32.mrf.mxu0
      %v2178 = vadd.f32 %v2089, %v2177
      %2179 = vmatmul.bf16.gmra.mxu0 %v1051
      %v2180 = vpop.f32.mrf.mxu0
      %v2181 = vadd.f32 %v2092, %v2180
      %v2182 = vpop.f32.mrf.mxu0
      %v2183 = vadd.f32 %v2094, %v2182
      %2184 = vmatmul.bf16.gmra.mxu0 %v1060
      %v2185 = vpop.f32.mrf.mxu0
      %v2186 = vadd.f32 %v2097, %v2185
      %v2187 = vpop.f32.mrf.mxu0
      %v2188 = vadd.f32 %v2099, %v2187
      %2189 = vmatmul.bf16.gmra.mxu0 %v1069
      %v2190 = vpop.f32.mrf.mxu0
      %v2191 = vadd.f32 %v2102, %v2190
      %v2192 = vpop.f32.mrf.mxu0
      %v2193 = vadd.f32 %v2104, %v2192
      %2194 = vmatmul.bf16.gmra.mxu0 %v1078
      %v2195 = vpop.f32.mrf.mxu0
      %v2196 = vadd.f32 %v2107, %v2195
      %v2197 = vpop.f32.mrf.mxu0
      %v2198 = vadd.f32 %v2109, %v2197
      %2199 = vmatmul.bf16.gmra.mxu0 %v1087
      %v2200 = vpop.f32.mrf.mxu0
      %v2201 = vadd.f32 %v2112, %v2200
      %v2202 = vpop.f32.mrf.mxu0
      %v2203 = vadd.f32 %v2114, %v2202
      %2204 = vmatmul.bf16.gmra.mxu0 %v1096
      %v2205 = vpop.f32.mrf.mxu0
      %v2206 = vadd.f32 %v2117, %v2205
      %v2207 = vpop.f32.mrf.mxu0
      %v2208 = vadd.f32 %v2119, %v2207
      %2209 = vdwg.mxu0
      %2210 = vmatpush.bf16.msra.mxu0 %v1587
      %2211 = vmatpush.bf16.msra.mxu0 %v1586
      %2212 = vmatpush.bf16.msra.mxu0 %v1585
      %2213 = vmatpush.bf16.msra.mxu0 %v1584
      %2214 = vmatpush.bf16.msra.mxu0 %v1583
      %2215 = vmatpush.bf16.msra.mxu0 %v1582
      %2216 = vmatpush.bf16.msra.mxu0 %v1581
      %2217 = vmatpush.bf16.msra.mxu0 %v1580
      %2218 = vmatmul.bf16.gmra.mxu0 %v962
      %v2219 = vpop.f32.mrf.mxu0
      %v2220 = vadd.f32 %v2131, %v2219
      %v2221 = vpop.f32.mrf.mxu0
      %v2222 = vadd.f32 %v2133, %v2221
      %2223 = vmatmul.bf16.gmra.mxu0 %v971
      %v2224 = vpop.f32.mrf.mxu0
      %v2225 = vadd.f32 %v2136, %v2224
      %v2226 = vpop.f32.mrf.mxu0
      %v2227 = vadd.f32 %v2138, %v2226
      %2228 = vmatmul.bf16.gmra.mxu0 %v980
      %v2229 = vpop.f32.mrf.mxu0
      %v2230 = vadd.f32 %v2141, %v2229
      %v2231 = vpop.f32.mrf.mxu0
      %v2232 = vadd.f32 %v2143, %v2231
      %2233 = vmatmul.bf16.gmra.mxu0 %v989
      %v2234 = vpop.f32.mrf.mxu0
      %v2235 = vadd.f32 %v2146, %v2234
      %v2236 = vpop.f32.mrf.mxu0
      %v2237 = vadd.f32 %v2148, %v2236
      %2238 = vmatmul.bf16.gmra.mxu0 %v998
      %v2239 = vpop.f32.mrf.mxu0
      %v2240 = vadd.f32 %v2151, %v2239
      %v2241 = vpop.f32.mrf.mxu0
      %v2242 = vadd.f32 %v2153, %v2241
      %2243 = vmatmul.bf16.gmra.mxu0 %v1007
      %v2244 = vpop.f32.mrf.mxu0
      %v2245 = vadd.f32 %v2156, %v2244
      %v2246 = vpop.f32.mrf.mxu0
      %v2247 = vadd.f32 %v2158, %v2246
      %2248 = vmatmul.bf16.gmra.mxu0 %v1016
      %v2249 = vpop.f32.mrf.mxu0
      %v2250 = vadd.f32 %v2161, %v2249
      %v2251 = vpop.f32.mrf.mxu0
      %v2252 = vadd.f32 %v2163, %v2251
      %2253 = vmatmul.bf16.gmra.mxu0 %v1025
      %v2254 = vpop.f32.mrf.mxu0
      %v2255 = vadd.f32 %v2166, %v2254
      %v2256 = vpop.f32.mrf.mxu0
      %v2257 = vadd.f32 %v2168, %v2256
      %2258 = vmatmul.bf16.gmra.mxu0 %v1034
      %v2259 = vpop.f32.mrf.mxu0
      %v2260 = vadd.f32 %v2171, %v2259
      %v2261 = vpop.f32.mrf.mxu0
      %v2262 = vadd.f32 %v2173, %v2261
      %2263 = vmatmul.bf16.gmra.mxu0 %v1043
      %v2264 = vpop.f32.mrf.mxu0
      %v2265 = vadd.f32 %v2176, %v2264
      %v2266 = vpop.f32.mrf.mxu0
      %v2267 = vadd.f32 %v2178, %v2266
      %2268 = vmatmul.bf16.gmra.mxu0 %v1052
      %v2269 = vpop.f32.mrf.mxu0
      %v2270 = vadd.f32 %v2181, %v2269
      %v2271 = vpop.f32.mrf.mxu0
      %v2272 = vadd.f32 %v2183, %v2271
      %2273 = vmatmul.bf16.gmra.mxu0 %v1061
      %v2274 = vpop.f32.mrf.mxu0
      %v2275 = vadd.f32 %v2186, %v2274
      %v2276 = vpop.f32.mrf.mxu0
      %v2277 = vadd.f32 %v2188, %v2276
      %2278 = vmatmul.bf16.gmra.mxu0 %v1070
      %v2279 = vpop.f32.mrf.mxu0
      %v2280 = vadd.f32 %v2191, %v2279
      %v2281 = vpop.f32.mrf.mxu0
      %v2282 = vadd.f32 %v2193, %v2281
      %2283 = vmatmul.bf16.gmra.mxu0 %v1079
      %v2284 = vpop.f32.mrf.mxu0
      %v2285 = vadd.f32 %v2196, %v2284
      %v2286 = vpop.f32.mrf.mxu0
      %v2287 = vadd.f32 %v2198, %v2286
      %2288 = vmatmul.bf16.gmra.mxu0 %v1088
      %v2289 = vpop.f32.mrf.mxu0
      %v2290 = vadd.f32 %v2201, %v2289
      %v2291 = vpop.f32.mrf.mxu0
      %v2292 = vadd.f32 %v2203, %v2291
      %2293 = vmatmul.bf16.gmra.mxu0 %v1097
      %v2294 = vpop.f32.mrf.mxu0
      %v2295 = vadd.f32 %v2206, %v2294
      %v2296 = vpop.f32.mrf.mxu0
      %v2297 = vadd.f32 %v2208, %v2296
      %2298 = vdwg.mxu0
      %2299 = vmatpush.bf16.msra.mxu0 %v1595
      %2300 = vmatpush.bf16.msra.mxu0 %v1594
      %2301 = vmatpush.bf16.msra.mxu0 %v1593
      %2302 = vmatpush.bf16.msra.mxu0 %v1592
      %2303 = vmatpush.bf16.msra.mxu0 %v1591
      %2304 = vmatpush.bf16.msra.mxu0 %v1590
      %2305 = vmatpush.bf16.msra.mxu0 %v1589
      %2306 = vmatpush.bf16.msra.mxu0 %v1588
      %2307 = vmatmul.bf16.gmra.mxu0 %v963
      %v2308 = vpop.f32.mrf.mxu0
      %v2309 = vadd.f32 %v2220, %v2308
      %v2310 = vpop.f32.mrf.mxu0
      %v2311 = vadd.f32 %v2222, %v2310
      %2312 = vmatmul.bf16.gmra.mxu0 %v972
      %v2313 = vpop.f32.mrf.mxu0
      %v2314 = vadd.f32 %v2225, %v2313
      %v2315 = vpop.f32.mrf.mxu0
      %v2316 = vadd.f32 %v2227, %v2315
      %2317 = vmatmul.bf16.gmra.mxu0 %v981
      %v2318 = vpop.f32.mrf.mxu0
      %v2319 = vadd.f32 %v2230, %v2318
      %v2320 = vpop.f32.mrf.mxu0
      %v2321 = vadd.f32 %v2232, %v2320
      %2322 = vmatmul.bf16.gmra.mxu0 %v990
      %v2323 = vpop.f32.mrf.mxu0
      %v2324 = vadd.f32 %v2235, %v2323
      %v2325 = vpop.f32.mrf.mxu0
      %v2326 = vadd.f32 %v2237, %v2325
      %2327 = vmatmul.bf16.gmra.mxu0 %v999
      %v2328 = vpop.f32.mrf.mxu0
      %v2329 = vadd.f32 %v2240, %v2328
      %v2330 = vpop.f32.mrf.mxu0
      %v2331 = vadd.f32 %v2242, %v2330
      %2332 = vmatmul.bf16.gmra.mxu0 %v1008
      %v2333 = vpop.f32.mrf.mxu0
      %v2334 = vadd.f32 %v2245, %v2333
      %v2335 = vpop.f32.mrf.mxu0
      %v2336 = vadd.f32 %v2247, %v2335
      %2337 = vmatmul.bf16.gmra.mxu0 %v1017
      %v2338 = vpop.f32.mrf.mxu0
      %v2339 = vadd.f32 %v2250, %v2338
      %v2340 = vpop.f32.mrf.mxu0
      %v2341 = vadd.f32 %v2252, %v2340
      %2342 = vmatmul.bf16.gmra.mxu0 %v1026
      %v2343 = vpop.f32.mrf.mxu0
      %v2344 = vadd.f32 %v2255, %v2343
      %v2345 = vpop.f32.mrf.mxu0
      %v2346 = vadd.f32 %v2257, %v2345
      %2347 = vmatmul.bf16.gmra.mxu0 %v1035
      %v2348 = vpop.f32.mrf.mxu0
      %v2349 = vadd.f32 %v2260, %v2348
      %v2350 = vpop.f32.mrf.mxu0
      %v2351 = vadd.f32 %v2262, %v2350
      %2352 = vmatmul.bf16.gmra.mxu0 %v1044
      %v2353 = vpop.f32.mrf.mxu0
      %v2354 = vadd.f32 %v2265, %v2353
      %v2355 = vpop.f32.mrf.mxu0
      %v2356 = vadd.f32 %v2267, %v2355
      %2357 = vmatmul.bf16.gmra.mxu0 %v1053
      %v2358 = vpop.f32.mrf.mxu0
      %v2359 = vadd.f32 %v2270, %v2358
      %v2360 = vpop.f32.mrf.mxu0
      %v2361 = vadd.f32 %v2272, %v2360
      %2362 = vmatmul.bf16.gmra.mxu0 %v1062
      %v2363 = vpop.f32.mrf.mxu0
      %v2364 = vadd.f32 %v2275, %v2363
      %v2365 = vpop.f32.mrf.mxu0
      %v2366 = vadd.f32 %v2277, %v2365
      %2367 = vmatmul.bf16.gmra.mxu0 %v1071
      %v2368 = vpop.f32.mrf.mxu0
      %v2369 = vadd.f32 %v2280, %v2368
      %v2370 = vpop.f32.mrf.mxu0
      %v2371 = vadd.f32 %v2282, %v2370
      %2372 = vmatmul.bf16.gmra.mxu0 %v1080
      %v2373 = vpop.f32.mrf.mxu0
      %v2374 = vadd.f32 %v2285, %v2373
      %v2375 = vpop.f32.mrf.mxu0
      %v2376 = vadd.f32 %v2287, %v2375
      %2377 = vmatmul.bf16.gmra.mxu0 %v1089
      %v2378 = vpop.f32.mrf.mxu0
      %v2379 = vadd.f32 %v2290, %v2378
      %v2380 = vpop.f32.mrf.mxu0
      %v2381 = vadd.f32 %v2292, %v2380
      %2382 = vmatmul.bf16.gmra.mxu0 %v1098
      %v2383 = vpop.f32.mrf.mxu0
      %v2384 = vadd.f32 %v2295, %v2383
      %v2385 = vpop.f32.mrf.mxu0
      %v2386 = vadd.f32 %v2297, %v2385
      %2387 = vdwg.mxu0
      %2388 = vmatpush.bf16.msra.mxu0 %v1603
      %2389 = vmatpush.bf16.msra.mxu0 %v1602
      %2390 = vmatpush.bf16.msra.mxu0 %v1601
      %2391 = vmatpush.bf16.msra.mxu0 %v1600
      %2392 = vmatpush.bf16.msra.mxu0 %v1599
      %2393 = vmatpush.bf16.msra.mxu0 %v1598
      %2394 = vmatpush.bf16.msra.mxu0 %v1597
      %2395 = vmatpush.bf16.msra.mxu0 %v1596
      %2396 = vmatmul.bf16.gmra.mxu0 %v964
      %v2397 = vpop.f32.mrf.mxu0
      %v2398 = vadd.f32 %v2309, %v2397
      %v2399 = vpop.f32.mrf.mxu0
      %v2400 = vadd.f32 %v2311, %v2399
      %2401 = vmatmul.bf16.gmra.mxu0 %v973
      %v2402 = vpop.f32.mrf.mxu0
      %v2403 = vadd.f32 %v2314, %v2402
      %v2404 = vpop.f32.mrf.mxu0
      %v2405 = vadd.f32 %v2316, %v2404
      %2406 = vmatmul.bf16.gmra.mxu0 %v982
      %v2407 = vpop.f32.mrf.mxu0
      %v2408 = vadd.f32 %v2319, %v2407
      %v2409 = vpop.f32.mrf.mxu0
      %v2410 = vadd.f32 %v2321, %v2409
      %2411 = vmatmul.bf16.gmra.mxu0 %v991
      %v2412 = vpop.f32.mrf.mxu0
      %v2413 = vadd.f32 %v2324, %v2412
      %v2414 = vpop.f32.mrf.mxu0
      %v2415 = vadd.f32 %v2326, %v2414
      %2416 = vmatmul.bf16.gmra.mxu0 %v1000
      %v2417 = vpop.f32.mrf.mxu0
      %v2418 = vadd.f32 %v2329, %v2417
      %v2419 = vpop.f32.mrf.mxu0
      %v2420 = vadd.f32 %v2331, %v2419
      %2421 = vmatmul.bf16.gmra.mxu0 %v1009
      %v2422 = vpop.f32.mrf.mxu0
      %v2423 = vadd.f32 %v2334, %v2422
      %v2424 = vpop.f32.mrf.mxu0
      %v2425 = vadd.f32 %v2336, %v2424
      %2426 = vmatmul.bf16.gmra.mxu0 %v1018
      %v2427 = vpop.f32.mrf.mxu0
      %v2428 = vadd.f32 %v2339, %v2427
      %v2429 = vpop.f32.mrf.mxu0
      %v2430 = vadd.f32 %v2341, %v2429
      %2431 = vmatmul.bf16.gmra.mxu0 %v1027
      %v2432 = vpop.f32.mrf.mxu0
      %v2433 = vadd.f32 %v2344, %v2432
      %v2434 = vpop.f32.mrf.mxu0
      %v2435 = vadd.f32 %v2346, %v2434
      %2436 = vmatmul.bf16.gmra.mxu0 %v1036
      %v2437 = vpop.f32.mrf.mxu0
      %v2438 = vadd.f32 %v2349, %v2437
      %v2439 = vpop.f32.mrf.mxu0
      %v2440 = vadd.f32 %v2351, %v2439
      %2441 = vmatmul.bf16.gmra.mxu0 %v1045
      %v2442 = vpop.f32.mrf.mxu0
      %v2443 = vadd.f32 %v2354, %v2442
      %v2444 = vpop.f32.mrf.mxu0
      %v2445 = vadd.f32 %v2356, %v2444
      %2446 = vmatmul.bf16.gmra.mxu0 %v1054
      %v2447 = vpop.f32.mrf.mxu0
      %v2448 = vadd.f32 %v2359, %v2447
      %v2449 = vpop.f32.mrf.mxu0
      %v2450 = vadd.f32 %v2361, %v2449
      %2451 = vmatmul.bf16.gmra.mxu0 %v1063
      %v2452 = vpop.f32.mrf.mxu0
      %v2453 = vadd.f32 %v2364, %v2452
      %v2454 = vpop.f32.mrf.mxu0
      %v2455 = vadd.f32 %v2366, %v2454
      %2456 = vmatmul.bf16.gmra.mxu0 %v1072
      %v2457 = vpop.f32.mrf.mxu0
      %v2458 = vadd.f32 %v2369, %v2457
      %v2459 = vpop.f32.mrf.mxu0
      %v2460 = vadd.f32 %v2371, %v2459
      %2461 = vmatmul.bf16.gmra.mxu0 %v1081
      %v2462 = vpop.f32.mrf.mxu0
      %v2463 = vadd.f32 %v2374, %v2462
      %v2464 = vpop.f32.mrf.mxu0
      %v2465 = vadd.f32 %v2376, %v2464
      %2466 = vmatmul.bf16.gmra.mxu0 %v1090
      %v2467 = vpop.f32.mrf.mxu0
      %v2468 = vadd.f32 %v2379, %v2467
      %v2469 = vpop.f32.mrf.mxu0
      %v2470 = vadd.f32 %v2381, %v2469
      %2471 = vmatmul.bf16.gmra.mxu0 %v1099
      %v2472 = vpop.f32.mrf.mxu0
      %v2473 = vadd.f32 %v2384, %v2472
      %v2474 = vpop.f32.mrf.mxu0
      %v2475 = vadd.f32 %v2386, %v2474
      %2476 = vdwg.mxu0
      %v2477 = vld [vmem:[%s2] sm:$0x1]
      %v2479 = vperm.slane %v2477, 0
      %v2481 = vmul.f32 %v2398, %v2479
      %v2482 = vmul.f32 %v2400, %v2479
      %v2483 = vmul.f32 %v2403, %v2479
      %v2484 = vmul.f32 %v2405, %v2479
      %v2485 = vmul.f32 %v2408, %v2479
      %v2486 = vmul.f32 %v2410, %v2479
      %v2487 = vmul.f32 %v2413, %v2479
      %v2488 = vmul.f32 %v2415, %v2479
      %v2489 = vmul.f32 %v2418, %v2479
      %v2490 = vmul.f32 %v2420, %v2479
      %v2491 = vmul.f32 %v2423, %v2479
      %v2492 = vmul.f32 %v2425, %v2479
      %v2493 = vmul.f32 %v2428, %v2479
      %v2494 = vmul.f32 %v2430, %v2479
      %v2495 = vmul.f32 %v2433, %v2479
      %v2496 = vmul.f32 %v2435, %v2479
      %v2497 = vmul.f32 %v2438, %v2479
      %v2498 = vmul.f32 %v2440, %v2479
      %v2499 = vmul.f32 %v2443, %v2479
      %v2500 = vmul.f32 %v2445, %v2479
      %v2501 = vmul.f32 %v2448, %v2479
      %v2502 = vmul.f32 %v2450, %v2479
      %v2503 = vmul.f32 %v2453, %v2479
      %v2504 = vmul.f32 %v2455, %v2479
      %v2505 = vmul.f32 %v2458, %v2479
      %v2506 = vmul.f32 %v2460, %v2479
      %v2507 = vmul.f32 %v2463, %v2479
      %v2508 = vmul.f32 %v2465, %v2479
      %v2509 = vmul.f32 %v2468, %v2479
      %v2510 = vmul.f32 %v2470, %v2479
      %v2511 = vmul.f32 %v2473, %v2479
      %v2512 = vmul.f32 %v2475, %v2479
      %v2513 = vld [vmem:[%s3] sm:$0x1]
      %v2515 = vperm.slane %v2513, 0
      %v2517 = vadd.f32 %v2481, %v2515
      %v2518 = vadd.f32 %v2482, %v2515
      %v2519 = vadd.f32 %v2483, %v2515
      %v2520 = vadd.f32 %v2484, %v2515
      %v2521 = vadd.f32 %v2485, %v2515
      %v2522 = vadd.f32 %v2486, %v2515
      %v2523 = vadd.f32 %v2487, %v2515
      %v2524 = vadd.f32 %v2488, %v2515
      %v2525 = vadd.f32 %v2489, %v2515
      %v2526 = vadd.f32 %v2490, %v2515
      %v2527 = vadd.f32 %v2491, %v2515
      %v2528 = vadd.f32 %v2492, %v2515
      %v2529 = vadd.f32 %v2493, %v2515
      %v2530 = vadd.f32 %v2494, %v2515
      %v2531 = vadd.f32 %v2495, %v2515
      %v2532 = vadd.f32 %v2496, %v2515
      %v2533 = vadd.f32 %v2497, %v2515
      %v2534 = vadd.f32 %v2498, %v2515
      %v2535 = vadd.f32 %v2499, %v2515
      %v2536 = vadd.f32 %v2500, %v2515
      %v2537 = vadd.f32 %v2501, %v2515
      %v2538 = vadd.f32 %v2502, %v2515
      %v2539 = vadd.f32 %v2503, %v2515
      %v2540 = vadd.f32 %v2504, %v2515
      %v2541 = vadd.f32 %v2505, %v2515
      %v2542 = vadd.f32 %v2506, %v2515
      %v2543 = vadd.f32 %v2507, %v2515
      %v2544 = vadd.f32 %v2508, %v2515
      %v2545 = vadd.f32 %v2509, %v2515
      %v2546 = vadd.f32 %v2510, %v2515
      %v2547 = vadd.f32 %v2511, %v2515
      %v2548 = vadd.f32 %v2512, %v2515
      %v2549 = vmax.f32 %v2517, 0.0
      %v2550 = vmax.f32 %v2518, 0.0
      %v2551 = vmax.f32 %v2519, 0.0
      %v2552 = vmax.f32 %v2520, 0.0
      %v2553 = vmax.f32 %v2521, 0.0
      %v2554 = vmax.f32 %v2522, 0.0
      %v2555 = vmax.f32 %v2523, 0.0
      %v2556 = vmax.f32 %v2524, 0.0
      %v2557 = vmax.f32 %v2525, 0.0
      %v2558 = vmax.f32 %v2526, 0.0
      %v2559 = vmax.f32 %v2527, 0.0
      %v2560 = vmax.f32 %v2528, 0.0
      %v2561 = vmax.f32 %v2529, 0.0
      %v2562 = vmax.f32 %v2530, 0.0
      %v2563 = vmax.f32 %v2531, 0.0
      %v2564 = vmax.f32 %v2532, 0.0
      %v2565 = vmax.f32 %v2533, 0.0
      %v2566 = vmax.f32 %v2534, 0.0
      %v2567 = vmax.f32 %v2535, 0.0
      %v2568 = vmax.f32 %v2536, 0.0
      %v2569 = vmax.f32 %v2537, 0.0
      %v2570 = vmax.f32 %v2538, 0.0
      %v2571 = vmax.f32 %v2539, 0.0
      %v2572 = vmax.f32 %v2540, 0.0
      %v2573 = vmax.f32 %v2541, 0.0
      %v2574 = vmax.f32 %v2542, 0.0
      %v2575 = vmax.f32 %v2543, 0.0
      %v2576 = vmax.f32 %v2544, 0.0
      %v2577 = vmax.f32 %v2545, 0.0
      %v2578 = vmax.f32 %v2546, 0.0
      %v2579 = vmax.f32 %v2547, 0.0
      %v2580 = vmax.f32 %v2548, 0.0
      %v2581 = vpack.c.bf16 %v2549, %v2549
      %v2582 = vpack.c.bf16 %v2550, %v2550
      %v2583 = vpack.c.bf16 %v2551, %v2551
      %v2584 = vpack.c.bf16 %v2552, %v2552
      %v2585 = vpack.c.bf16 %v2553, %v2553
      %v2586 = vpack.c.bf16 %v2554, %v2554
      %v2587 = vpack.c.bf16 %v2555, %v2555
      %v2588 = vpack.c.bf16 %v2556, %v2556
      %v2589 = vpack.c.bf16 %v2557, %v2557
      %v2590 = vpack.c.bf16 %v2558, %v2558
      %v2591 = vpack.c.bf16 %v2559, %v2559
      %v2592 = vpack.c.bf16 %v2560, %v2560
      %v2593 = vpack.c.bf16 %v2561, %v2561
      %v2594 = vpack.c.bf16 %v2562, %v2562
      %v2595 = vpack.c.bf16 %v2563, %v2563
      %v2596 = vpack.c.bf16 %v2564, %v2564
      %v2597 = vpack.c.bf16 %v2565, %v2565
      %v2598 = vpack.c.bf16 %v2566, %v2566
      %v2599 = vpack.c.bf16 %v2567, %v2567
      %v2600 = vpack.c.bf16 %v2568, %v2568
      %v2601 = vpack.c.bf16 %v2569, %v2569
      %v2602 = vpack.c.bf16 %v2570, %v2570
      %v2603 = vpack.c.bf16 %v2571, %v2571
      %v2604 = vpack.c.bf16 %v2572, %v2572
      %v2605 = vpack.c.bf16 %v2573, %v2573
      %v2606 = vpack.c.bf16 %v2574, %v2574
      %v2607 = vpack.c.bf16 %v2575, %v2575
      %v2608 = vpack.c.bf16 %v2576, %v2576
      %v2609 = vpack.c.bf16 %v2577, %v2577
      %v2610 = vpack.c.bf16 %v2578, %v2578
      %v2611 = vpack.c.bf16 %v2579, %v2579
      %v2612 = vpack.c.bf16 %v2580, %v2580
      %2613 = vst [vmem:[%s202] sm:$0xf] %v2581
      %2614 = vst [vmem:[%s202 + $0x4] sm:$0xf] %v2582
      %2615 = vst [vmem:[%s202 + $0x8] sm:$0xf] %v2583
      %2616 = vst [vmem:[%s202 + $0xc] sm:$0xf] %v2584
      %2617 = vst [vmem:[%s202 + $0x10] sm:$0xf] %v2585
      %2618 = vst [vmem:[%s202 + $0x14] sm:$0xf] %v2586
      %2619 = vst [vmem:[%s202 + $0x18] sm:$0xf] %v2587
      %2620 = vst [vmem:[%s202 + $0x1c] sm:$0xf] %v2588
      %2621 = vst [vmem:[%s202 + $0x20] sm:$0xf] %v2589
      %2622 = vst [vmem:[%s202 + $0x24] sm:$0xf] %v2590
      %2623 = vst [vmem:[%s202 + $0x28] sm:$0xf] %v2591
      %2624 = vst [vmem:[%s202 + $0x2c] sm:$0xf] %v2592
      %2625 = vst [vmem:[%s202 + $0x30] sm:$0xf] %v2593
      %2626 = vst [vmem:[%s202 + $0x34] sm:$0xf] %v2594
      %2627 = vst [vmem:[%s202 + $0x38] sm:$0xf] %v2595
      %2628 = vst [vmem:[%s202 + $0x3c] sm:$0xf] %v2596
      %2629 = vst [vmem:[%s202 + $0x40] sm:$0xf] %v2597
      %2630 = vst [vmem:[%s202 + $0x44] sm:$0xf] %v2598
      %2631 = vst [vmem:[%s202 + $0x48] sm:$0xf] %v2599
      %2632 = vst [vmem:[%s202 + $0x4c] sm:$0xf] %v2600
      %2633 = vst [vmem:[%s202 + $0x50] sm:$0xf] %v2601
      %2634 = vst [vmem:[%s202 + $0x54] sm:$0xf] %v2602
      %2635 = vst [vmem:[%s202 + $0x58] sm:$0xf] %v2603
      %2636 = vst [vmem:[%s202 + $0x5c] sm:$0xf] %v2604
      %2637 = vst [vmem:[%s202 + $0x60] sm:$0xf] %v2605
      %2638 = vst [vmem:[%s202 + $0x64] sm:$0xf] %v2606
      %2639 = vst [vmem:[%s202 + $0x68] sm:$0xf] %v2607
      %2640 = vst [vmem:[%s202 + $0x6c] sm:$0xf] %v2608
      %2641 = vst [vmem:[%s202 + $0x70] sm:$0xf] %v2609
      %2642 = vst [vmem:[%s202 + $0x74] sm:$0xf] %v2610
      %2643 = vst [vmem:[%s202 + $0x78] sm:$0xf] %v2611
      %2644 = vst [vmem:[%s202 + $0x7c] sm:$0xf] %v2612
      %s2645 = smul.u32 32, %s15
      %p2646 = scmp.lt.s32.totalorder %s2645, 63
      %s2647 = scalar_select %p2646, %s2645, 63
      %s2648 = smul.addr %s2647, 4
      %s2649 = scalar_lea.vmem %s4, %s2648
      // Predicated region
      $region37: #{_lambda_.2} parent=35 // pred_check
        %p2650 = pneg %p122
      $region38: #{_lambda_.2} parent=35 // pred_check_branch
        %2652 = sbr.rel (%p2650) target = $region40
      $region39: #{_lambda_.2} parent=35 // pred_region
        %s2653 = smul.u32 32, %s15
      $region40: #{_lambda_.2} parent=35 // pred_fallthru
        _
    $region36: #{_lambda_.2} parent=5 // pred_fallthru
      _
    %p2654 = scmp.le.s32.totalorder 2, %s10
    // Predicated region
    $region41: #{_lambda_.2} parent=5 // pred_check
      %p2655 = pneg %p2654
    $region42: #{_lambda_.2} parent=5 // pred_check_branch
      %2657 = sbr.rel (%p2655) target = $region44
    $region43: #{_lambda_.2} parent=5 // pred_region
      %s2658 = ssub.s32 %s10, 2
      // Predicated region
      $region45: #{_lambda_.2} parent=43 // pred_check
        %p2659 = pneg %p128
      $region46: #{_lambda_.2} parent=43 // pred_check_branch
        %2661 = sbr.rel (%p2659) target = $region48
      $region47: #{_lambda_.2} parent=43 // pred_region
        %s2662 = smul.u32 32, %s16
        %p2663 = scmp.lt.s32.totalorder %s2662, 63
        %s2664 = scalar_select %p2663, %s2662, 63
        %s2665 = smul.addr %s2664, 4
        %s2666 = scalar_lea.vmem %s4, %s2665
      $region48: #{_lambda_.2} parent=43 // pred_fallthru
        _
    $region44: #{_lambda_.2} parent=5 // pred_fallthru
      _
  $region6: #{_lambda_.2} parent=0 // loop_footer
    %s14 = sadd.s32 1, %s10
  $region7: #{_lambda_.2} parent=0 // loop_footer_branch
    %9 = sbr.rel target = $region3
  $region8: #{_lambda_.2} parent=0 // loop_exit
    _

// kernel: _lambda_.3
$region0: #{_lambda_.3}
  #allocation0 [shape = 'u32[]', space=smem, size = 0x4, offset = 0x4, fixed_abs, tag = 'smem constant byte address 0x4 - core index']
  #allocation1 [shape = 'u32[72,128]{1,0:T(1,128)}', space=vmem, size = 0x9000, scoped, tag = 'internal scratch']
  %s0 = inlined_call_operand.vmem [shape: bf16[512,1152], index: 0, kind: input, shape index: {}]
  %s1 = inlined_call_operand.vmem [shape: bf16[1152,128], index: 1, kind: input, shape index: {}]
  %s2 = inlined_call_operand.vmem [shape: f32[1,128], index: 2, kind: input, shape index: {}]
  %s3 = inlined_call_operand.vmem [shape: f32[1,128], index: 3, kind: input, shape index: {}]
  %s4 = inlined_call_operand.vmem [shape: bf16[512,128], index: 4, kind: input, shape index: {}]
  %s5 = inlined_call_operand.vmem [shape: bf16[128,128], index: 5, kind: input, shape index: {}]
  %s6 = inlined_call_operand.vmem [shape: f32[1,128], index: 6, kind: input, shape index: {}]
  %s7 = inlined_call_operand.vmem [shape: f32[1,128], index: 7, kind: input, shape index: {}]
  %s8 = inlined_call_operand.vmem [shape: f32[512,128], index: 8, kind: output, shape index: {}]
  %s9 = sld [smem:[#allocation0]]
  $region65: #{_lambda_.3} parent=0
    _
  %s11 = ssub.s32 1, %s9
  %s12 = scalar_select 0, %s11, %s9
  loop: start=0, step=1, limit=4
  $region2: #{_lambda_.3} parent=0 // loop_pre_header
    _
  $region3: #{_lambda_.3} parent=0 // loop_header
    %s14 = sphi 0, %s18
    %p15 = scmp.ge.s32.totalorder %s14, 4
    %s24 = sphi 0, %s26
    %s27 = sphi 0, %s24
    %s28 = sphi 0, %s27
    %s44 = sphi 0, %s28
    %s48 = sphi 0, %s48
    %s50 = sphi 0, %s48
    %s51 = sphi 0, %s50
    %s65 = sphi 0, %s51
    %s69 = sphi 0, %s69
    %s71 = sphi 0, %s69
    %s72 = sphi 0, %s71
    %s86 = sphi 0, %s72
    %s90 = sphi 0, %s90
    %s92 = sphi 0, %s90
    %s93 = sphi 0, %s92
    %s107 = sphi 0, %s93
    %s113 = sphi 0, %s115
    %s116 = sphi 0, %s113
    %s117 = sphi 0, %s116
    %s133 = sphi 0, %s117
    %s137 = sphi 0, %s137
    %s139 = sphi 0, %s137
    %s140 = sphi 0, %s139
    %s154 = sphi 0, %s140
    %s158 = sphi 0, %s158
    %s160 = sphi 0, %s158
    %s161 = sphi 0, %s160
    %s175 = sphi 0, %s161
    %s179 = sphi 0, %s179
    %s181 = sphi 0, %s179
    %s182 = sphi 0, %s181
    %s196 = sphi 0, %s182
    %s202 = sphi 0, %s204
    %s205 = sphi 0, %s202
    %s206 = sphi 0, %s205
    %s222 = sphi 0, %s206
  $region4: #{_lambda_.3} parent=0 // loop_header_branch
    %17 = sbr.rel (%p15) target = $region8
  $region5: #{_lambda_.3} parent=0 // loop_body
    %s19 = ssub.s32 %s14, 1
    %s20 = ssub.s32 %s14, 2
    %s21 = sadd.s32 %s14, 1
    %s22 = ssub.s32 %s14, %s21
    %p23 = scmp.eq.s32.totalorder %s22, 0
    %s25 = sadd.s32 %s24, 1
    %s26 = scalar_select %p23, %s24, %s25
    %p29 = pneg %p23
    %p30 = scmp.eq.s32.totalorder %s14, 1
    %p31 = por %p29, %p30
    %p32 = scmp.ne.s32.totalorder %s24, %s27
    %p33 = scmp.eq.s32.totalorder %s14, 0
    %p34 = por %p32, %p33
    %p35 = scmp.ne.s32.totalorder %s24, %s27
    %p36 = scmp.eq.s32.totalorder %s19, 1
    %p37 = por %p35, %p36
    %p38 = scmp.ne.s32.totalorder %s27, %s28
    %p39 = scmp.eq.s32.totalorder %s19, 0
    %p40 = por %p38, %p39
    %p41 = scmp.ne.s32.totalorder %s27, %s28
    %p42 = scmp.eq.s32.totalorder %s20, 1
    %p43 = por %p41, %p42
    %p45 = scmp.ne.s32.totalorder %s28, %s44
    %p46 = scmp.eq.s32.totalorder %s20, 0
    %p47 = por %p45, %p46
    %s49 = sadd.s32 %s48, 1
    %p52 = scmp.eq.s32.totalorder %s14, 1
    %p53 = scmp.ne.s32.totalorder %s48, %s50
    %p54 = scmp.eq.s32.totalorder %s14, 0
    %p55 = por %p53, %p54
    %p56 = scmp.ne.s32.totalorder %s48, %s50
    %p57 = scmp.eq.s32.totalorder %s19, 1
    %p58 = por %p56, %p57
    %p59 = scmp.ne.s32.totalorder %s50, %s51
    %p60 = scmp.eq.s32.totalorder %s19, 0
    %p61 = por %p59, %p60
    %p62 = scmp.ne.s32.totalorder %s50, %s51
    %p63 = scmp.eq.s32.totalorder %s20, 1
    %p64 = por %p62, %p63
    %p66 = scmp.ne.s32.totalorder %s51, %s65
    %p67 = scmp.eq.s32.totalorder %s20, 0
    %p68 = por %p66, %p67
    %s70 = sadd.s32 %s69, 1
    %p73 = scmp.eq.s32.totalorder %s14, 1
    %p74 = scmp.ne.s32.totalorder %s69, %s71
    %p75 = scmp.eq.s32.totalorder %s14, 0
    %p76 = por %p74, %p75
    %p77 = scmp.ne.s32.totalorder %s69, %s71
    %p78 = scmp.eq.s32.totalorder %s19, 1
    %p79 = por %p77, %p78
    %p80 = scmp.ne.s32.totalorder %s71, %s72
    %p81 = scmp.eq.s32.totalorder %s19, 0
    %p82 = por %p80, %p81
    %p83 = scmp.ne.s32.totalorder %s71, %s72
    %p84 = scmp.eq.s32.totalorder %s20, 1
    %p85 = por %p83, %p84
    %p87 = scmp.ne.s32.totalorder %s72, %s86
    %p88 = scmp.eq.s32.totalorder %s20, 0
    %p89 = por %p87, %p88
    %s91 = sadd.s32 %s90, 1
    %p94 = scmp.eq.s32.totalorder %s14, 1
    %p95 = scmp.ne.s32.totalorder %s90, %s92
    %p96 = scmp.eq.s32.totalorder %s14, 0
    %p97 = por %p95, %p96
    %p98 = scmp.ne.s32.totalorder %s90, %s92
    %p99 = scmp.eq.s32.totalorder %s19, 1
    %p100 = por %p98, %p99
    %p101 = scmp.ne.s32.totalorder %s92, %s93
    %p102 = scmp.eq.s32.totalorder %s19, 0
    %p103 = por %p101, %p102
    %p104 = scmp.ne.s32.totalorder %s92, %s93
    %p105 = scmp.eq.s32.totalorder %s20, 1
    %p106 = por %p104, %p105
    %p108 = scmp.ne.s32.totalorder %s93, %s107
    %p109 = scmp.eq.s32.totalorder %s20, 0
    %p110 = por %p108, %p109
    %s111 = ssub.s32 %s14, %s21
    %p112 = scmp.eq.s32.totalorder %s111, 0
    %s114 = sadd.s32 %s113, 1
    %s115 = scalar_select %p112, %s113, %s114
    %p118 = pneg %p112
    %p119 = scmp.eq.s32.totalorder %s14, 1
    %p120 = por %p118, %p119
    %p121 = scmp.ne.s32.totalorder %s113, %s116
    %p122 = scmp.eq.s32.totalorder %s14, 0
    %p123 = por %p121, %p122
    %p124 = scmp.ne.s32.totalorder %s113, %s116
    %p125 = scmp.eq.s32.totalorder %s19, 1
    %p126 = por %p124, %p125
    %p127 = scmp.ne.s32.totalorder %s116, %s117
    %p128 = scmp.eq.s32.totalorder %s19, 0
    %p129 = por %p127, %p128
    %p130 = scmp.ne.s32.totalorder %s116, %s117
    %p131 = scmp.eq.s32.totalorder %s20, 1
    %p132 = por %p130, %p131
    %p134 = scmp.ne.s32.totalorder %s117, %s133
    %p135 = scmp.eq.s32.totalorder %s20, 0
    %p136 = por %p134, %p135
    %s138 = sadd.s32 %s137, 1
    %p141 = scmp.eq.s32.totalorder %s14, 1
    %p142 = scmp.ne.s32.totalorder %s137, %s139
    %p143 = scmp.eq.s32.totalorder %s14, 0
    %p144 = por %p142, %p143
    %p145 = scmp.ne.s32.totalorder %s137, %s139
    %p146 = scmp.eq.s32.totalorder %s19, 1
    %p147 = por %p145, %p146
    %p148 = scmp.ne.s32.totalorder %s139, %s140
    %p149 = scmp.eq.s32.totalorder %s19, 0
    %p150 = por %p148, %p149
    %p151 = scmp.ne.s32.totalorder %s139, %s140
    %p152 = scmp.eq.s32.totalorder %s20, 1
    %p153 = por %p151, %p152
    %p155 = scmp.ne.s32.totalorder %s140, %s154
    %p156 = scmp.eq.s32.totalorder %s20, 0
    %p157 = por %p155, %p156
    %s159 = sadd.s32 %s158, 1
    %p162 = scmp.eq.s32.totalorder %s14, 1
    %p163 = scmp.ne.s32.totalorder %s158, %s160
    %p164 = scmp.eq.s32.totalorder %s14, 0
    %p165 = por %p163, %p164
    %p166 = scmp.ne.s32.totalorder %s158, %s160
    %p167 = scmp.eq.s32.totalorder %s19, 1
    %p168 = por %p166, %p167
    %p169 = scmp.ne.s32.totalorder %s160, %s161
    %p170 = scmp.eq.s32.totalorder %s19, 0
    %p171 = por %p169, %p170
    %p172 = scmp.ne.s32.totalorder %s160, %s161
    %p173 = scmp.eq.s32.totalorder %s20, 1
    %p174 = por %p172, %p173
    %p176 = scmp.ne.s32.totalorder %s161, %s175
    %p177 = scmp.eq.s32.totalorder %s20, 0
    %p178 = por %p176, %p177
    %s180 = sadd.s32 %s179, 1
    %p183 = scmp.eq.s32.totalorder %s14, 1
    %p184 = scmp.ne.s32.totalorder %s179, %s181
    %p185 = scmp.eq.s32.totalorder %s14, 0
    %p186 = por %p184, %p185
    %p187 = scmp.ne.s32.totalorder %s179, %s181
    %p188 = scmp.eq.s32.totalorder %s19, 1
    %p189 = por %p187, %p188
    %p190 = scmp.ne.s32.totalorder %s181, %s182
    %p191 = scmp.eq.s32.totalorder %s19, 0
    %p192 = por %p190, %p191
    %p193 = scmp.ne.s32.totalorder %s181, %s182
    %p194 = scmp.eq.s32.totalorder %s20, 1
    %p195 = por %p193, %p194
    %p197 = scmp.ne.s32.totalorder %s182, %s196
    %p198 = scmp.eq.s32.totalorder %s20, 0
    %p199 = por %p197, %p198
    %s200 = ssub.s32 %s14, %s21
    %p201 = scmp.eq.s32.totalorder %s200, 0
    %s203 = sadd.s32 %s202, 1
    %s204 = scalar_select %p201, %s202, %s203
    %p207 = pneg %p201
    %p208 = scmp.eq.s32.totalorder %s14, 1
    %p209 = por %p207, %p208
    %p210 = scmp.ne.s32.totalorder %s202, %s205
    %p211 = scmp.eq.s32.totalorder %s14, 0
    %p212 = por %p210, %p211
    %p213 = scmp.ne.s32.totalorder %s202, %s205
    %p214 = scmp.eq.s32.totalorder %s19, 1
    %p215 = por %p213, %p214
    %p216 = scmp.ne.s32.totalorder %s205, %s206
    %p217 = scmp.eq.s32.totalorder %s19, 0
    %p218 = por %p216, %p217
    %p219 = scmp.ne.s32.totalorder %s205, %s206
    %p220 = scmp.eq.s32.totalorder %s20, 1
    %p221 = por %p219, %p220
    %p223 = scmp.ne.s32.totalorder %s206, %s222
    %p224 = scmp.eq.s32.totalorder %s20, 0
    %p225 = por %p223, %p224
    %p226 = scmp.le.s32.totalorder 1, %s14
    %p227 = scmp.lt.s32.totalorder %s14, 3
    %p228 = pnand %p226, %p227
    %p229 = pneg %p228
    // Predicated region
    $region9: #{_lambda_.3} parent=5 // pred_check
      _
    $region10: #{_lambda_.3} parent=5 // pred_check_branch
      %231 = sbr.rel (%p228) target = $region12
    $region11: #{_lambda_.3} parent=5 // pred_region
      %s232 = ssub.s32 %s14, 1
      // Predicated region
      $region13: #{_lambda_.3} parent=11 // pred_check
        %p233 = pneg %p61
      $region14: #{_lambda_.3} parent=11 // pred_check_branch
        %235 = sbr.rel (%p233) target = $region16
      $region15: #{_lambda_.3} parent=11 // pred_region
        _
      $region16: #{_lambda_.3} parent=11 // pred_fallthru
        _
      // Predicated region
      $region17: #{_lambda_.3} parent=11 // pred_check
        %p236 = pneg %p82
      $region18: #{_lambda_.3} parent=11 // pred_check_branch
        %238 = sbr.rel (%p236) target = $region20
      $region19: #{_lambda_.3} parent=11 // pred_region
        _
      $region20: #{_lambda_.3} parent=11 // pred_fallthru
        _
      // Predicated region
      $region21: #{_lambda_.3} parent=11 // pred_check
        %p239 = pneg %p103
      $region22: #{_lambda_.3} parent=11 // pred_check_branch
        %241 = sbr.rel (%p239) target = $region24
      $region23: #{_lambda_.3} parent=11 // pred_region
        _
      $region24: #{_lambda_.3} parent=11 // pred_fallthru
        _
      // Predicated region
      $region25: #{_lambda_.3} parent=11 // pred_check
        %p242 = pneg %p150
      $region26: #{_lambda_.3} parent=11 // pred_check_branch
        %244 = sbr.rel (%p242) target = $region28
      $region27: #{_lambda_.3} parent=11 // pred_region
        _
      $region28: #{_lambda_.3} parent=11 // pred_fallthru
        _
      // Predicated region
      $region29: #{_lambda_.3} parent=11 // pred_check
        %p245 = pneg %p171
      $region30: #{_lambda_.3} parent=11 // pred_check_branch
        %247 = sbr.rel (%p245) target = $region32
      $region31: #{_lambda_.3} parent=11 // pred_region
        _
      $region32: #{_lambda_.3} parent=11 // pred_fallthru
        _
      // Predicated region
      $region33: #{_lambda_.3} parent=11 // pred_check
        %p248 = pneg %p192
      $region34: #{_lambda_.3} parent=11 // pred_check_branch
        %250 = sbr.rel (%p248) target = $region36
      $region35: #{_lambda_.3} parent=11 // pred_region
        _
      $region36: #{_lambda_.3} parent=11 // pred_fallthru
        _
    $region12: #{_lambda_.3} parent=5 // pred_fallthru
      _
    %p251 = scmp.lt.s32.totalorder %s14, 2
    // Predicated region
    $region37: #{_lambda_.3} parent=5 // pred_check
      %p252 = pneg %p251
    $region38: #{_lambda_.3} parent=5 // pred_check_branch
      %254 = sbr.rel (%p252) target = $region40
    $region39: #{_lambda_.3} parent=5 // pred_region
      // Predicated region
      $region41: #{_lambda_.3} parent=39 // pred_check
        %p255 = pneg %p34
      $region42: #{_lambda_.3} parent=39 // pred_check_branch
        %257 = sbr.rel (%p255) target = $region44
      $region43: #{_lambda_.3} parent=39 // pred_region
        %s258 = smul.u32 32, %s14
        %p259 = scmp.lt.s32.totalorder %s258, 63
        %s260 = scalar_select %p259, %s258, 63
        %s261 = smul.addr %s260, 9
        %s262 = smul.addr %s261, 4
        %s263 = scalar_lea.vmem %s0, %s262
        %s264 = smul.u32 32, %s14
      $region44: #{_lambda_.3} parent=39 // pred_fallthru
        _
      // Predicated region
      $region45: #{_lambda_.3} parent=39 // pred_check
        %p265 = pneg %p123
      $region46: #{_lambda_.3} parent=39 // pred_check_branch
        %267 = sbr.rel (%p265) target = $region48
      $region47: #{_lambda_.3} parent=39 // pred_region
        %s268 = smul.u32 32, %s14
        %p269 = scmp.lt.s32.totalorder %s268, 63
        %s270 = scalar_select %p269, %s268, 63
        %s271 = smul.addr %s270, 4
        %s272 = scalar_lea.vmem %s4, %s271
        %s273 = smul.u32 32, %s14
      $region48: #{_lambda_.3} parent=39 // pred_fallthru
        _
    $region40: #{_lambda_.3} parent=5 // pred_fallthru
      _
    %p274 = scmp.le.s32.totalorder 1, %s14
    %p275 = scmp.lt.s32.totalorder %s14, 3
    %p276 = pnand %p274, %p275
    %p277 = pneg %p276
    // Predicated region
    $region49: #{_lambda_.3} parent=5 // pred_check
      _
    $region50: #{_lambda_.3} parent=5 // pred_check_branch
      %279 = sbr.rel (%p276) target = $region52
    $region51: #{_lambda_.3} parent=5 // pred_region
      %s280 = ssub.s32 %s14, 1
      %s281 = smul.u32 32, %s19
      %p282 = scmp.lt.s32.totalorder %s281, 63
      %s283 = scalar_select %p282, %s281, 63
      %s284 = smul.addr %s283, 9
      %s285 = smul.addr %s284, 4
      %s286 = scalar_lea.vmem %s0, %s285
      %p287 = pneg %p40
      %p288 = pneg %p37
      %p289 = pneg %p61
      %p290 = pneg %p58
      %p291 = pneg %p82
      %p292 = pneg %p79
      %p293 = pneg %p103
      %p294 = pneg %p100
      %s295 = smul.u32 32, %s19
      %p296 = scmp.lt.s32.totalorder %s295, 63
      %s297 = scalar_select %p296, %s295, 63
      %s298 = smul.addr %s297, 4
      %s299 = scalar_lea.vmem %s4, %s298
      %p300 = pneg %p129
      %p301 = pneg %p126
      %p302 = pneg %p150
      %p303 = pneg %p147
      %p304 = pneg %p171
      %p305 = pneg %p168
      %p306 = pneg %p192
      %p307 = pneg %p189
      %p308 = pneg %p218
      %p309 = pneg %p215
      %s310 = smul.u32 32, %s19
      %p311 = scmp.lt.s32.totalorder %s310, 63
      %s312 = scalar_select %p311, %s310, 63
      %s313 = smul.addr %s312, 8
      %s314 = scalar_lea.vmem %s8, %s313
      %s315 = smul.u32 32, %s19
      %p316 = scmp.lt.s32.totalorder %s315, 63
      %s317 = scalar_select %p316, %s315, 63
      %s318 = smul.addr %s317, 9
      %s319 = smul.addr %s318, 4
      %s320 = scalar_lea.vmem %s0, %s319
      %s321 = smul.u32 32, %s19
      %s322 = smul.u32 32, %s19
      %p323 = scmp.lt.s32.totalorder %s322, 63
      %s324 = scalar_select %p323, %s322, 63
      %s325 = smul.addr %s324, 4
      %s326 = scalar_lea.vmem %s4, %s325
      %s327 = smul.u32 32, %s19
      %s328 = smul.u32 32, %s19
      %p329 = scmp.lt.s32.totalorder %s328, 63
      %s330 = scalar_select %p329, %s328, 63
      %s331 = smul.addr %s330, 8
      %s332 = scalar_lea.vmem %s8, %s331
      %s333 = smul.u32 32, %s19
      %v334 = vld [vmem:[%s320] sm:$0xff]
      %v335 = vld [vmem:[%s320 + $0x8] sm:$0xff]
      %v336 = vld [vmem:[%s320 + $0x10] sm:$0xff]
      %v337 = vld [vmem:[%s320 + $0x18] sm:$0xff]
      %v338 = vld [vmem:[%s320 + $0x20] sm:$0xf]
      %v339 = vld [vmem:[%s320 + $0x24] sm:$0xff]
      %v340 = vld [vmem:[%s320 + $0x2c] sm:$0xff]
      %v341 = vld [vmem:[%s320 + $0x34] sm:$0xff]
      %v342 = vld [vmem:[%s320 + $0x3c] sm:$0xff]
      %v343 = vld [vmem:[%s320 + $0x44] sm:$0xf]
      %v344 = vld [vmem:[%s320 + $0x48] sm:$0xff]
      %v345 = vld [vmem:[%s320 + $0x50] sm:$0xff]
      %v346 = vld [vmem:[%s320 + $0x58] sm:$0xff]
      %v347 = vld [vmem:[%s320 + $0x60] sm:$0xff]
      %v348 = vld [vmem:[%s320 + $0x68] sm:$0xf]
      %v349 = vld [vmem:[%s320 + $0x6c] sm:$0xff]
      %v350 = vld [vmem:[%s320 + $0x74] sm:$0xff]
      %v351 = vld [vmem:[%s320 + $0x7c] sm:$0xff]
      %v352 = vld [vmem:[%s320 + $0x84] sm:$0xff]
      %v353 = vld [vmem:[%s320 + $0x8c] sm:$0xf]
      %v354 = vld [vmem:[%s320 + $0x90] sm:$0xff]
      %v355 = vld [vmem:[%s320 + $0x98] sm:$0xff]
      %v356 = vld [vmem:[%s320 + $0xa0] sm:$0xff]
      %v357 = vld [vmem:[%s320 + $0xa8] sm:$0xff]
      %v358 = vld [vmem:[%s320 + $0xb0] sm:$0xf]
      %v359 = vld [vmem:[%s320 + $0xb4] sm:$0xff]
      %v360 = vld [vmem:[%s320 + $0xbc] sm:$0xff]
      %v361 = vld [vmem:[%s320 + $0xc4] sm:$0xff]
      %v362 = vld [vmem:[%s320 + $0xcc] sm:$0xff]
      %v363 = vld [vmem:[%s320 + $0xd4] sm:$0xf]
      %v364 = vld [vmem:[%s320 + $0xd8] sm:$0xff]
      %v365 = vld [vmem:[%s320 + $0xe0] sm:$0xff]
      %v366 = vld [vmem:[%s320 + $0xe8] sm:$0xff]
      %v367 = vld [vmem:[%s320 + $0xf0] sm:$0xff]
      %v368 = vld [vmem:[%s320 + $0xf8] sm:$0xf]
      %v369 = vld [vmem:[%s320 + $0xfc] sm:$0xff]
      %v370 = vld [vmem:[%s320 + $0x104] sm:$0xff]
      %v371 = vld [vmem:[%s320 + $0x10c] sm:$0xff]
      %v372 = vld [vmem:[%s320 + $0x114] sm:$0xff]
      %v373 = vld [vmem:[%s320 + $0x11c] sm:$0xf]
      %v374 = vld [vmem:[%s320 + $0x120] sm:$0xff]
      %v375 = vld [vmem:[%s320 + $0x128] sm:$0xff]
      %v376 = vld [vmem:[%s320 + $0x130] sm:$0xff]
      %v377 = vld [vmem:[%s320 + $0x138] sm:$0xff]
      %v378 = vld [vmem:[%s320 + $0x140] sm:$0xf]
      %v379 = vld [vmem:[%s320 + $0x144] sm:$0xff]
      %v380 = vld [vmem:[%s320 + $0x14c] sm:$0xff]
      %v381 = vld [vmem:[%s320 + $0x154] sm:$0xff]
      %v382 = vld [vmem:[%s320 + $0x15c] sm:$0xff]
      %v383 = vld [vmem:[%s320 + $0x164] sm:$0xf]
      %v384 = vld [vmem:[%s320 + $0x168] sm:$0xff]
      %v385 = vld [vmem:[%s320 + $0x170] sm:$0xff]
      %v386 = vld [vmem:[%s320 + $0x178] sm:$0xff]
      %v387 = vld [vmem:[%s320 + $0x180] sm:$0xff]
      %v388 = vld [vmem:[%s320 + $0x188] sm:$0xf]
      %v389 = vld [vmem:[%s320 + $0x18c] sm:$0xff]
      %v390 = vld [vmem:[%s320 + $0x194] sm:$0xff]
      %v391 = vld [vmem:[%s320 + $0x19c] sm:$0xff]
      %v392 = vld [vmem:[%s320 + $0x1a4] sm:$0xff]
      %v393 = vld [vmem:[%s320 + $0x1ac] sm:$0xf]
      %v394 = vld [vmem:[%s320 + $0x1b0] sm:$0xff]
      %v395 = vld [vmem:[%s320 + $0x1b8] sm:$0xff]
      %v396 = vld [vmem:[%s320 + $0x1c0] sm:$0xff]
      %v397 = vld [vmem:[%s320 + $0x1c8] sm:$0xff]
      %v398 = vld [vmem:[%s320 + $0x1d0] sm:$0xf]
      %v399 = vld [vmem:[%s320 + $0x1d4] sm:$0xff]
      %v400 = vld [vmem:[%s320 + $0x1dc] sm:$0xff]
      %v401 = vld [vmem:[%s320 + $0x1e4] sm:$0xff]
      %v402 = vld [vmem:[%s320 + $0x1ec] sm:$0xff]
      %v403 = vld [vmem:[%s320 + $0x1f4] sm:$0xf]
      %v404 = vld [vmem:[%s320 + $0x1f8] sm:$0xff]
      %v405 = vld [vmem:[%s320 + $0x200] sm:$0xff]
      %v406 = vld [vmem:[%s320 + $0x208] sm:$0xff]
      %v407 = vld [vmem:[%s320 + $0x210] sm:$0xff]
      %v408 = vld [vmem:[%s320 + $0x218] sm:$0xf]
      %v409 = vld [vmem:[%s320 + $0x21c] sm:$0xff]
      %v410 = vld [vmem:[%s320 + $0x224] sm:$0xff]
      %v411 = vld [vmem:[%s320 + $0x22c] sm:$0xff]
      %v412 = vld [vmem:[%s320 + $0x234] sm:$0xff]
      %v413 = vld [vmem:[%s320 + $0x23c] sm:$0xf]
      %v414 = vld [vmem:[%s320 + $0x240] sm:$0xff]
      %v415 = vld [vmem:[%s320 + $0x248] sm:$0xff]
      %v416 = vld [vmem:[%s320 + $0x250] sm:$0xff]
      %v417 = vld [vmem:[%s320 + $0x258] sm:$0xff]
      %v418 = vld [vmem:[%s320 + $0x260] sm:$0xf]
      %v419 = vld [vmem:[%s320 + $0x264] sm:$0xff]
      %v420 = vld [vmem:[%s320 + $0x26c] sm:$0xff]
      %v421 = vld [vmem:[%s320 + $0x274] sm:$0xff]
      %v422 = vld [vmem:[%s320 + $0x27c] sm:$0xff]
      %v423 = vld [vmem:[%s320 + $0x284] sm:$0xf]
      %v424 = vld [vmem:[%s320 + $0x288] sm:$0xff]
      %v425 = vld [vmem:[%s320 + $0x290] sm:$0xff]
      %v426 = vld [vmem:[%s320 + $0x298] sm:$0xff]
      %v427 = vld [vmem:[%s320 + $0x2a0] sm:$0xff]
      %v428 = vld [vmem:[%s320 + $0x2a8] sm:$0xf]
      %v429 = vld [vmem:[%s320 + $0x2ac] sm:$0xff]
      %v430 = vld [vmem:[%s320 + $0x2b4] sm:$0xff]
      %v431 = vld [vmem:[%s320 + $0x2bc] sm:$0xff]
      %v432 = vld [vmem:[%s320 + $0x2c4] sm:$0xff]
      %v433 = vld [vmem:[%s320 + $0x2cc] sm:$0xf]
      %v434 = vld [vmem:[%s320 + $0x2d0] sm:$0xff]
      %v435 = vld [vmem:[%s320 + $0x2d8] sm:$0xff]
      %v436 = vld [vmem:[%s320 + $0x2e0] sm:$0xff]
      %v437 = vld [vmem:[%s320 + $0x2e8] sm:$0xff]
      %v438 = vld [vmem:[%s320 + $0x2f0] sm:$0xf]
      %v439 = vld [vmem:[%s320 + $0x2f4] sm:$0xff]
      %v440 = vld [vmem:[%s320 + $0x2fc] sm:$0xff]
      %v441 = vld [vmem:[%s320 + $0x304] sm:$0xff]
      %v442 = vld [vmem:[%s320 + $0x30c] sm:$0xff]
      %v443 = vld [vmem:[%s320 + $0x314] sm:$0xf]
      %v444 = vld [vmem:[%s320 + $0x318] sm:$0xff]
      %v445 = vld [vmem:[%s320 + $0x320] sm:$0xff]
      %v446 = vld [vmem:[%s320 + $0x328] sm:$0xff]
      %v447 = vld [vmem:[%s320 + $0x330] sm:$0xff]
      %v448 = vld [vmem:[%s320 + $0x338] sm:$0xf]
      %v449 = vld [vmem:[%s320 + $0x33c] sm:$0xff]
      %v450 = vld [vmem:[%s320 + $0x344] sm:$0xff]
      %v451 = vld [vmem:[%s320 + $0x34c] sm:$0xff]
      %v452 = vld [vmem:[%s320 + $0x354] sm:$0xff]
      %v453 = vld [vmem:[%s320 + $0x35c] sm:$0xf]
      %v454 = vld [vmem:[%s320 + $0x360] sm:$0xff]
      %v455 = vld [vmem:[%s320 + $0x368] sm:$0xff]
      %v456 = vld [vmem:[%s320 + $0x370] sm:$0xff]
      %v457 = vld [vmem:[%s320 + $0x378] sm:$0xff]
      %v458 = vld [vmem:[%s320 + $0x380] sm:$0xf]
      %v459 = vld [vmem:[%s320 + $0x384] sm:$0xff]
      %v460 = vld [vmem:[%s320 + $0x38c] sm:$0xff]
      %v461 = vld [vmem:[%s320 + $0x394] sm:$0xff]
      %v462 = vld [vmem:[%s320 + $0x39c] sm:$0xff]
      %v463 = vld [vmem:[%s320 + $0x3a4] sm:$0xf]
      %v464 = vld [vmem:[%s320 + $0x3a8] sm:$0xff]
      %v465 = vld [vmem:[%s320 + $0x3b0] sm:$0xff]
      %v466 = vld [vmem:[%s320 + $0x3b8] sm:$0xff]
      %v467 = vld [vmem:[%s320 + $0x3c0] sm:$0xff]
      %v468 = vld [vmem:[%s320 + $0x3c8] sm:$0xf]
      %v469 = vld [vmem:[%s320 + $0x3cc] sm:$0xff]
      %v470 = vld [vmem:[%s320 + $0x3d4] sm:$0xff]
      %v471 = vld [vmem:[%s320 + $0x3dc] sm:$0xff]
      %v472 = vld [vmem:[%s320 + $0x3e4] sm:$0xff]
      %v473 = vld [vmem:[%s320 + $0x3ec] sm:$0xf]
      %v474 = vld [vmem:[%s320 + $0x3f0] sm:$0xff]
      %v475 = vld [vmem:[%s320 + $0x3f8] sm:$0xff]
      %v476 = vld [vmem:[%s320 + $0x400] sm:$0xff]
      %v477 = vld [vmem:[%s320 + $0x408] sm:$0xff]
      %v478 = vld [vmem:[%s320 + $0x410] sm:$0xf]
      %v479 = vld [vmem:[%s320 + $0x414] sm:$0xff]
      %v480 = vld [vmem:[%s320 + $0x41c] sm:$0xff]
      %v481 = vld [vmem:[%s320 + $0x424] sm:$0xff]
      %v482 = vld [vmem:[%s320 + $0x42c] sm:$0xff]
      %v483 = vld [vmem:[%s320 + $0x434] sm:$0xf]
      %v484 = vld [vmem:[%s320 + $0x438] sm:$0xff]
      %v485 = vld [vmem:[%s320 + $0x440] sm:$0xff]
      %v486 = vld [vmem:[%s320 + $0x448] sm:$0xff]
      %v487 = vld [vmem:[%s320 + $0x450] sm:$0xff]
      %v488 = vld [vmem:[%s320 + $0x458] sm:$0xf]
      %v489 = vld [vmem:[%s320 + $0x45c] sm:$0xff]
      %v490 = vld [vmem:[%s320 + $0x464] sm:$0xff]
      %v491 = vld [vmem:[%s320 + $0x46c] sm:$0xff]
      %v492 = vld [vmem:[%s320 + $0x474] sm:$0xff]
      %v493 = vld [vmem:[%s320 + $0x47c] sm:$0xf]
      %v494 = vld [vmem:[%s1] sm:$0xf]
      %v495 = vld [vmem:[%s1 + $0x4] sm:$0xf]
      %v496 = vld [vmem:[%s1 + $0x8] sm:$0xf]
      %v497 = vld [vmem:[%s1 + $0xc] sm:$0xf]
      %v498 = vld [vmem:[%s1 + $0x10] sm:$0xf]
      %v499 = vld [vmem:[%s1 + $0x14] sm:$0xf]
      %v500 = vld [vmem:[%s1 + $0x18] sm:$0xf]
      %v501 = vld [vmem:[%s1 + $0x1c] sm:$0xf]
      %v502 = vld [vmem:[%s1 + $0x20] sm:$0xf]
      %v503 = vld [vmem:[%s1 + $0x24] sm:$0xf]
      %v504 = vld [vmem:[%s1 + $0x28] sm:$0xf]
      %v505 = vld [vmem:[%s1 + $0x2c] sm:$0xf]
      %v506 = vld [vmem:[%s1 + $0x30] sm:$0xf]
      %v507 = vld [vmem:[%s1 + $0x34] sm:$0xf]
      %v508 = vld [vmem:[%s1 + $0x38] sm:$0xf]
      %v509 = vld [vmem:[%s1 + $0x3c] sm:$0xf]
      %v510 = vld [vmem:[%s1 + $0x40] sm:$0xf]
      %v511 = vld [vmem:[%s1 + $0x44] sm:$0xf]
      %v512 = vld [vmem:[%s1 + $0x48] sm:$0xf]
      %v513 = vld [vmem:[%s1 + $0x4c] sm:$0xf]
      %v514 = vld [vmem:[%s1 + $0x50] sm:$0xf]
      %v515 = vld [vmem:[%s1 + $0x54] sm:$0xf]
      %v516 = vld [vmem:[%s1 + $0x58] sm:$0xf]
      %v517 = vld [vmem:[%s1 + $0x5c] sm:$0xf]
      %v518 = vld [vmem:[%s1 + $0x60] sm:$0xf]
      %v519 = vld [vmem:[%s1 + $0x64] sm:$0xf]
      %v520 = vld [vmem:[%s1 + $0x68] sm:$0xf]
      %v521 = vld [vmem:[%s1 + $0x6c] sm:$0xf]
      %v522 = vld [vmem:[%s1 + $0x70] sm:$0xf]
      %v523 = vld [vmem:[%s1 + $0x74] sm:$0xf]
      %v524 = vld [vmem:[%s1 + $0x78] sm:$0xf]
      %v525 = vld [vmem:[%s1 + $0x7c] sm:$0xf]
      %v526 = vld [vmem:[%s1 + $0x80] sm:$0xf]
      %v527 = vld [vmem:[%s1 + $0x84] sm:$0xf]
      %v528 = vld [vmem:[%s1 + $0x88] sm:$0xf]
      %v529 = vld [vmem:[%s1 + $0x8c] sm:$0xf]
      %v530 = vld [vmem:[%s1 + $0x90] sm:$0xf]
      %v531 = vld [vmem:[%s1 + $0x94] sm:$0xf]
      %v532 = vld [vmem:[%s1 + $0x98] sm:$0xf]
      %v533 = vld [vmem:[%s1 + $0x9c] sm:$0xf]
      %v534 = vld [vmem:[%s1 + $0xa0] sm:$0xf]
      %v535 = vld [vmem:[%s1 + $0xa4] sm:$0xf]
      %v536 = vld [vmem:[%s1 + $0xa8] sm:$0xf]
      %v537 = vld [vmem:[%s1 + $0xac] sm:$0xf]
      %v538 = vld [vmem:[%s1 + $0xb0] sm:$0xf]
      %v539 = vld [vmem:[%s1 + $0xb4] sm:$0xf]
      %v540 = vld [vmem:[%s1 + $0xb8] sm:$0xf]
      %v541 = vld [vmem:[%s1 + $0xbc] sm:$0xf]
      %v542 = vld [vmem:[%s1 + $0xc0] sm:$0xf]
      %v543 = vld [vmem:[%s1 + $0xc4] sm:$0xf]
      %v544 = vld [vmem:[%s1 + $0xc8] sm:$0xf]
      %v545 = vld [vmem:[%s1 + $0xcc] sm:$0xf]
      %v546 = vld [vmem:[%s1 + $0xd0] sm:$0xf]
      %v547 = vld [vmem:[%s1 + $0xd4] sm:$0xf]
      %v548 = vld [vmem:[%s1 + $0xd8] sm:$0xf]
      %v549 = vld [vmem:[%s1 + $0xdc] sm:$0xf]
      %v550 = vld [vmem:[%s1 + $0xe0] sm:$0xf]
      %v551 = vld [vmem:[%s1 + $0xe4] sm:$0xf]
      %v552 = vld [vmem:[%s1 + $0xe8] sm:$0xf]
      %v553 = vld [vmem:[%s1 + $0xec] sm:$0xf]
      %v554 = vld [vmem:[%s1 + $0xf0] sm:$0xf]
      %v555 = vld [vmem:[%s1 + $0xf4] sm:$0xf]
      %v556 = vld [vmem:[%s1 + $0xf8] sm:$0xf]
      %v557 = vld [vmem:[%s1 + $0xfc] sm:$0xf]
      %v558 = vld [vmem:[%s1 + $0x100] sm:$0xf]
      %v559 = vld [vmem:[%s1 + $0x104] sm:$0xf]
      %v560 = vld [vmem:[%s1 + $0x108] sm:$0xf]
      %v561 = vld [vmem:[%s1 + $0x10c] sm:$0xf]
      %v562 = vld [vmem:[%s1 + $0x110] sm:$0xf]
      %v563 = vld [vmem:[%s1 + $0x114] sm:$0xf]
      %v564 = vld [vmem:[%s1 + $0x118] sm:$0xf]
      %v565 = vld [vmem:[%s1 + $0x11c] sm:$0xf]
      %v566 = vld [vmem:[%s1 + $0x120] sm:$0xf]
      %v567 = vld [vmem:[%s1 + $0x124] sm:$0xf]
      %v568 = vld [vmem:[%s1 + $0x128] sm:$0xf]
      %v569 = vld [vmem:[%s1 + $0x12c] sm:$0xf]
      %v570 = vld [vmem:[%s1 + $0x130] sm:$0xf]
      %v571 = vld [vmem:[%s1 + $0x134] sm:$0xf]
      %v572 = vld [vmem:[%s1 + $0x138] sm:$0xf]
      %v573 = vld [vmem:[%s1 + $0x13c] sm:$0xf]
      %v574 = vld [vmem:[%s1 + $0x140] sm:$0xf]
      %v575 = vld [vmem:[%s1 + $0x144] sm:$0xf]
      %v576 = vld [vmem:[%s1 + $0x148] sm:$0xf]
      %v577 = vld [vmem:[%s1 + $0x14c] sm:$0xf]
      %v578 = vld [vmem:[%s1 + $0x150] sm:$0xf]
      %v579 = vld [vmem:[%s1 + $0x154] sm:$0xf]
      %v580 = vld [vmem:[%s1 + $0x158] sm:$0xf]
      %v581 = vld [vmem:[%s1 + $0x15c] sm:$0xf]
      %v582 = vld [vmem:[%s1 + $0x160] sm:$0xf]
      %v583 = vld [vmem:[%s1 + $0x164] sm:$0xf]
      %v584 = vld [vmem:[%s1 + $0x168] sm:$0xf]
      %v585 = vld [vmem:[%s1 + $0x16c] sm:$0xf]
      %v586 = vld [vmem:[%s1 + $0x170] sm:$0xf]
      %v587 = vld [vmem:[%s1 + $0x174] sm:$0xf]
      %v588 = vld [vmem:[%s1 + $0x178] sm:$0xf]
      %v589 = vld [vmem:[%s1 + $0x17c] sm:$0xf]
      %v590 = vld [vmem:[%s1 + $0x180] sm:$0xf]
      %v591 = vld [vmem:[%s1 + $0x184] sm:$0xf]
      %v592 = vld [vmem:[%s1 + $0x188] sm:$0xf]
      %v593 = vld [vmem:[%s1 + $0x18c] sm:$0xf]
      %v594 = vld [vmem:[%s1 + $0x190] sm:$0xf]
      %v595 = vld [vmem:[%s1 + $0x194] sm:$0xf]
      %v596 = vld [vmem:[%s1 + $0x198] sm:$0xf]
      %v597 = vld [vmem:[%s1 + $0x19c] sm:$0xf]
      %v598 = vld [vmem:[%s1 + $0x1a0] sm:$0xf]
      %v599 = vld [vmem:[%s1 + $0x1a4] sm:$0xf]
      %v600 = vld [vmem:[%s1 + $0x1a8] sm:$0xf]
      %v601 = vld [vmem:[%s1 + $0x1ac] sm:$0xf]
      %v602 = vld [vmem:[%s1 + $0x1b0] sm:$0xf]
      %v603 = vld [vmem:[%s1 + $0x1b4] sm:$0xf]
      %v604 = vld [vmem:[%s1 + $0x1b8] sm:$0xf]
      %v605 = vld [vmem:[%s1 + $0x1bc] sm:$0xf]
      %v606 = vld [vmem:[%s1 + $0x1c0] sm:$0xf]
      %v607 = vld [vmem:[%s1 + $0x1c4] sm:$0xf]
      %v608 = vld [vmem:[%s1 + $0x1c8] sm:$0xf]
      %v609 = vld [vmem:[%s1 + $0x1cc] sm:$0xf]
      %v610 = vld [vmem:[%s1 + $0x1d0] sm:$0xf]
      %v611 = vld [vmem:[%s1 + $0x1d4] sm:$0xf]
      %v612 = vld [vmem:[%s1 + $0x1d8] sm:$0xf]
      %v613 = vld [vmem:[%s1 + $0x1dc] sm:$0xf]
      %v614 = vld [vmem:[%s1 + $0x1e0] sm:$0xf]
      %v615 = vld [vmem:[%s1 + $0x1e4] sm:$0xf]
      %v616 = vld [vmem:[%s1 + $0x1e8] sm:$0xf]
      %v617 = vld [vmem:[%s1 + $0x1ec] sm:$0xf]
      %v618 = vld [vmem:[%s1 + $0x1f0] sm:$0xf]
      %v619 = vld [vmem:[%s1 + $0x1f4] sm:$0xf]
      %v620 = vld [vmem:[%s1 + $0x1f8] sm:$0xf]
      %v621 = vld [vmem:[%s1 + $0x1fc] sm:$0xf]
      %v622 = vld [vmem:[%s1 + $0x200] sm:$0xf]
      %v623 = vld [vmem:[%s1 + $0x204] sm:$0xf]
      %v624 = vld [vmem:[%s1 + $0x208] sm:$0xf]
      %v625 = vld [vmem:[%s1 + $0x20c] sm:$0xf]
      %v626 = vld [vmem:[%s1 + $0x210] sm:$0xf]
      %v627 = vld [vmem:[%s1 + $0x214] sm:$0xf]
      %v628 = vld [vmem:[%s1 + $0x218] sm:$0xf]
      %v629 = vld [vmem:[%s1 + $0x21c] sm:$0xf]
      %v630 = vld [vmem:[%s1 + $0x220] sm:$0xf]
      %v631 = vld [vmem:[%s1 + $0x224] sm:$0xf]
      %v632 = vld [vmem:[%s1 + $0x228] sm:$0xf]
      %v633 = vld [vmem:[%s1 + $0x22c] sm:$0xf]
      %v634 = vld [vmem:[%s1 + $0x230] sm:$0xf]
      %v635 = vld [vmem:[%s1 + $0x234] sm:$0xf]
      %v636 = vld [vmem:[%s1 + $0x238] sm:$0xf]
      %v637 = vld [vmem:[%s1 + $0x23c] sm:$0xf]
      %v798 = vunpack.c.l.b16 %v334
      %v799 = vunpack.c.h.b16 %v334
      %v800 = vunpack.c.l.b16 %v335
      %v801 = vunpack.c.h.b16 %v335
      %v802 = vunpack.c.l.b16 %v336
      %v803 = vunpack.c.h.b16 %v336
      %v804 = vunpack.c.l.b16 %v337
      %v805 = vunpack.c.h.b16 %v337
      %v806 = vunpack.c.l.b16 %v338
      %v807 = vunpack.c.l.b16 %v339
      %v808 = vunpack.c.h.b16 %v339
      %v809 = vunpack.c.l.b16 %v340
      %v810 = vunpack.c.h.b16 %v340
      %v811 = vunpack.c.l.b16 %v341
      %v812 = vunpack.c.h.b16 %v341
      %v813 = vunpack.c.l.b16 %v342
      %v814 = vunpack.c.h.b16 %v342
      %v815 = vunpack.c.l.b16 %v343
      %v816 = vunpack.c.l.b16 %v344
      %v817 = vunpack.c.h.b16 %v344
      %v818 = vunpack.c.l.b16 %v345
      %v819 = vunpack.c.h.b16 %v345
      %v820 = vunpack.c.l.b16 %v346
      %v821 = vunpack.c.h.b16 %v346
      %v822 = vunpack.c.l.b16 %v347
      %v823 = vunpack.c.h.b16 %v347
      %v824 = vunpack.c.l.b16 %v348
      %v825 = vunpack.c.l.b16 %v349
      %v826 = vunpack.c.h.b16 %v349
      %v827 = vunpack.c.l.b16 %v350
      %v828 = vunpack.c.h.b16 %v350
      %v829 = vunpack.c.l.b16 %v351
      %v830 = vunpack.c.h.b16 %v351
      %v831 = vunpack.c.l.b16 %v352
      %v832 = vunpack.c.h.b16 %v352
      %v833 = vunpack.c.l.b16 %v353
      %v834 = vunpack.c.l.b16 %v354
      %v835 = vunpack.c.h.b16 %v354
      %v836 = vunpack.c.l.b16 %v355
      %v837 = vunpack.c.h.b16 %v355
      %v838 = vunpack.c.l.b16 %v356
      %v839 = vunpack.c.h.b16 %v356
      %v840 = vunpack.c.l.b16 %v357
      %v841 = vunpack.c.h.b16 %v357
      %v842 = vunpack.c.l.b16 %v358
      %v843 = vunpack.c.l.b16 %v359
      %v844 = vunpack.c.h.b16 %v359
      %v845 = vunpack.c.l.b16 %v360
      %v846 = vunpack.c.h.b16 %v360
      %v847 = vunpack.c.l.b16 %v361
      %v848 = vunpack.c.h.b16 %v361
      %v849 = vunpack.c.l.b16 %v362
      %v850 = vunpack.c.h.b16 %v362
      %v851 = vunpack.c.l.b16 %v363
      %v852 = vunpack.c.l.b16 %v364
      %v853 = vunpack.c.h.b16 %v364
      %v854 = vunpack.c.l.b16 %v365
      %v855 = vunpack.c.h.b16 %v365
      %v856 = vunpack.c.l.b16 %v366
      %v857 = vunpack.c.h.b16 %v366
      %v858 = vunpack.c.l.b16 %v367
      %v859 = vunpack.c.h.b16 %v367
      %v860 = vunpack.c.l.b16 %v368
      %v861 = vunpack.c.l.b16 %v369
      %v862 = vunpack.c.h.b16 %v369
      %v863 = vunpack.c.l.b16 %v370
      %v864 = vunpack.c.h.b16 %v370
      %v865 = vunpack.c.l.b16 %v371
      %v866 = vunpack.c.h.b16 %v371
      %v867 = vunpack.c.l.b16 %v372
      %v868 = vunpack.c.h.b16 %v372
      %v869 = vunpack.c.l.b16 %v373
      %v870 = vunpack.c.l.b16 %v374
      %v871 = vunpack.c.h.b16 %v374
      %v872 = vunpack.c.l.b16 %v375
      %v873 = vunpack.c.h.b16 %v375
      %v874 = vunpack.c.l.b16 %v376
      %v875 = vunpack.c.h.b16 %v376
      %v876 = vunpack.c.l.b16 %v377
      %v877 = vunpack.c.h.b16 %v377
      %v878 = vunpack.c.l.b16 %v378
      %v879 = vunpack.c.l.b16 %v379
      %v880 = vunpack.c.h.b16 %v379
      %v881 = vunpack.c.l.b16 %v380
      %v882 = vunpack.c.h.b16 %v380
      %v883 = vunpack.c.l.b16 %v381
      %v884 = vunpack.c.h.b16 %v381
      %v885 = vunpack.c.l.b16 %v382
      %v886 = vunpack.c.h.b16 %v382
      %v887 = vunpack.c.l.b16 %v383
      %v888 = vunpack.c.l.b16 %v384
      %v889 = vunpack.c.h.b16 %v384
      %v890 = vunpack.c.l.b16 %v385
      %v891 = vunpack.c.h.b16 %v385
      %v892 = vunpack.c.l.b16 %v386
      %v893 = vunpack.c.h.b16 %v386
      %v894 = vunpack.c.l.b16 %v387
      %v895 = vunpack.c.h.b16 %v387
      %v896 = vunpack.c.l.b16 %v388
      %v897 = vunpack.c.l.b16 %v389
      %v898 = vunpack.c.h.b16 %v389
      %v899 = vunpack.c.l.b16 %v390
      %v900 = vunpack.c.h.b16 %v390
      %v901 = vunpack.c.l.b16 %v391
      %v902 = vunpack.c.h.b16 %v391
      %v903 = vunpack.c.l.b16 %v392
      %v904 = vunpack.c.h.b16 %v392
      %v905 = vunpack.c.l.b16 %v393
      %v906 = vunpack.c.l.b16 %v394
      %v907 = vunpack.c.h.b16 %v394
      %v908 = vunpack.c.l.b16 %v395
      %v909 = vunpack.c.h.b16 %v395
      %v910 = vunpack.c.l.b16 %v396
      %v911 = vunpack.c.h.b16 %v396
      %v912 = vunpack.c.l.b16 %v397
      %v913 = vunpack.c.h.b16 %v397
      %v914 = vunpack.c.l.b16 %v398
      %v915 = vunpack.c.l.b16 %v399
      %v916 = vunpack.c.h.b16 %v399
      %v917 = vunpack.c.l.b16 %v400
      %v918 = vunpack.c.h.b16 %v400
      %v919 = vunpack.c.l.b16 %v401
      %v920 = vunpack.c.h.b16 %v401
      %v921 = vunpack.c.l.b16 %v402
      %v922 = vunpack.c.h.b16 %v402
      %v923 = vunpack.c.l.b16 %v403
      %v924 = vunpack.c.l.b16 %v404
      %v925 = vunpack.c.h.b16 %v404
      %v926 = vunpack.c.l.b16 %v405
      %v927 = vunpack.c.h.b16 %v405
      %v928 = vunpack.c.l.b16 %v406
      %v929 = vunpack.c.h.b16 %v406
      %v930 = vunpack.c.l.b16 %v407
      %v931 = vunpack.c.h.b16 %v407
      %v932 = vunpack.c.l.b16 %v408
      %v933 = vunpack.c.l.b16 %v409
      %v934 = vunpack.c.h.b16 %v409
      %v935 = vunpack.c.l.b16 %v410
      %v936 = vunpack.c.h.b16 %v410
      %v937 = vunpack.c.l.b16 %v411
      %v938 = vunpack.c.h.b16 %v411
      %v939 = vunpack.c.l.b16 %v412
      %v940 = vunpack.c.h.b16 %v412
      %v941 = vunpack.c.l.b16 %v413
      %v942 = vunpack.c.l.b16 %v414
      %v943 = vunpack.c.h.b16 %v414
      %v944 = vunpack.c.l.b16 %v415
      %v945 = vunpack.c.h.b16 %v415
      %v946 = vunpack.c.l.b16 %v416
      %v947 = vunpack.c.h.b16 %v416
      %v948 = vunpack.c.l.b16 %v417
      %v949 = vunpack.c.h.b16 %v417
      %v950 = vunpack.c.l.b16 %v418
      %v951 = vunpack.c.l.b16 %v419
      %v952 = vunpack.c.h.b16 %v419
      %v953 = vunpack.c.l.b16 %v420
      %v954 = vunpack.c.h.b16 %v420
      %v955 = vunpack.c.l.b16 %v421
      %v956 = vunpack.c.h.b16 %v421
      %v957 = vunpack.c.l.b16 %v422
      %v958 = vunpack.c.h.b16 %v422
      %v959 = vunpack.c.l.b16 %v423
      %v960 = vunpack.c.l.b16 %v424
      %v961 = vunpack.c.h.b16 %v424
      %v962 = vunpack.c.l.b16 %v425
      %v963 = vunpack.c.h.b16 %v425
      %v964 = vunpack.c.l.b16 %v426
      %v965 = vunpack.c.h.b16 %v426
      %v966 = vunpack.c.l.b16 %v427
      %v967 = vunpack.c.h.b16 %v427
      %v968 = vunpack.c.l.b16 %v428
      %v969 = vunpack.c.l.b16 %v429
      %v970 = vunpack.c.h.b16 %v429
      %v971 = vunpack.c.l.b16 %v430
      %v972 = vunpack.c.h.b16 %v430
      %v973 = vunpack.c.l.b16 %v431
      %v974 = vunpack.c.h.b16 %v431
      %v975 = vunpack.c.l.b16 %v432
      %v976 = vunpack.c.h.b16 %v432
      %v977 = vunpack.c.l.b16 %v433
      %v978 = vunpack.c.l.b16 %v434
      %v979 = vunpack.c.h.b16 %v434
      %v980 = vunpack.c.l.b16 %v435
      %v981 = vunpack.c.h.b16 %v435
      %v982 = vunpack.c.l.b16 %v436
      %v983 = vunpack.c.h.b16 %v436
      %v984 = vunpack.c.l.b16 %v437
      %v985 = vunpack.c.h.b16 %v437
      %v986 = vunpack.c.l.b16 %v438
      %v987 = vunpack.c.l.b16 %v439
      %v988 = vunpack.c.h.b16 %v439
      %v989 = vunpack.c.l.b16 %v440
      %v990 = vunpack.c.h.b16 %v440
      %v991 = vunpack.c.l.b16 %v441
      %v992 = vunpack.c.h.b16 %v441
      %v993 = vunpack.c.l.b16 %v442
      %v994 = vunpack.c.h.b16 %v442
      %v995 = vunpack.c.l.b16 %v443
      %v996 = vunpack.c.l.b16 %v444
      %v997 = vunpack.c.h.b16 %v444
      %v998 = vunpack.c.l.b16 %v445
      %v999 = vunpack.c.h.b16 %v445
      %v1000 = vunpack.c.l.b16 %v446
      %v1001 = vunpack.c.h.b16 %v446
      %v1002 = vunpack.c.l.b16 %v447
      %v1003 = vunpack.c.h.b16 %v447
      %v1004 = vunpack.c.l.b16 %v448
      %v1005 = vunpack.c.l.b16 %v449
      %v1006 = vunpack.c.h.b16 %v449
      %v1007 = vunpack.c.l.b16 %v450
      %v1008 = vunpack.c.h.b16 %v450
      %v1009 = vunpack.c.l.b16 %v451
      %v1010 = vunpack.c.h.b16 %v451
      %v1011 = vunpack.c.l.b16 %v452
      %v1012 = vunpack.c.h.b16 %v452
      %v1013 = vunpack.c.l.b16 %v453
      %v1014 = vunpack.c.l.b16 %v454
      %v1015 = vunpack.c.h.b16 %v454
      %v1016 = vunpack.c.l.b16 %v455
      %v1017 = vunpack.c.h.b16 %v455
      %v1018 = vunpack.c.l.b16 %v456
      %v1019 = vunpack.c.h.b16 %v456
      %v1020 = vunpack.c.l.b16 %v457
      %v1021 = vunpack.c.h.b16 %v457
      %v1022 = vunpack.c.l.b16 %v458
      %v1023 = vunpack.c.l.b16 %v459
      %v1024 = vunpack.c.h.b16 %v459
      %v1025 = vunpack.c.l.b16 %v460
      %v1026 = vunpack.c.h.b16 %v460
      %v1027 = vunpack.c.l.b16 %v461
      %v1028 = vunpack.c.h.b16 %v461
      %v1029 = vunpack.c.l.b16 %v462
      %v1030 = vunpack.c.h.b16 %v462
      %v1031 = vunpack.c.l.b16 %v463
      %v1032 = vunpack.c.l.b16 %v464
      %v1033 = vunpack.c.h.b16 %v464
      %v1034 = vunpack.c.l.b16 %v465
      %v1035 = vunpack.c.h.b16 %v465
      %v1036 = vunpack.c.l.b16 %v466
      %v1037 = vunpack.c.h.b16 %v466
      %v1038 = vunpack.c.l.b16 %v467
      %v1039 = vunpack.c.h.b16 %v467
      %v1040 = vunpack.c.l.b16 %v468
      %v1041 = vunpack.c.l.b16 %v469
      %v1042 = vunpack.c.h.b16 %v469
      %v1043 = vunpack.c.l.b16 %v470
      %v1044 = vunpack.c.h.b16 %v470
      %v1045 = vunpack.c.l.b16 %v471
      %v1046 = vunpack.c.h.b16 %v471
      %v1047 = vunpack.c.l.b16 %v472
      %v1048 = vunpack.c.h.b16 %v472
      %v1049 = vunpack.c.l.b16 %v473
      %v1050 = vunpack.c.l.b16 %v474
      %v1051 = vunpack.c.h.b16 %v474
      %v1052 = vunpack.c.l.b16 %v475
      %v1053 = vunpack.c.h.b16 %v475
      %v1054 = vunpack.c.l.b16 %v476
      %v1055 = vunpack.c.h.b16 %v476
      %v1056 = vunpack.c.l.b16 %v477
      %v1057 = vunpack.c.h.b16 %v477
      %v1058 = vunpack.c.l.b16 %v478
      %v1059 = vunpack.c.l.b16 %v479
      %v1060 = vunpack.c.h.b16 %v479
      %v1061 = vunpack.c.l.b16 %v480
      %v1062 = vunpack.c.h.b16 %v480
      %v1063 = vunpack.c.l.b16 %v481
      %v1064 = vunpack.c.h.b16 %v481
      %v1065 = vunpack.c.l.b16 %v482
      %v1066 = vunpack.c.h.b16 %v482
      %v1067 = vunpack.c.l.b16 %v483
      %v1068 = vunpack.c.l.b16 %v484
      %v1069 = vunpack.c.h.b16 %v484
      %v1070 = vunpack.c.l.b16 %v485
      %v1071 = vunpack.c.h.b16 %v485
      %v1072 = vunpack.c.l.b16 %v486
      %v1073 = vunpack.c.h.b16 %v486
      %v1074 = vunpack.c.l.b16 %v487
      %v1075 = vunpack.c.h.b16 %v487
      %v1076 = vunpack.c.l.b16 %v488
      %v1077 = vunpack.c.l.b16 %v489
      %v1078 = vunpack.c.h.b16 %v489
      %v1079 = vunpack.c.l.b16 %v490
      %v1080 = vunpack.c.h.b16 %v490
      %v1081 = vunpack.c.l.b16 %v491
      %v1082 = vunpack.c.h.b16 %v491
      %v1083 = vunpack.c.l.b16 %v492
      %v1084 = vunpack.c.h.b16 %v492
      %v1085 = vunpack.c.l.b16 %v493
      %v1086 = vpack.c.b16 %v807, %v798
      %v1087 = vpack.c.b16 %v808, %v799
      %v1088 = vpack.c.b16 %v809, %v800
      %v1089 = vpack.c.b16 %v810, %v801
      %v1090 = vpack.c.b16 %v811, %v802
      %v1091 = vpack.c.b16 %v812, %v803
      %v1092 = vpack.c.b16 %v813, %v804
      %v1093 = vpack.c.b16 %v814, %v805
      %v1094 = vpack.c.b16 %v815, %v806
      %v1095 = vpack.c.b16 %v825, %v816
      %v1096 = vpack.c.b16 %v826, %v817
      %v1097 = vpack.c.b16 %v827, %v818
      %v1098 = vpack.c.b16 %v828, %v819
      %v1099 = vpack.c.b16 %v829, %v820
      %v1100 = vpack.c.b16 %v830, %v821
      %v1101 = vpack.c.b16 %v831, %v822
      %v1102 = vpack.c.b16 %v832, %v823
      %v1103 = vpack.c.b16 %v833, %v824
      %v1104 = vpack.c.b16 %v843, %v834
      %v1105 = vpack.c.b16 %v844, %v835
      %v1106 = vpack.c.b16 %v845, %v836
      %v1107 = vpack.c.b16 %v846, %v837
      %v1108 = vpack.c.b16 %v847, %v838
      %v1109 = vpack.c.b16 %v848, %v839
      %v1110 = vpack.c.b16 %v849, %v840
      %v1111 = vpack.c.b16 %v850, %v841
      %v1112 = vpack.c.b16 %v851, %v842
      %v1113 = vpack.c.b16 %v861, %v852
      %v1114 = vpack.c.b16 %v862, %v853
      %v1115 = vpack.c.b16 %v863, %v854
      %v1116 = vpack.c.b16 %v864, %v855
      %v1117 = vpack.c.b16 %v865, %v856
      %v1118 = vpack.c.b16 %v866, %v857
      %v1119 = vpack.c.b16 %v867, %v858
      %v1120 = vpack.c.b16 %v868, %v859
      %v1121 = vpack.c.b16 %v869, %v860
      %v1122 = vpack.c.b16 %v879, %v870
      %v1123 = vpack.c.b16 %v880, %v871
      %v1124 = vpack.c.b16 %v881, %v872
      %v1125 = vpack.c.b16 %v882, %v873
      %v1126 = vpack.c.b16 %v883, %v874
      %v1127 = vpack.c.b16 %v884, %v875
      %v1128 = vpack.c.b16 %v885, %v876
      %v1129 = vpack.c.b16 %v886, %v877
      %v1130 = vpack.c.b16 %v887, %v878
      %v1131 = vpack.c.b16 %v897, %v888
      %v1132 = vpack.c.b16 %v898, %v889
      %v1133 = vpack.c.b16 %v899, %v890
      %v1134 = vpack.c.b16 %v900, %v891
      %v1135 = vpack.c.b16 %v901, %v892
      %v1136 = vpack.c.b16 %v902, %v893
      %v1137 = vpack.c.b16 %v903, %v894
      %v1138 = vpack.c.b16 %v904, %v895
      %v1139 = vpack.c.b16 %v905, %v896
      %v1140 = vpack.c.b16 %v915, %v906
      %v1141 = vpack.c.b16 %v916, %v907
      %v1142 = vpack.c.b16 %v917, %v908
      %v1143 = vpack.c.b16 %v918, %v909
      %v1144 = vpack.c.b16 %v919, %v910
      %v1145 = vpack.c.b16 %v920, %v911
      %v1146 = vpack.c.b16 %v921, %v912
      %v1147 = vpack.c.b16 %v922, %v913
      %v1148 = vpack.c.b16 %v923, %v914
      %v1149 = vpack.c.b16 %v933, %v924
      %v1150 = vpack.c.b16 %v934, %v925
      %v1151 = vpack.c.b16 %v935, %v926
      %v1152 = vpack.c.b16 %v936, %v927
      %v1153 = vpack.c.b16 %v937, %v928
      %v1154 = vpack.c.b16 %v938, %v929
      %v1155 = vpack.c.b16 %v939, %v930
      %v1156 = vpack.c.b16 %v940, %v931
      %v1157 = vpack.c.b16 %v941, %v932
      %v1158 = vpack.c.b16 %v951, %v942
      %v1159 = vpack.c.b16 %v952, %v943
      %v1160 = vpack.c.b16 %v953, %v944
      %v1161 = vpack.c.b16 %v954, %v945
      %v1162 = vpack.c.b16 %v955, %v946
      %v1163 = vpack.c.b16 %v956, %v947
      %v1164 = vpack.c.b16 %v957, %v948
      %v1165 = vpack.c.b16 %v958, %v949
      %v1166 = vpack.c.b16 %v959, %v950
      %v1167 = vpack.c.b16 %v969, %v960
      %v1168 = vpack.c.b16 %v970, %v961
      %v1169 = vpack.c.b16 %v971, %v962
      %v1170 = vpack.c.b16 %v972, %v963
      %v1171 = vpack.c.b16 %v973, %v964
      %v1172 = vpack.c.b16 %v974, %v965
      %v1173 = vpack.c.b16 %v975, %v966
      %v1174 = vpack.c.b16 %v976, %v967
      %v1175 = vpack.c.b16 %v977, %v968
      %v1176 = vpack.c.b16 %v987, %v978
      %v1177 = vpack.c.b16 %v988, %v979
      %v1178 = vpack.c.b16 %v989, %v980
      %v1179 = vpack.c.b16 %v990, %v981
      %v1180 = vpack.c.b16 %v991, %v982
      %v1181 = vpack.c.b16 %v992, %v983
      %v1182 = vpack.c.b16 %v993, %v984
      %v1183 = vpack.c.b16 %v994, %v985
      %v1184 = vpack.c.b16 %v995, %v986
      %v1185 = vpack.c.b16 %v1005, %v996
      %v1186 = vpack.c.b16 %v1006, %v997
      %v1187 = vpack.c.b16 %v1007, %v998
      %v1188 = vpack.c.b16 %v1008, %v999
      %v1189 = vpack.c.b16 %v1009, %v1000
      %v1190 = vpack.c.b16 %v1010, %v1001
      %v1191 = vpack.c.b16 %v1011, %v1002
      %v1192 = vpack.c.b16 %v1012, %v1003
      %v1193 = vpack.c.b16 %v1013, %v1004
      %v1194 = vpack.c.b16 %v1023, %v1014
      %v1195 = vpack.c.b16 %v1024, %v1015
      %v1196 = vpack.c.b16 %v1025, %v1016
      %v1197 = vpack.c.b16 %v1026, %v1017
      %v1198 = vpack.c.b16 %v1027, %v1018
      %v1199 = vpack.c.b16 %v1028, %v1019
      %v1200 = vpack.c.b16 %v1029, %v1020
      %v1201 = vpack.c.b16 %v1030, %v1021
      %v1202 = vpack.c.b16 %v1031, %v1022
      %v1203 = vpack.c.b16 %v1041, %v1032
      %v1204 = vpack.c.b16 %v1042, %v1033
      %v1205 = vpack.c.b16 %v1043, %v1034
      %v1206 = vpack.c.b16 %v1044, %v1035
      %v1207 = vpack.c.b16 %v1045, %v1036
      %v1208 = vpack.c.b16 %v1046, %v1037
      %v1209 = vpack.c.b16 %v1047, %v1038
      %v1210 = vpack.c.b16 %v1048, %v1039
      %v1211 = vpack.c.b16 %v1049, %v1040
      %v1212 = vpack.c.b16 %v1059, %v1050
      %v1213 = vpack.c.b16 %v1060, %v1051
      %v1214 = vpack.c.b16 %v1061, %v1052
      %v1215 = vpack.c.b16 %v1062, %v1053
      %v1216 = vpack.c.b16 %v1063, %v1054
      %v1217 = vpack.c.b16 %v1064, %v1055
      %v1218 = vpack.c.b16 %v1065, %v1056
      %v1219 = vpack.c.b16 %v1066, %v1057
      %v1220 = vpack.c.b16 %v1067, %v1058
      %v1221 = vpack.c.b16 %v1077, %v1068
      %v1222 = vpack.c.b16 %v1078, %v1069
      %v1223 = vpack.c.b16 %v1079, %v1070
      %v1224 = vpack.c.b16 %v1080, %v1071
      %v1225 = vpack.c.b16 %v1081, %v1072
      %v1226 = vpack.c.b16 %v1082, %v1073
      %v1227 = vpack.c.b16 %v1083, %v1074
      %v1228 = vpack.c.b16 %v1084, %v1075
      %v1229 = vpack.c.b16 %v1085, %v1076
      %v1518 = vunpack.c.l.b16 %v494
      %v1519 = vunpack.c.l.b16 %v495
      %v1520 = vunpack.c.l.b16 %v496
      %v1521 = vunpack.c.l.b16 %v497
      %v1522 = vunpack.c.l.b16 %v498
      %v1523 = vunpack.c.l.b16 %v499
      %v1524 = vunpack.c.l.b16 %v500
      %v1525 = vunpack.c.l.b16 %v501
      %v1526 = vunpack.c.l.b16 %v502
      %v1527 = vunpack.c.l.b16 %v503
      %v1528 = vunpack.c.l.b16 %v504
      %v1529 = vunpack.c.l.b16 %v505
      %v1530 = vunpack.c.l.b16 %v506
      %v1531 = vunpack.c.l.b16 %v507
      %v1532 = vunpack.c.l.b16 %v508
      %v1533 = vunpack.c.l.b16 %v509
      %v1534 = vunpack.c.l.b16 %v510
      %v1535 = vunpack.c.l.b16 %v511
      %v1536 = vunpack.c.l.b16 %v512
      %v1537 = vunpack.c.l.b16 %v513
      %v1538 = vunpack.c.l.b16 %v514
      %v1539 = vunpack.c.l.b16 %v515
      %v1540 = vunpack.c.l.b16 %v516
      %v1541 = vunpack.c.l.b16 %v517
      %v1542 = vunpack.c.l.b16 %v518
      %v1543 = vunpack.c.l.b16 %v519
      %v1544 = vunpack.c.l.b16 %v520
      %v1545 = vunpack.c.l.b16 %v521
      %v1546 = vunpack.c.l.b16 %v522
      %v1547 = vunpack.c.l.b16 %v523
      %v1548 = vunpack.c.l.b16 %v524
      %v1549 = vunpack.c.l.b16 %v525
      %v1550 = vunpack.c.l.b16 %v526
      %v1551 = vunpack.c.l.b16 %v527
      %v1552 = vunpack.c.l.b16 %v528
      %v1553 = vunpack.c.l.b16 %v529
      %v1554 = vunpack.c.l.b16 %v530
      %v1555 = vunpack.c.l.b16 %v531
      %v1556 = vunpack.c.l.b16 %v532
      %v1557 = vunpack.c.l.b16 %v533
      %v1558 = vunpack.c.l.b16 %v534
      %v1559 = vunpack.c.l.b16 %v535
      %v1560 = vunpack.c.l.b16 %v536
      %v1561 = vunpack.c.l.b16 %v537
      %v1562 = vunpack.c.l.b16 %v538
      %v1563 = vunpack.c.l.b16 %v539
      %v1564 = vunpack.c.l.b16 %v540
      %v1565 = vunpack.c.l.b16 %v541
      %v1566 = vunpack.c.l.b16 %v542
      %v1567 = vunpack.c.l.b16 %v543
      %v1568 = vunpack.c.l.b16 %v544
      %v1569 = vunpack.c.l.b16 %v545
      %v1570 = vunpack.c.l.b16 %v546
      %v1571 = vunpack.c.l.b16 %v547
      %v1572 = vunpack.c.l.b16 %v548
      %v1573 = vunpack.c.l.b16 %v549
      %v1574 = vunpack.c.l.b16 %v550
      %v1575 = vunpack.c.l.b16 %v551
      %v1576 = vunpack.c.l.b16 %v552
      %v1577 = vunpack.c.l.b16 %v553
      %v1578 = vunpack.c.l.b16 %v554
      %v1579 = vunpack.c.l.b16 %v555
      %v1580 = vunpack.c.l.b16 %v556
      %v1581 = vunpack.c.l.b16 %v557
      %v1582 = vunpack.c.l.b16 %v558
      %v1583 = vunpack.c.l.b16 %v559
      %v1584 = vunpack.c.l.b16 %v560
      %v1585 = vunpack.c.l.b16 %v561
      %v1586 = vunpack.c.l.b16 %v562
      %v1587 = vunpack.c.l.b16 %v563
      %v1588 = vunpack.c.l.b16 %v564
      %v1589 = vunpack.c.l.b16 %v565
      %v1590 = vunpack.c.l.b16 %v566
      %v1591 = vunpack.c.l.b16 %v567
      %v1592 = vunpack.c.l.b16 %v568
      %v1593 = vunpack.c.l.b16 %v569
      %v1594 = vunpack.c.l.b16 %v570
      %v1595 = vunpack.c.l.b16 %v571
      %v1596 = vunpack.c.l.b16 %v572
      %v1597 = vunpack.c.l.b16 %v573
      %v1598 = vunpack.c.l.b16 %v574
      %v1599 = vunpack.c.l.b16 %v575
      %v1600 = vunpack.c.l.b16 %v576
      %v1601 = vunpack.c.l.b16 %v577
      %v1602 = vunpack.c.l.b16 %v578
      %v1603 = vunpack.c.l.b16 %v579
      %v1604 = vunpack.c.l.b16 %v580
      %v1605 = vunpack.c.l.b16 %v581
      %v1606 = vunpack.c.l.b16 %v582
      %v1607 = vunpack.c.l.b16 %v583
      %v1608 = vunpack.c.l.b16 %v584
      %v1609 = vunpack.c.l.b16 %v585
      %v1610 = vunpack.c.l.b16 %v586
      %v1611 = vunpack.c.l.b16 %v587
      %v1612 = vunpack.c.l.b16 %v588
      %v1613 = vunpack.c.l.b16 %v589
      %v1614 = vunpack.c.l.b16 %v590
      %v1615 = vunpack.c.l.b16 %v591
      %v1616 = vunpack.c.l.b16 %v592
      %v1617 = vunpack.c.l.b16 %v593
      %v1618 = vunpack.c.l.b16 %v594
      %v1619 = vunpack.c.l.b16 %v595
      %v1620 = vunpack.c.l.b16 %v596
      %v1621 = vunpack.c.l.b16 %v597
      %v1622 = vunpack.c.l.b16 %v598
      %v1623 = vunpack.c.l.b16 %v599
      %v1624 = vunpack.c.l.b16 %v600
      %v1625 = vunpack.c.l.b16 %v601
      %v1626 = vunpack.c.l.b16 %v602
      %v1627 = vunpack.c.l.b16 %v603
      %v1628 = vunpack.c.l.b16 %v604
      %v1629 = vunpack.c.l.b16 %v605
      %v1630 = vunpack.c.l.b16 %v606
      %v1631 = vunpack.c.l.b16 %v607
      %v1632 = vunpack.c.l.b16 %v608
      %v1633 = vunpack.c.l.b16 %v609
      %v1634 = vunpack.c.l.b16 %v610
      %v1635 = vunpack.c.l.b16 %v611
      %v1636 = vunpack.c.l.b16 %v612
      %v1637 = vunpack.c.l.b16 %v613
      %v1638 = vunpack.c.l.b16 %v614
      %v1639 = vunpack.c.l.b16 %v615
      %v1640 = vunpack.c.l.b16 %v616
      %v1641 = vunpack.c.l.b16 %v617
      %v1642 = vunpack.c.l.b16 %v618
      %v1643 = vunpack.c.l.b16 %v619
      %v1644 = vunpack.c.l.b16 %v620
      %v1645 = vunpack.c.l.b16 %v621
      %v1646 = vunpack.c.l.b16 %v622
      %v1647 = vunpack.c.l.b16 %v623
      %v1648 = vunpack.c.l.b16 %v624
      %v1649 = vunpack.c.l.b16 %v625
      %v1650 = vunpack.c.l.b16 %v626
      %v1651 = vunpack.c.l.b16 %v627
      %v1652 = vunpack.c.l.b16 %v628
      %v1653 = vunpack.c.l.b16 %v629
      %v1654 = vunpack.c.l.b16 %v630
      %v1655 = vunpack.c.l.b16 %v631
      %v1656 = vunpack.c.l.b16 %v632
      %v1657 = vunpack.c.l.b16 %v633
      %v1658 = vunpack.c.l.b16 %v634
      %v1659 = vunpack.c.l.b16 %v635
      %v1660 = vunpack.c.l.b16 %v636
      %v1661 = vunpack.c.l.b16 %v637
      %v1662 = vpack.c.b16 %v1519, %v1518
      %v1663 = vpack.c.b16 %v1521, %v1520
      %v1664 = vpack.c.b16 %v1523, %v1522
      %v1665 = vpack.c.b16 %v1525, %v1524
      %v1666 = vpack.c.b16 %v1527, %v1526
      %v1667 = vpack.c.b16 %v1529, %v1528
      %v1668 = vpack.c.b16 %v1531, %v1530
      %v1669 = vpack.c.b16 %v1533, %v1532
      %v1670 = vpack.c.b16 %v1535, %v1534
      %v1671 = vpack.c.b16 %v1537, %v1536
      %v1672 = vpack.c.b16 %v1539, %v1538
      %v1673 = vpack.c.b16 %v1541, %v1540
      %v1674 = vpack.c.b16 %v1543, %v1542
      %v1675 = vpack.c.b16 %v1545, %v1544
      %v1676 = vpack.c.b16 %v1547, %v1546
      %v1677 = vpack.c.b16 %v1549, %v1548
      %v1678 = vpack.c.b16 %v1551, %v1550
      %v1679 = vpack.c.b16 %v1553, %v1552
      %v1680 = vpack.c.b16 %v1555, %v1554
      %v1681 = vpack.c.b16 %v1557, %v1556
      %v1682 = vpack.c.b16 %v1559, %v1558
      %v1683 = vpack.c.b16 %v1561, %v1560
      %v1684 = vpack.c.b16 %v1563, %v1562
      %v1685 = vpack.c.b16 %v1565, %v1564
      %v1686 = vpack.c.b16 %v1567, %v1566
      %v1687 = vpack.c.b16 %v1569, %v1568
      %v1688 = vpack.c.b16 %v1571, %v1570
      %v1689 = vpack.c.b16 %v1573, %v1572
      %v1690 = vpack.c.b16 %v1575, %v1574
      %v1691 = vpack.c.b16 %v1577, %v1576
      %v1692 = vpack.c.b16 %v1579, %v1578
      %v1693 = vpack.c.b16 %v1581, %v1580
      %v1694 = vpack.c.b16 %v1583, %v1582
      %v1695 = vpack.c.b16 %v1585, %v1584
      %v1696 = vpack.c.b16 %v1587, %v1586
      %v1697 = vpack.c.b16 %v1589, %v1588
      %v1698 = vpack.c.b16 %v1591, %v1590
      %v1699 = vpack.c.b16 %v1593, %v1592
      %v1700 = vpack.c.b16 %v1595, %v1594
      %v1701 = vpack.c.b16 %v1597, %v1596
      %v1702 = vpack.c.b16 %v1599, %v1598
      %v1703 = vpack.c.b16 %v1601, %v1600
      %v1704 = vpack.c.b16 %v1603, %v1602
      %v1705 = vpack.c.b16 %v1605, %v1604
      %v1706 = vpack.c.b16 %v1607, %v1606
      %v1707 = vpack.c.b16 %v1609, %v1608
      %v1708 = vpack.c.b16 %v1611, %v1610
      %v1709 = vpack.c.b16 %v1613, %v1612
      %v1710 = vpack.c.b16 %v1615, %v1614
      %v1711 = vpack.c.b16 %v1617, %v1616
      %v1712 = vpack.c.b16 %v1619, %v1618
      %v1713 = vpack.c.b16 %v1621, %v1620
      %v1714 = vpack.c.b16 %v1623, %v1622
      %v1715 = vpack.c.b16 %v1625, %v1624
      %v1716 = vpack.c.b16 %v1627, %v1626
      %v1717 = vpack.c.b16 %v1629, %v1628
      %v1718 = vpack.c.b16 %v1631, %v1630
      %v1719 = vpack.c.b16 %v1633, %v1632
      %v1720 = vpack.c.b16 %v1635, %v1634
      %v1721 = vpack.c.b16 %v1637, %v1636
      %v1722 = vpack.c.b16 %v1639, %v1638
      %v1723 = vpack.c.b16 %v1641, %v1640
      %v1724 = vpack.c.b16 %v1643, %v1642
      %v1725 = vpack.c.b16 %v1645, %v1644
      %v1726 = vpack.c.b16 %v1647, %v1646
      %v1727 = vpack.c.b16 %v1649, %v1648
      %v1728 = vpack.c.b16 %v1651, %v1650
      %v1729 = vpack.c.b16 %v1653, %v1652
      %v1730 = vpack.c.b16 %v1655, %v1654
      %v1731 = vpack.c.b16 %v1657, %v1656
      %v1732 = vpack.c.b16 %v1659, %v1658
      %v1733 = vpack.c.b16 %v1661, %v1660
      %1806 = vmatpush.bf16.msra.mxu0 %v1669
      %1807 = vmatpush.bf16.msra.mxu0 %v1668
      %1808 = vmatpush.bf16.msra.mxu0 %v1667
      %1809 = vmatpush.bf16.msra.mxu0 %v1666
      %1810 = vmatpush.bf16.msra.mxu0 %v1665
      %1811 = vmatpush.bf16.msra.mxu0 %v1664
      %1812 = vmatpush.bf16.msra.mxu0 %v1663
      %1813 = vmatpush.bf16.msra.mxu0 %v1662
      %1814 = vmatmul.bf16.gmra.mxu0 %v1086
      %v1815 = vpop.f32.mrf.mxu0
      %v1816 = vadd.f32 0.0, %v1815
      %v1817 = vpop.f32.mrf.mxu0
      %v1818 = vadd.f32 0.0, %v1817
      %1819 = vmatmul.bf16.gmra.mxu0 %v1095
      %v1820 = vpop.f32.mrf.mxu0
      %v1821 = vadd.f32 0.0, %v1820
      %v1822 = vpop.f32.mrf.mxu0
      %v1823 = vadd.f32 0.0, %v1822
      %1824 = vmatmul.bf16.gmra.mxu0 %v1104
      %v1825 = vpop.f32.mrf.mxu0
      %v1826 = vadd.f32 0.0, %v1825
      %v1827 = vpop.f32.mrf.mxu0
      %v1828 = vadd.f32 0.0, %v1827
      %1829 = vmatmul.bf16.gmra.mxu0 %v1113
      %v1830 = vpop.f32.mrf.mxu0
      %v1831 = vadd.f32 0.0, %v1830
      %v1832 = vpop.f32.mrf.mxu0
      %v1833 = vadd.f32 0.0, %v1832
      %1834 = vmatmul.bf16.gmra.mxu0 %v1122
      %v1835 = vpop.f32.mrf.mxu0
      %v1836 = vadd.f32 0.0, %v1835
      %v1837 = vpop.f32.mrf.mxu0
      %v1838 = vadd.f32 0.0, %v1837
      %1839 = vmatmul.bf16.gmra.mxu0 %v1131
      %v1840 = vpop.f32.mrf.mxu0
      %v1841 = vadd.f32 0.0, %v1840
      %v1842 = vpop.f32.mrf.mxu0
      %v1843 = vadd.f32 0.0, %v1842
      %1844 = vmatmul.bf16.gmra.mxu0 %v1140
      %v1845 = vpop.f32.mrf.mxu0
      %v1846 = vadd.f32 0.0, %v1845
      %v1847 = vpop.f32.mrf.mxu0
      %v1848 = vadd.f32 0.0, %v1847
      %1849 = vmatmul.bf16.gmra.mxu0 %v1149
      %v1850 = vpop.f32.mrf.mxu0
      %v1851 = vadd.f32 0.0, %v1850
      %v1852 = vpop.f32.mrf.mxu0
      %v1853 = vadd.f32 0.0, %v1852
      %1854 = vmatmul.bf16.gmra.mxu0 %v1158
      %v1855 = vpop.f32.mrf.mxu0
      %v1856 = vadd.f32 0.0, %v1855
      %v1857 = vpop.f32.mrf.mxu0
      %v1858 = vadd.f32 0.0, %v1857
      %1859 = vmatmul.bf16.gmra.mxu0 %v1167
      %v1860 = vpop.f32.mrf.mxu0
      %v1861 = vadd.f32 0.0, %v1860
      %v1862 = vpop.f32.mrf.mxu0
      %v1863 = vadd.f32 0.0, %v1862
      %1864 = vmatmul.bf16.gmra.mxu0 %v1176
      %v1865 = vpop.f32.mrf.mxu0
      %v1866 = vadd.f32 0.0, %v1865
      %v1867 = vpop.f32.mrf.mxu0
      %v1868 = vadd.f32 0.0, %v1867
      %1869 = vmatmul.bf16.gmra.mxu0 %v1185
      %v1870 = vpop.f32.mrf.mxu0
      %v1871 = vadd.f32 0.0, %v1870
      %v1872 = vpop.f32.mrf.mxu0
      %v1873 = vadd.f32 0.0, %v1872
      %1874 = vmatmul.bf16.gmra.mxu0 %v1194
      %v1875 = vpop.f32.mrf.mxu0
      %v1876 = vadd.f32 0.0, %v1875
      %v1877 = vpop.f32.mrf.mxu0
      %v1878 = vadd.f32 0.0, %v1877
      %1879 = vmatmul.bf16.gmra.mxu0 %v1203
      %v1880 = vpop.f32.mrf.mxu0
      %v1881 = vadd.f32 0.0, %v1880
      %v1882 = vpop.f32.mrf.mxu0
      %v1883 = vadd.f32 0.0, %v1882
      %1884 = vmatmul.bf16.gmra.mxu0 %v1212
      %v1885 = vpop.f32.mrf.mxu0
      %v1886 = vadd.f32 0.0, %v1885
      %v1887 = vpop.f32.mrf.mxu0
      %v1888 = vadd.f32 0.0, %v1887
      %1889 = vmatmul.bf16.gmra.mxu0 %v1221
      %v1890 = vpop.f32.mrf.mxu0
      %v1891 = vadd.f32 0.0, %v1890
      %v1892 = vpop.f32.mrf.mxu0
      %v1893 = vadd.f32 0.0, %v1892
      %1894 = vdwg.mxu0
      %1895 = vmatpush.bf16.msra.mxu0 %v1677
      %1896 = vmatpush.bf16.msra.mxu0 %v1676
      %1897 = vmatpush.bf16.msra.mxu0 %v1675
      %1898 = vmatpush.bf16.msra.mxu0 %v1674
      %1899 = vmatpush.bf16.msra.mxu0 %v1673
      %1900 = vmatpush.bf16.msra.mxu0 %v1672
      %1901 = vmatpush.bf16.msra.mxu0 %v1671
      %1902 = vmatpush.bf16.msra.mxu0 %v1670
      %1903 = vmatmul.bf16.gmra.mxu0 %v1087
      %v1904 = vpop.f32.mrf.mxu0
      %v1905 = vadd.f32 %v1816, %v1904
      %v1906 = vpop.f32.mrf.mxu0
      %v1907 = vadd.f32 %v1818, %v1906
      %1908 = vmatmul.bf16.gmra.mxu0 %v1096
      %v1909 = vpop.f32.mrf.mxu0
      %v1910 = vadd.f32 %v1821, %v1909
      %v1911 = vpop.f32.mrf.mxu0
      %v1912 = vadd.f32 %v1823, %v1911
      %1913 = vmatmul.bf16.gmra.mxu0 %v1105
      %v1914 = vpop.f32.mrf.mxu0
      %v1915 = vadd.f32 %v1826, %v1914
      %v1916 = vpop.f32.mrf.mxu0
      %v1917 = vadd.f32 %v1828, %v1916
      %1918 = vmatmul.bf16.gmra.mxu0 %v1114
      %v1919 = vpop.f32.mrf.mxu0
      %v1920 = vadd.f32 %v1831, %v1919
      %v1921 = vpop.f32.mrf.mxu0
      %v1922 = vadd.f32 %v1833, %v1921
      %1923 = vmatmul.bf16.gmra.mxu0 %v1123
      %v1924 = vpop.f32.mrf.mxu0
      %v1925 = vadd.f32 %v1836, %v1924
      %v1926 = vpop.f32.mrf.mxu0
      %v1927 = vadd.f32 %v1838, %v1926
      %1928 = vmatmul.bf16.gmra.mxu0 %v1132
      %v1929 = vpop.f32.mrf.mxu0
      %v1930 = vadd.f32 %v1841, %v1929
      %v1931 = vpop.f32.mrf.mxu0
      %v1932 = vadd.f32 %v1843, %v1931
      %1933 = vmatmul.bf16.gmra.mxu0 %v1141
      %v1934 = vpop.f32.mrf.mxu0
      %v1935 = vadd.f32 %v1846, %v1934
      %v1936 = vpop.f32.mrf.mxu0
      %v1937 = vadd.f32 %v1848, %v1936
      %1938 = vmatmul.bf16.gmra.mxu0 %v1150
      %v1939 = vpop.f32.mrf.mxu0
      %v1940 = vadd.f32 %v1851, %v1939
      %v1941 = vpop.f32.mrf.mxu0
      %v1942 = vadd.f32 %v1853, %v1941
      %1943 = vmatmul.bf16.gmra.mxu0 %v1159
      %v1944 = vpop.f32.mrf.mxu0
      %v1945 = vadd.f32 %v1856, %v1944
      %v1946 = vpop.f32.mrf.mxu0
      %v1947 = vadd.f32 %v1858, %v1946
      %1948 = vmatmul.bf16.gmra.mxu0 %v1168
      %v1949 = vpop.f32.mrf.mxu0
      %v1950 = vadd.f32 %v1861, %v1949
      %v1951 = vpop.f32.mrf.mxu0
      %v1952 = vadd.f32 %v1863, %v1951
      %1953 = vmatmul.bf16.gmra.mxu0 %v1177
      %v1954 = vpop.f32.mrf.mxu0
      %v1955 = vadd.f32 %v1866, %v1954
      %v1956 = vpop.f32.mrf.mxu0
      %v1957 = vadd.f32 %v1868, %v1956
      %1958 = vmatmul.bf16.gmra.mxu0 %v1186
      %v1959 = vpop.f32.mrf.mxu0
      %v1960 = vadd.f32 %v1871, %v1959
      %v1961 = vpop.f32.mrf.mxu0
      %v1962 = vadd.f32 %v1873, %v1961
      %1963 = vmatmul.bf16.gmra.mxu0 %v1195
      %v1964 = vpop.f32.mrf.mxu0
      %v1965 = vadd.f32 %v1876, %v1964
      %v1966 = vpop.f32.mrf.mxu0
      %v1967 = vadd.f32 %v1878, %v1966
      %1968 = vmatmul.bf16.gmra.mxu0 %v1204
      %v1969 = vpop.f32.mrf.mxu0
      %v1970 = vadd.f32 %v1881, %v1969
      %v1971 = vpop.f32.mrf.mxu0
      %v1972 = vadd.f32 %v1883, %v1971
      %1973 = vmatmul.bf16.gmra.mxu0 %v1213
      %v1974 = vpop.f32.mrf.mxu0
      %v1975 = vadd.f32 %v1886, %v1974
      %v1976 = vpop.f32.mrf.mxu0
      %v1977 = vadd.f32 %v1888, %v1976
      %1978 = vmatmul.bf16.gmra.mxu0 %v1222
      %v1979 = vpop.f32.mrf.mxu0
      %v1980 = vadd.f32 %v1891, %v1979
      %v1981 = vpop.f32.mrf.mxu0
      %v1982 = vadd.f32 %v1893, %v1981
      %1983 = vdwg.mxu0
      %1984 = vmatpush.bf16.msra.mxu0 %v1685
      %1985 = vmatpush.bf16.msra.mxu0 %v1684
      %1986 = vmatpush.bf16.msra.mxu0 %v1683
      %1987 = vmatpush.bf16.msra.mxu0 %v1682
      %1988 = vmatpush.bf16.msra.mxu0 %v1681
      %1989 = vmatpush.bf16.msra.mxu0 %v1680
      %1990 = vmatpush.bf16.msra.mxu0 %v1679
      %1991 = vmatpush.bf16.msra.mxu0 %v1678
      %1992 = vmatmul.bf16.gmra.mxu0 %v1088
      %v1993 = vpop.f32.mrf.mxu0
      %v1994 = vadd.f32 %v1905, %v1993
      %v1995 = vpop.f32.mrf.mxu0
      %v1996 = vadd.f32 %v1907, %v1995
      %1997 = vmatmul.bf16.gmra.mxu0 %v1097
      %v1998 = vpop.f32.mrf.mxu0
      %v1999 = vadd.f32 %v1910, %v1998
      %v2000 = vpop.f32.mrf.mxu0
      %v2001 = vadd.f32 %v1912, %v2000
      %2002 = vmatmul.bf16.gmra.mxu0 %v1106
      %v2003 = vpop.f32.mrf.mxu0
      %v2004 = vadd.f32 %v1915, %v2003
      %v2005 = vpop.f32.mrf.mxu0
      %v2006 = vadd.f32 %v1917, %v2005
      %2007 = vmatmul.bf16.gmra.mxu0 %v1115
      %v2008 = vpop.f32.mrf.mxu0
      %v2009 = vadd.f32 %v1920, %v2008
      %v2010 = vpop.f32.mrf.mxu0
      %v2011 = vadd.f32 %v1922, %v2010
      %2012 = vmatmul.bf16.gmra.mxu0 %v1124
      %v2013 = vpop.f32.mrf.mxu0
      %v2014 = vadd.f32 %v1925, %v2013
      %v2015 = vpop.f32.mrf.mxu0
      %v2016 = vadd.f32 %v1927, %v2015
      %2017 = vmatmul.bf16.gmra.mxu0 %v1133
      %v2018 = vpop.f32.mrf.mxu0
      %v2019 = vadd.f32 %v1930, %v2018
      %v2020 = vpop.f32.mrf.mxu0
      %v2021 = vadd.f32 %v1932, %v2020
      %2022 = vmatmul.bf16.gmra.mxu0 %v1142
      %v2023 = vpop.f32.mrf.mxu0
      %v2024 = vadd.f32 %v1935, %v2023
      %v2025 = vpop.f32.mrf.mxu0
      %v2026 = vadd.f32 %v1937, %v2025
      %2027 = vmatmul.bf16.gmra.mxu0 %v1151
      %v2028 = vpop.f32.mrf.mxu0
      %v2029 = vadd.f32 %v1940, %v2028
      %v2030 = vpop.f32.mrf.mxu0
      %v2031 = vadd.f32 %v1942, %v2030
      %2032 = vmatmul.bf16.gmra.mxu0 %v1160
      %v2033 = vpop.f32.mrf.mxu0
      %v2034 = vadd.f32 %v1945, %v2033
      %v2035 = vpop.f32.mrf.mxu0
      %v2036 = vadd.f32 %v1947, %v2035
      %2037 = vmatmul.bf16.gmra.mxu0 %v1169
      %v2038 = vpop.f32.mrf.mxu0
      %v2039 = vadd.f32 %v1950, %v2038
      %v2040 = vpop.f32.mrf.mxu0
      %v2041 = vadd.f32 %v1952, %v2040
      %2042 = vmatmul.bf16.gmra.mxu0 %v1178
      %v2043 = vpop.f32.mrf.mxu0
      %v2044 = vadd.f32 %v1955, %v2043
      %v2045 = vpop.f32.mrf.mxu0
      %v2046 = vadd.f32 %v1957, %v2045
      %2047 = vmatmul.bf16.gmra.mxu0 %v1187
      %v2048 = vpop.f32.mrf.mxu0
      %v2049 = vadd.f32 %v1960, %v2048
      %v2050 = vpop.f32.mrf.mxu0
      %v2051 = vadd.f32 %v1962, %v2050
      %2052 = vmatmul.bf16.gmra.mxu0 %v1196
      %v2053 = vpop.f32.mrf.mxu0
      %v2054 = vadd.f32 %v1965, %v2053
      %v2055 = vpop.f32.mrf.mxu0
      %v2056 = vadd.f32 %v1967, %v2055
      %2057 = vmatmul.bf16.gmra.mxu0 %v1205
      %v2058 = vpop.f32.mrf.mxu0
      %v2059 = vadd.f32 %v1970, %v2058
      %v2060 = vpop.f32.mrf.mxu0
      %v2061 = vadd.f32 %v1972, %v2060
      %2062 = vmatmul.bf16.gmra.mxu0 %v1214
      %v2063 = vpop.f32.mrf.mxu0
      %v2064 = vadd.f32 %v1975, %v2063
      %v2065 = vpop.f32.mrf.mxu0
      %v2066 = vadd.f32 %v1977, %v2065
      %2067 = vmatmul.bf16.gmra.mxu0 %v1223
      %v2068 = vpop.f32.mrf.mxu0
      %v2069 = vadd.f32 %v1980, %v2068
      %v2070 = vpop.f32.mrf.mxu0
      %v2071 = vadd.f32 %v1982, %v2070
      %2072 = vdwg.mxu0
      %2073 = vmatpush.bf16.msra.mxu0 %v1693
      %2074 = vmatpush.bf16.msra.mxu0 %v1692
      %2075 = vmatpush.bf16.msra.mxu0 %v1691
      %2076 = vmatpush.bf16.msra.mxu0 %v1690
      %2077 = vmatpush.bf16.msra.mxu0 %v1689
      %2078 = vmatpush.bf16.msra.mxu0 %v1688
      %2079 = vmatpush.bf16.msra.mxu0 %v1687
      %2080 = vmatpush.bf16.msra.mxu0 %v1686
      %2081 = vmatmul.bf16.gmra.mxu0 %v1089
      %v2082 = vpop.f32.mrf.mxu0
      %v2083 = vadd.f32 %v1994, %v2082
      %v2084 = vpop.f32.mrf.mxu0
      %v2085 = vadd.f32 %v1996, %v2084
      %2086 = vmatmul.bf16.gmra.mxu0 %v1098
      %v2087 = vpop.f32.mrf.mxu0
      %v2088 = vadd.f32 %v1999, %v2087
      %v2089 = vpop.f32.mrf.mxu0
      %v2090 = vadd.f32 %v2001, %v2089
      %2091 = vmatmul.bf16.gmra.mxu0 %v1107
      %v2092 = vpop.f32.mrf.mxu0
      %v2093 = vadd.f32 %v2004, %v2092
      %v2094 = vpop.f32.mrf.mxu0
      %v2095 = vadd.f32 %v2006, %v2094
      %2096 = vmatmul.bf16.gmra.mxu0 %v1116
      %v2097 = vpop.f32.mrf.mxu0
      %v2098 = vadd.f32 %v2009, %v2097
      %v2099 = vpop.f32.mrf.mxu0
      %v2100 = vadd.f32 %v2011, %v2099
      %2101 = vmatmul.bf16.gmra.mxu0 %v1125
      %v2102 = vpop.f32.mrf.mxu0
      %v2103 = vadd.f32 %v2014, %v2102
      %v2104 = vpop.f32.mrf.mxu0
      %v2105 = vadd.f32 %v2016, %v2104
      %2106 = vmatmul.bf16.gmra.mxu0 %v1134
      %v2107 = vpop.f32.mrf.mxu0
      %v2108 = vadd.f32 %v2019, %v2107
      %v2109 = vpop.f32.mrf.mxu0
      %v2110 = vadd.f32 %v2021, %v2109
      %2111 = vmatmul.bf16.gmra.mxu0 %v1143
      %v2112 = vpop.f32.mrf.mxu0
      %v2113 = vadd.f32 %v2024, %v2112
      %v2114 = vpop.f32.mrf.mxu0
      %v2115 = vadd.f32 %v2026, %v2114
      %2116 = vmatmul.bf16.gmra.mxu0 %v1152
      %v2117 = vpop.f32.mrf.mxu0
      %v2118 = vadd.f32 %v2029, %v2117
      %v2119 = vpop.f32.mrf.mxu0
      %v2120 = vadd.f32 %v2031, %v2119
      %2121 = vmatmul.bf16.gmra.mxu0 %v1161
      %v2122 = vpop.f32.mrf.mxu0
      %v2123 = vadd.f32 %v2034, %v2122
      %v2124 = vpop.f32.mrf.mxu0
      %v2125 = vadd.f32 %v2036, %v2124
      %2126 = vmatmul.bf16.gmra.mxu0 %v1170
      %v2127 = vpop.f32.mrf.mxu0
      %v2128 = vadd.f32 %v2039, %v2127
      %v2129 = vpop.f32.mrf.mxu0
      %v2130 = vadd.f32 %v2041, %v2129
      %2131 = vmatmul.bf16.gmra.mxu0 %v1179
      %v2132 = vpop.f32.mrf.mxu0
      %v2133 = vadd.f32 %v2044, %v2132
      %v2134 = vpop.f32.mrf.mxu0
      %v2135 = vadd.f32 %v2046, %v2134
      %2136 = vmatmul.bf16.gmra.mxu0 %v1188
      %v2137 = vpop.f32.mrf.mxu0
      %v2138 = vadd.f32 %v2049, %v2137
      %v2139 = vpop.f32.mrf.mxu0
      %v2140 = vadd.f32 %v2051, %v2139
      %2141 = vmatmul.bf16.gmra.mxu0 %v1197
      %v2142 = vpop.f32.mrf.mxu0
      %v2143 = vadd.f32 %v2054, %v2142
      %v2144 = vpop.f32.mrf.mxu0
      %v2145 = vadd.f32 %v2056, %v2144
      %2146 = vmatmul.bf16.gmra.mxu0 %v1206
      %v2147 = vpop.f32.mrf.mxu0
      %v2148 = vadd.f32 %v2059, %v2147
      %v2149 = vpop.f32.mrf.mxu0
      %v2150 = vadd.f32 %v2061, %v2149
      %2151 = vmatmul.bf16.gmra.mxu0 %v1215
      %v2152 = vpop.f32.mrf.mxu0
      %v2153 = vadd.f32 %v2064, %v2152
      %v2154 = vpop.f32.mrf.mxu0
      %v2155 = vadd.f32 %v2066, %v2154
      %2156 = vmatmul.bf16.gmra.mxu0 %v1224
      %v2157 = vpop.f32.mrf.mxu0
      %v2158 = vadd.f32 %v2069, %v2157
      %v2159 = vpop.f32.mrf.mxu0
      %v2160 = vadd.f32 %v2071, %v2159
      %2161 = vdwg.mxu0
      %2162 = vmatpush.bf16.msra.mxu0 %v1701
      %2163 = vmatpush.bf16.msra.mxu0 %v1700
      %2164 = vmatpush.bf16.msra.mxu0 %v1699
      %2165 = vmatpush.bf16.msra.mxu0 %v1698
      %2166 = vmatpush.bf16.msra.mxu0 %v1697
      %2167 = vmatpush.bf16.msra.mxu0 %v1696
      %2168 = vmatpush.bf16.msra.mxu0 %v1695
      %2169 = vmatpush.bf16.msra.mxu0 %v1694
      %2170 = vmatmul.bf16.gmra.mxu0 %v1090
      %v2171 = vpop.f32.mrf.mxu0
      %v2172 = vadd.f32 %v2083, %v2171
      %v2173 = vpop.f32.mrf.mxu0
      %v2174 = vadd.f32 %v2085, %v2173
      %2175 = vmatmul.bf16.gmra.mxu0 %v1099
      %v2176 = vpop.f32.mrf.mxu0
      %v2177 = vadd.f32 %v2088, %v2176
      %v2178 = vpop.f32.mrf.mxu0
      %v2179 = vadd.f32 %v2090, %v2178
      %2180 = vmatmul.bf16.gmra.mxu0 %v1108
      %v2181 = vpop.f32.mrf.mxu0
      %v2182 = vadd.f32 %v2093, %v2181
      %v2183 = vpop.f32.mrf.mxu0
      %v2184 = vadd.f32 %v2095, %v2183
      %2185 = vmatmul.bf16.gmra.mxu0 %v1117
      %v2186 = vpop.f32.mrf.mxu0
      %v2187 = vadd.f32 %v2098, %v2186
      %v2188 = vpop.f32.mrf.mxu0
      %v2189 = vadd.f32 %v2100, %v2188
      %2190 = vmatmul.bf16.gmra.mxu0 %v1126
      %v2191 = vpop.f32.mrf.mxu0
      %v2192 = vadd.f32 %v2103, %v2191
      %v2193 = vpop.f32.mrf.mxu0
      %v2194 = vadd.f32 %v2105, %v2193
      %2195 = vmatmul.bf16.gmra.mxu0 %v1135
      %v2196 = vpop.f32.mrf.mxu0
      %v2197 = vadd.f32 %v2108, %v2196
      %v2198 = vpop.f32.mrf.mxu0
      %v2199 = vadd.f32 %v2110, %v2198
      %2200 = vmatmul.bf16.gmra.mxu0 %v1144
      %v2201 = vpop.f32.mrf.mxu0
      %v2202 = vadd.f32 %v2113, %v2201
      %v2203 = vpop.f32.mrf.mxu0
      %v2204 = vadd.f32 %v2115, %v2203
      %2205 = vmatmul.bf16.gmra.mxu0 %v1153
      %v2206 = vpop.f32.mrf.mxu0
      %v2207 = vadd.f32 %v2118, %v2206
      %v2208 = vpop.f32.mrf.mxu0
      %v2209 = vadd.f32 %v2120, %v2208
      %2210 = vmatmul.bf16.gmra.mxu0 %v1162
      %v2211 = vpop.f32.mrf.mxu0
      %v2212 = vadd.f32 %v2123, %v2211
      %v2213 = vpop.f32.mrf.mxu0
      %v2214 = vadd.f32 %v2125, %v2213
      %2215 = vmatmul.bf16.gmra.mxu0 %v1171
      %v2216 = vpop.f32.mrf.mxu0
      %v2217 = vadd.f32 %v2128, %v2216
      %v2218 = vpop.f32.mrf.mxu0
      %v2219 = vadd.f32 %v2130, %v2218
      %2220 = vmatmul.bf16.gmra.mxu0 %v1180
      %v2221 = vpop.f32.mrf.mxu0
      %v2222 = vadd.f32 %v2133, %v2221
      %v2223 = vpop.f32.mrf.mxu0
      %v2224 = vadd.f32 %v2135, %v2223
      %2225 = vmatmul.bf16.gmra.mxu0 %v1189
      %v2226 = vpop.f32.mrf.mxu0
      %v2227 = vadd.f32 %v2138, %v2226
      %v2228 = vpop.f32.mrf.mxu0
      %v2229 = vadd.f32 %v2140, %v2228
      %2230 = vmatmul.bf16.gmra.mxu0 %v1198
      %v2231 = vpop.f32.mrf.mxu0
      %v2232 = vadd.f32 %v2143, %v2231
      %v2233 = vpop.f32.mrf.mxu0
      %v2234 = vadd.f32 %v2145, %v2233
      %2235 = vmatmul.bf16.gmra.mxu0 %v1207
      %v2236 = vpop.f32.mrf.mxu0
      %v2237 = vadd.f32 %v2148, %v2236
      %v2238 = vpop.f32.mrf.mxu0
      %v2239 = vadd.f32 %v2150, %v2238
      %2240 = vmatmul.bf16.gmra.mxu0 %v1216
      %v2241 = vpop.f32.mrf.mxu0
      %v2242 = vadd.f32 %v2153, %v2241
      %v2243 = vpop.f32.mrf.mxu0
      %v2244 = vadd.f32 %v2155, %v2243
      %2245 = vmatmul.bf16.gmra.mxu0 %v1225
      %v2246 = vpop.f32.mrf.mxu0
      %v2247 = vadd.f32 %v2158, %v2246
      %v2248 = vpop.f32.mrf.mxu0
      %v2249 = vadd.f32 %v2160, %v2248
      %2250 = vdwg.mxu0
      %2251 = vmatpush.bf16.msra.mxu0 %v1709
      %2252 = vmatpush.bf16.msra.mxu0 %v1708
      %2253 = vmatpush.bf16.msra.mxu0 %v1707
      %2254 = vmatpush.bf16.msra.mxu0 %v1706
      %2255 = vmatpush.bf16.msra.mxu0 %v1705
      %2256 = vmatpush.bf16.msra.mxu0 %v1704
      %2257 = vmatpush.bf16.msra.mxu0 %v1703
      %2258 = vmatpush.bf16.msra.mxu0 %v1702
      %2259 = vmatmul.bf16.gmra.mxu0 %v1091
      %v2260 = vpop.f32.mrf.mxu0
      %v2261 = vadd.f32 %v2172, %v2260
      %v2262 = vpop.f32.mrf.mxu0
      %v2263 = vadd.f32 %v2174, %v2262
      %2264 = vmatmul.bf16.gmra.mxu0 %v1100
      %v2265 = vpop.f32.mrf.mxu0
      %v2266 = vadd.f32 %v2177, %v2265
      %v2267 = vpop.f32.mrf.mxu0
      %v2268 = vadd.f32 %v2179, %v2267
      %2269 = vmatmul.bf16.gmra.mxu0 %v1109
      %v2270 = vpop.f32.mrf.mxu0
      %v2271 = vadd.f32 %v2182, %v2270
      %v2272 = vpop.f32.mrf.mxu0
      %v2273 = vadd.f32 %v2184, %v2272
      %2274 = vmatmul.bf16.gmra.mxu0 %v1118
      %v2275 = vpop.f32.mrf.mxu0
      %v2276 = vadd.f32 %v2187, %v2275
      %v2277 = vpop.f32.mrf.mxu0
      %v2278 = vadd.f32 %v2189, %v2277
      %2279 = vmatmul.bf16.gmra.mxu0 %v1127
      %v2280 = vpop.f32.mrf.mxu0
      %v2281 = vadd.f32 %v2192, %v2280
      %v2282 = vpop.f32.mrf.mxu0
      %v2283 = vadd.f32 %v2194, %v2282
      %2284 = vmatmul.bf16.gmra.mxu0 %v1136
      %v2285 = vpop.f32.mrf.mxu0
      %v2286 = vadd.f32 %v2197, %v2285
      %v2287 = vpop.f32.mrf.mxu0
      %v2288 = vadd.f32 %v2199, %v2287
      %2289 = vmatmul.bf16.gmra.mxu0 %v1145
      %v2290 = vpop.f32.mrf.mxu0
      %v2291 = vadd.f32 %v2202, %v2290
      %v2292 = vpop.f32.mrf.mxu0
      %v2293 = vadd.f32 %v2204, %v2292
      %2294 = vmatmul.bf16.gmra.mxu0 %v1154
      %v2295 = vpop.f32.mrf.mxu0
      %v2296 = vadd.f32 %v2207, %v2295
      %v2297 = vpop.f32.mrf.mxu0
      %v2298 = vadd.f32 %v2209, %v2297
      %2299 = vmatmul.bf16.gmra.mxu0 %v1163
      %v2300 = vpop.f32.mrf.mxu0
      %v2301 = vadd.f32 %v2212, %v2300
      %v2302 = vpop.f32.mrf.mxu0
      %v2303 = vadd.f32 %v2214, %v2302
      %2304 = vmatmul.bf16.gmra.mxu0 %v1172
      %v2305 = vpop.f32.mrf.mxu0
      %v2306 = vadd.f32 %v2217, %v2305
      %v2307 = vpop.f32.mrf.mxu0
      %v2308 = vadd.f32 %v2219, %v2307
      %2309 = vmatmul.bf16.gmra.mxu0 %v1181
      %v2310 = vpop.f32.mrf.mxu0
      %v2311 = vadd.f32 %v2222, %v2310
      %v2312 = vpop.f32.mrf.mxu0
      %v2313 = vadd.f32 %v2224, %v2312
      %2314 = vmatmul.bf16.gmra.mxu0 %v1190
      %v2315 = vpop.f32.mrf.mxu0
      %v2316 = vadd.f32 %v2227, %v2315
      %v2317 = vpop.f32.mrf.mxu0
      %v2318 = vadd.f32 %v2229, %v2317
      %2319 = vmatmul.bf16.gmra.mxu0 %v1199
      %v2320 = vpop.f32.mrf.mxu0
      %v2321 = vadd.f32 %v2232, %v2320
      %v2322 = vpop.f32.mrf.mxu0
      %v2323 = vadd.f32 %v2234, %v2322
      %2324 = vmatmul.bf16.gmra.mxu0 %v1208
      %v2325 = vpop.f32.mrf.mxu0
      %v2326 = vadd.f32 %v2237, %v2325
      %v2327 = vpop.f32.mrf.mxu0
      %v2328 = vadd.f32 %v2239, %v2327
      %2329 = vmatmul.bf16.gmra.mxu0 %v1217
      %v2330 = vpop.f32.mrf.mxu0
      %v2331 = vadd.f32 %v2242, %v2330
      %v2332 = vpop.f32.mrf.mxu0
      %v2333 = vadd.f32 %v2244, %v2332
      %2334 = vmatmul.bf16.gmra.mxu0 %v1226
      %v2335 = vpop.f32.mrf.mxu0
      %v2336 = vadd.f32 %v2247, %v2335
      %v2337 = vpop.f32.mrf.mxu0
      %v2338 = vadd.f32 %v2249, %v2337
      %2339 = vdwg.mxu0
      %2340 = vmatpush.bf16.msra.mxu0 %v1717
      %2341 = vmatpush.bf16.msra.mxu0 %v1716
      %2342 = vmatpush.bf16.msra.mxu0 %v1715
      %2343 = vmatpush.bf16.msra.mxu0 %v1714
      %2344 = vmatpush.bf16.msra.mxu0 %v1713
      %2345 = vmatpush.bf16.msra.mxu0 %v1712
      %2346 = vmatpush.bf16.msra.mxu0 %v1711
      %2347 = vmatpush.bf16.msra.mxu0 %v1710
      %2348 = vmatmul.bf16.gmra.mxu0 %v1092
      %v2349 = vpop.f32.mrf.mxu0
      %v2350 = vadd.f32 %v2261, %v2349
      %v2351 = vpop.f32.mrf.mxu0
      %v2352 = vadd.f32 %v2263, %v2351
      %2353 = vmatmul.bf16.gmra.mxu0 %v1101
      %v2354 = vpop.f32.mrf.mxu0
      %v2355 = vadd.f32 %v2266, %v2354
      %v2356 = vpop.f32.mrf.mxu0
      %v2357 = vadd.f32 %v2268, %v2356
      %2358 = vmatmul.bf16.gmra.mxu0 %v1110
      %v2359 = vpop.f32.mrf.mxu0
      %v2360 = vadd.f32 %v2271, %v2359
      %v2361 = vpop.f32.mrf.mxu0
      %v2362 = vadd.f32 %v2273, %v2361
      %2363 = vmatmul.bf16.gmra.mxu0 %v1119
      %v2364 = vpop.f32.mrf.mxu0
      %v2365 = vadd.f32 %v2276, %v2364
      %v2366 = vpop.f32.mrf.mxu0
      %v2367 = vadd.f32 %v2278, %v2366
      %2368 = vmatmul.bf16.gmra.mxu0 %v1128
      %v2369 = vpop.f32.mrf.mxu0
      %v2370 = vadd.f32 %v2281, %v2369
      %v2371 = vpop.f32.mrf.mxu0
      %v2372 = vadd.f32 %v2283, %v2371
      %2373 = vmatmul.bf16.gmra.mxu0 %v1137
      %v2374 = vpop.f32.mrf.mxu0
      %v2375 = vadd.f32 %v2286, %v2374
      %v2376 = vpop.f32.mrf.mxu0
      %v2377 = vadd.f32 %v2288, %v2376
      %2378 = vmatmul.bf16.gmra.mxu0 %v1146
      %v2379 = vpop.f32.mrf.mxu0
      %v2380 = vadd.f32 %v2291, %v2379
      %v2381 = vpop.f32.mrf.mxu0
      %v2382 = vadd.f32 %v2293, %v2381
      %2383 = vmatmul.bf16.gmra.mxu0 %v1155
      %v2384 = vpop.f32.mrf.mxu0
      %v2385 = vadd.f32 %v2296, %v2384
      %v2386 = vpop.f32.mrf.mxu0
      %v2387 = vadd.f32 %v2298, %v2386
      %2388 = vmatmul.bf16.gmra.mxu0 %v1164
      %v2389 = vpop.f32.mrf.mxu0
      %v2390 = vadd.f32 %v2301, %v2389
      %v2391 = vpop.f32.mrf.mxu0
      %v2392 = vadd.f32 %v2303, %v2391
      %2393 = vmatmul.bf16.gmra.mxu0 %v1173
      %v2394 = vpop.f32.mrf.mxu0
      %v2395 = vadd.f32 %v2306, %v2394
      %v2396 = vpop.f32.mrf.mxu0
      %v2397 = vadd.f32 %v2308, %v2396
      %2398 = vmatmul.bf16.gmra.mxu0 %v1182
      %v2399 = vpop.f32.mrf.mxu0
      %v2400 = vadd.f32 %v2311, %v2399
      %v2401 = vpop.f32.mrf.mxu0
      %v2402 = vadd.f32 %v2313, %v2401
      %2403 = vmatmul.bf16.gmra.mxu0 %v1191
      %v2404 = vpop.f32.mrf.mxu0
      %v2405 = vadd.f32 %v2316, %v2404
      %v2406 = vpop.f32.mrf.mxu0
      %v2407 = vadd.f32 %v2318, %v2406
      %2408 = vmatmul.bf16.gmra.mxu0 %v1200
      %v2409 = vpop.f32.mrf.mxu0
      %v2410 = vadd.f32 %v2321, %v2409
      %v2411 = vpop.f32.mrf.mxu0
      %v2412 = vadd.f32 %v2323, %v2411
      %2413 = vmatmul.bf16.gmra.mxu0 %v1209
      %v2414 = vpop.f32.mrf.mxu0
      %v2415 = vadd.f32 %v2326, %v2414
      %v2416 = vpop.f32.mrf.mxu0
      %v2417 = vadd.f32 %v2328, %v2416
      %2418 = vmatmul.bf16.gmra.mxu0 %v1218
      %v2419 = vpop.f32.mrf.mxu0
      %v2420 = vadd.f32 %v2331, %v2419
      %v2421 = vpop.f32.mrf.mxu0
      %v2422 = vadd.f32 %v2333, %v2421
      %2423 = vmatmul.bf16.gmra.mxu0 %v1227
      %v2424 = vpop.f32.mrf.mxu0
      %v2425 = vadd.f32 %v2336, %v2424
      %v2426 = vpop.f32.mrf.mxu0
      %v2427 = vadd.f32 %v2338, %v2426
      %2428 = vdwg.mxu0
      %2429 = vmatpush.bf16.msra.mxu0 %v1725
      %2430 = vmatpush.bf16.msra.mxu0 %v1724
      %2431 = vmatpush.bf16.msra.mxu0 %v1723
      %2432 = vmatpush.bf16.msra.mxu0 %v1722
      %2433 = vmatpush.bf16.msra.mxu0 %v1721
      %2434 = vmatpush.bf16.msra.mxu0 %v1720
      %2435 = vmatpush.bf16.msra.mxu0 %v1719
      %2436 = vmatpush.bf16.msra.mxu0 %v1718
      %2437 = vmatmul.bf16.gmra.mxu0 %v1093
      %v2438 = vpop.f32.mrf.mxu0
      %v2439 = vadd.f32 %v2350, %v2438
      %v2440 = vpop.f32.mrf.mxu0
      %v2441 = vadd.f32 %v2352, %v2440
      %2442 = vmatmul.bf16.gmra.mxu0 %v1102
      %v2443 = vpop.f32.mrf.mxu0
      %v2444 = vadd.f32 %v2355, %v2443
      %v2445 = vpop.f32.mrf.mxu0
      %v2446 = vadd.f32 %v2357, %v2445
      %2447 = vmatmul.bf16.gmra.mxu0 %v1111
      %v2448 = vpop.f32.mrf.mxu0
      %v2449 = vadd.f32 %v2360, %v2448
      %v2450 = vpop.f32.mrf.mxu0
      %v2451 = vadd.f32 %v2362, %v2450
      %2452 = vmatmul.bf16.gmra.mxu0 %v1120
      %v2453 = vpop.f32.mrf.mxu0
      %v2454 = vadd.f32 %v2365, %v2453
      %v2455 = vpop.f32.mrf.mxu0
      %v2456 = vadd.f32 %v2367, %v2455
      %2457 = vmatmul.bf16.gmra.mxu0 %v1129
      %v2458 = vpop.f32.mrf.mxu0
      %v2459 = vadd.f32 %v2370, %v2458
      %v2460 = vpop.f32.mrf.mxu0
      %v2461 = vadd.f32 %v2372, %v2460
      %2462 = vmatmul.bf16.gmra.mxu0 %v1138
      %v2463 = vpop.f32.mrf.mxu0
      %v2464 = vadd.f32 %v2375, %v2463
      %v2465 = vpop.f32.mrf.mxu0
      %v2466 = vadd.f32 %v2377, %v2465
      %2467 = vmatmul.bf16.gmra.mxu0 %v1147
      %v2468 = vpop.f32.mrf.mxu0
      %v2469 = vadd.f32 %v2380, %v2468
      %v2470 = vpop.f32.mrf.mxu0
      %v2471 = vadd.f32 %v2382, %v2470
      %2472 = vmatmul.bf16.gmra.mxu0 %v1156
      %v2473 = vpop.f32.mrf.mxu0
      %v2474 = vadd.f32 %v2385, %v2473
      %v2475 = vpop.f32.mrf.mxu0
      %v2476 = vadd.f32 %v2387, %v2475
      %2477 = vmatmul.bf16.gmra.mxu0 %v1165
      %v2478 = vpop.f32.mrf.mxu0
      %v2479 = vadd.f32 %v2390, %v2478
      %v2480 = vpop.f32.mrf.mxu0
      %v2481 = vadd.f32 %v2392, %v2480
      %2482 = vmatmul.bf16.gmra.mxu0 %v1174
      %v2483 = vpop.f32.mrf.mxu0
      %v2484 = vadd.f32 %v2395, %v2483
      %v2485 = vpop.f32.mrf.mxu0
      %v2486 = vadd.f32 %v2397, %v2485
      %2487 = vmatmul.bf16.gmra.mxu0 %v1183
      %v2488 = vpop.f32.mrf.mxu0
      %v2489 = vadd.f32 %v2400, %v2488
      %v2490 = vpop.f32.mrf.mxu0
      %v2491 = vadd.f32 %v2402, %v2490
      %2492 = vmatmul.bf16.gmra.mxu0 %v1192
      %v2493 = vpop.f32.mrf.mxu0
      %v2494 = vadd.f32 %v2405, %v2493
      %v2495 = vpop.f32.mrf.mxu0
      %v2496 = vadd.f32 %v2407, %v2495
      %2497 = vmatmul.bf16.gmra.mxu0 %v1201
      %v2498 = vpop.f32.mrf.mxu0
      %v2499 = vadd.f32 %v2410, %v2498
      %v2500 = vpop.f32.mrf.mxu0
      %v2501 = vadd.f32 %v2412, %v2500
      %2502 = vmatmul.bf16.gmra.mxu0 %v1210
      %v2503 = vpop.f32.mrf.mxu0
      %v2504 = vadd.f32 %v2415, %v2503
      %v2505 = vpop.f32.mrf.mxu0
      %v2506 = vadd.f32 %v2417, %v2505
      %2507 = vmatmul.bf16.gmra.mxu0 %v1219
      %v2508 = vpop.f32.mrf.mxu0
      %v2509 = vadd.f32 %v2420, %v2508
      %v2510 = vpop.f32.mrf.mxu0
      %v2511 = vadd.f32 %v2422, %v2510
      %2512 = vmatmul.bf16.gmra.mxu0 %v1228
      %v2513 = vpop.f32.mrf.mxu0
      %v2514 = vadd.f32 %v2425, %v2513
      %v2515 = vpop.f32.mrf.mxu0
      %v2516 = vadd.f32 %v2427, %v2515
      %2517 = vdwg.mxu0
      %2518 = vmatpush.bf16.msra.mxu0 %v1733
      %2519 = vmatpush.bf16.msra.mxu0 %v1732
      %2520 = vmatpush.bf16.msra.mxu0 %v1731
      %2521 = vmatpush.bf16.msra.mxu0 %v1730
      %2522 = vmatpush.bf16.msra.mxu0 %v1729
      %2523 = vmatpush.bf16.msra.mxu0 %v1728
      %2524 = vmatpush.bf16.msra.mxu0 %v1727
      %2525 = vmatpush.bf16.msra.mxu0 %v1726
      %2526 = vmatmul.bf16.gmra.mxu0 %v1094
      %v2527 = vpop.f32.mrf.mxu0
      %v2528 = vadd.f32 %v2439, %v2527
      %v2529 = vpop.f32.mrf.mxu0
      %v2530 = vadd.f32 %v2441, %v2529
      %2531 = vmatmul.bf16.gmra.mxu0 %v1103
      %v2532 = vpop.f32.mrf.mxu0
      %v2533 = vadd.f32 %v2444, %v2532
      %v2534 = vpop.f32.mrf.mxu0
      %v2535 = vadd.f32 %v2446, %v2534
      %2536 = vmatmul.bf16.gmra.mxu0 %v1112
      %v2537 = vpop.f32.mrf.mxu0
      %v2538 = vadd.f32 %v2449, %v2537
      %v2539 = vpop.f32.mrf.mxu0
      %v2540 = vadd.f32 %v2451, %v2539
      %2541 = vmatmul.bf16.gmra.mxu0 %v1121
      %v2542 = vpop.f32.mrf.mxu0
      %v2543 = vadd.f32 %v2454, %v2542
      %v2544 = vpop.f32.mrf.mxu0
      %v2545 = vadd.f32 %v2456, %v2544
      %2546 = vmatmul.bf16.gmra.mxu0 %v1130
      %v2547 = vpop.f32.mrf.mxu0
      %v2548 = vadd.f32 %v2459, %v2547
      %v2549 = vpop.f32.mrf.mxu0
      %v2550 = vadd.f32 %v2461, %v2549
      %2551 = vmatmul.bf16.gmra.mxu0 %v1139
      %v2552 = vpop.f32.mrf.mxu0
      %v2553 = vadd.f32 %v2464, %v2552
      %v2554 = vpop.f32.mrf.mxu0
      %v2555 = vadd.f32 %v2466, %v2554
      %2556 = vmatmul.bf16.gmra.mxu0 %v1148
      %v2557 = vpop.f32.mrf.mxu0
      %v2558 = vadd.f32 %v2469, %v2557
      %v2559 = vpop.f32.mrf.mxu0
      %v2560 = vadd.f32 %v2471, %v2559
      %2561 = vmatmul.bf16.gmra.mxu0 %v1157
      %v2562 = vpop.f32.mrf.mxu0
      %v2563 = vadd.f32 %v2474, %v2562
      %v2564 = vpop.f32.mrf.mxu0
      %v2565 = vadd.f32 %v2476, %v2564
      %2566 = vmatmul.bf16.gmra.mxu0 %v1166
      %v2567 = vpop.f32.mrf.mxu0
      %v2568 = vadd.f32 %v2479, %v2567
      %v2569 = vpop.f32.mrf.mxu0
      %v2570 = vadd.f32 %v2481, %v2569
      %2571 = vmatmul.bf16.gmra.mxu0 %v1175
      %v2572 = vpop.f32.mrf.mxu0
      %v2573 = vadd.f32 %v2484, %v2572
      %v2574 = vpop.f32.mrf.mxu0
      %v2575 = vadd.f32 %v2486, %v2574
      %2576 = vmatmul.bf16.gmra.mxu0 %v1184
      %v2577 = vpop.f32.mrf.mxu0
      %v2578 = vadd.f32 %v2489, %v2577
      %v2579 = vpop.f32.mrf.mxu0
      %v2580 = vadd.f32 %v2491, %v2579
      %2581 = vmatmul.bf16.gmra.mxu0 %v1193
      %v2582 = vpop.f32.mrf.mxu0
      %v2583 = vadd.f32 %v2494, %v2582
      %v2584 = vpop.f32.mrf.mxu0
      %v2585 = vadd.f32 %v2496, %v2584
      %2586 = vmatmul.bf16.gmra.mxu0 %v1202
      %v2587 = vpop.f32.mrf.mxu0
      %v2588 = vadd.f32 %v2499, %v2587
      %v2589 = vpop.f32.mrf.mxu0
      %v2590 = vadd.f32 %v2501, %v2589
      %2591 = vmatmul.bf16.gmra.mxu0 %v1211
      %v2592 = vpop.f32.mrf.mxu0
      %v2593 = vadd.f32 %v2504, %v2592
      %v2594 = vpop.f32.mrf.mxu0
      %v2595 = vadd.f32 %v2506, %v2594
      %2596 = vmatmul.bf16.gmra.mxu0 %v1220
      %v2597 = vpop.f32.mrf.mxu0
      %v2598 = vadd.f32 %v2509, %v2597
      %v2599 = vpop.f32.mrf.mxu0
      %v2600 = vadd.f32 %v2511, %v2599
      %2601 = vmatmul.bf16.gmra.mxu0 %v1229
      %v2602 = vpop.f32.mrf.mxu0
      %v2603 = vadd.f32 %v2514, %v2602
      %v2604 = vpop.f32.mrf.mxu0
      %v2605 = vadd.f32 %v2516, %v2604
      %2606 = vdwg.mxu0
      %v2607 = vld [vmem:[%s2] sm:$0x1]
      %v2609 = vperm.slane %v2607, 0
      %v2611 = vmul.f32 %v2528, %v2609
      %v2612 = vmul.f32 %v2530, %v2609
      %v2613 = vmul.f32 %v2533, %v2609
      %v2614 = vmul.f32 %v2535, %v2609
      %v2615 = vmul.f32 %v2538, %v2609
      %v2616 = vmul.f32 %v2540, %v2609
      %v2617 = vmul.f32 %v2543, %v2609
      %v2618 = vmul.f32 %v2545, %v2609
      %v2619 = vmul.f32 %v2548, %v2609
      %v2620 = vmul.f32 %v2550, %v2609
      %v2621 = vmul.f32 %v2553, %v2609
      %v2622 = vmul.f32 %v2555, %v2609
      %v2623 = vmul.f32 %v2558, %v2609
      %v2624 = vmul.f32 %v2560, %v2609
      %v2625 = vmul.f32 %v2563, %v2609
      %v2626 = vmul.f32 %v2565, %v2609
      %v2627 = vmul.f32 %v2568, %v2609
      %v2628 = vmul.f32 %v2570, %v2609
      %v2629 = vmul.f32 %v2573, %v2609
      %v2630 = vmul.f32 %v2575, %v2609
      %v2631 = vmul.f32 %v2578, %v2609
      %v2632 = vmul.f32 %v2580, %v2609
      %v2633 = vmul.f32 %v2583, %v2609
      %v2634 = vmul.f32 %v2585, %v2609
      %v2635 = vmul.f32 %v2588, %v2609
      %v2636 = vmul.f32 %v2590, %v2609
      %v2637 = vmul.f32 %v2593, %v2609
      %v2638 = vmul.f32 %v2595, %v2609
      %v2639 = vmul.f32 %v2598, %v2609
      %v2640 = vmul.f32 %v2600, %v2609
      %v2641 = vmul.f32 %v2603, %v2609
      %v2642 = vmul.f32 %v2605, %v2609
      %v2643 = vld [vmem:[%s3] sm:$0x1]
      %v2645 = vperm.slane %v2643, 0
      %v2647 = vadd.f32 %v2611, %v2645
      %v2648 = vadd.f32 %v2612, %v2645
      %v2649 = vadd.f32 %v2613, %v2645
      %v2650 = vadd.f32 %v2614, %v2645
      %v2651 = vadd.f32 %v2615, %v2645
      %v2652 = vadd.f32 %v2616, %v2645
      %v2653 = vadd.f32 %v2617, %v2645
      %v2654 = vadd.f32 %v2618, %v2645
      %v2655 = vadd.f32 %v2619, %v2645
      %v2656 = vadd.f32 %v2620, %v2645
      %v2657 = vadd.f32 %v2621, %v2645
      %v2658 = vadd.f32 %v2622, %v2645
      %v2659 = vadd.f32 %v2623, %v2645
      %v2660 = vadd.f32 %v2624, %v2645
      %v2661 = vadd.f32 %v2625, %v2645
      %v2662 = vadd.f32 %v2626, %v2645
      %v2663 = vadd.f32 %v2627, %v2645
      %v2664 = vadd.f32 %v2628, %v2645
      %v2665 = vadd.f32 %v2629, %v2645
      %v2666 = vadd.f32 %v2630, %v2645
      %v2667 = vadd.f32 %v2631, %v2645
      %v2668 = vadd.f32 %v2632, %v2645
      %v2669 = vadd.f32 %v2633, %v2645
      %v2670 = vadd.f32 %v2634, %v2645
      %v2671 = vadd.f32 %v2635, %v2645
      %v2672 = vadd.f32 %v2636, %v2645
      %v2673 = vadd.f32 %v2637, %v2645
      %v2674 = vadd.f32 %v2638, %v2645
      %v2675 = vadd.f32 %v2639, %v2645
      %v2676 = vadd.f32 %v2640, %v2645
      %v2677 = vadd.f32 %v2641, %v2645
      %v2678 = vadd.f32 %v2642, %v2645
      %v2679 = vld [vmem:[%s326] sm:$0xf]
      %v2680 = vld [vmem:[%s326 + $0x4] sm:$0xf]
      %v2681 = vld [vmem:[%s326 + $0x8] sm:$0xf]
      %v2682 = vld [vmem:[%s326 + $0xc] sm:$0xf]
      %v2683 = vld [vmem:[%s326 + $0x10] sm:$0xf]
      %v2684 = vld [vmem:[%s326 + $0x14] sm:$0xf]
      %v2685 = vld [vmem:[%s326 + $0x18] sm:$0xf]
      %v2686 = vld [vmem:[%s326 + $0x1c] sm:$0xf]
      %v2687 = vld [vmem:[%s326 + $0x20] sm:$0xf]
      %v2688 = vld [vmem:[%s326 + $0x24] sm:$0xf]
      %v2689 = vld [vmem:[%s326 + $0x28] sm:$0xf]
      %v2690 = vld [vmem:[%s326 + $0x2c] sm:$0xf]
      %v2691 = vld [vmem:[%s326 + $0x30] sm:$0xf]
      %v2692 = vld [vmem:[%s326 + $0x34] sm:$0xf]
      %v2693 = vld [vmem:[%s326 + $0x38] sm:$0xf]
      %v2694 = vld [vmem:[%s326 + $0x3c] sm:$0xf]
      %v2695 = vld [vmem:[%s326 + $0x40] sm:$0xf]
      %v2696 = vld [vmem:[%s326 + $0x44] sm:$0xf]
      %v2697 = vld [vmem:[%s326 + $0x48] sm:$0xf]
      %v2698 = vld [vmem:[%s326 + $0x4c] sm:$0xf]
      %v2699 = vld [vmem:[%s326 + $0x50] sm:$0xf]
      %v2700 = vld [vmem:[%s326 + $0x54] sm:$0xf]
      %v2701 = vld [vmem:[%s326 + $0x58] sm:$0xf]
      %v2702 = vld [vmem:[%s326 + $0x5c] sm:$0xf]
      %v2703 = vld [vmem:[%s326 + $0x60] sm:$0xf]
      %v2704 = vld [vmem:[%s326 + $0x64] sm:$0xf]
      %v2705 = vld [vmem:[%s326 + $0x68] sm:$0xf]
      %v2706 = vld [vmem:[%s326 + $0x6c] sm:$0xf]
      %v2707 = vld [vmem:[%s326 + $0x70] sm:$0xf]
      %v2708 = vld [vmem:[%s326 + $0x74] sm:$0xf]
      %v2709 = vld [vmem:[%s326 + $0x78] sm:$0xf]
      %v2710 = vld [vmem:[%s326 + $0x7c] sm:$0xf]
      %v2711 = vld [vmem:[%s5] sm:$0xf]
      %v2712 = vld [vmem:[%s5 + $0x4] sm:$0xf]
      %v2713 = vld [vmem:[%s5 + $0x8] sm:$0xf]
      %v2714 = vld [vmem:[%s5 + $0xc] sm:$0xf]
      %v2715 = vld [vmem:[%s5 + $0x10] sm:$0xf]
      %v2716 = vld [vmem:[%s5 + $0x14] sm:$0xf]
      %v2717 = vld [vmem:[%s5 + $0x18] sm:$0xf]
      %v2718 = vld [vmem:[%s5 + $0x1c] sm:$0xf]
      %v2719 = vld [vmem:[%s5 + $0x20] sm:$0xf]
      %v2720 = vld [vmem:[%s5 + $0x24] sm:$0xf]
      %v2721 = vld [vmem:[%s5 + $0x28] sm:$0xf]
      %v2722 = vld [vmem:[%s5 + $0x2c] sm:$0xf]
      %v2723 = vld [vmem:[%s5 + $0x30] sm:$0xf]
      %v2724 = vld [vmem:[%s5 + $0x34] sm:$0xf]
      %v2725 = vld [vmem:[%s5 + $0x38] sm:$0xf]
      %v2726 = vld [vmem:[%s5 + $0x3c] sm:$0xf]
      %v2759 = vunpack.c.l.b16 %v2679
      %v2760 = vunpack.c.l.b16 %v2680
      %v2761 = vunpack.c.l.b16 %v2681
      %v2762 = vunpack.c.l.b16 %v2682
      %v2763 = vunpack.c.l.b16 %v2683
      %v2764 = vunpack.c.l.b16 %v2684
      %v2765 = vunpack.c.l.b16 %v2685
      %v2766 = vunpack.c.l.b16 %v2686
      %v2767 = vunpack.c.l.b16 %v2687
      %v2768 = vunpack.c.l.b16 %v2688
      %v2769 = vunpack.c.l.b16 %v2689
      %v2770 = vunpack.c.l.b16 %v2690
      %v2771 = vunpack.c.l.b16 %v2691
      %v2772 = vunpack.c.l.b16 %v2692
      %v2773 = vunpack.c.l.b16 %v2693
      %v2774 = vunpack.c.l.b16 %v2694
      %v2775 = vunpack.c.l.b16 %v2695
      %v2776 = vunpack.c.l.b16 %v2696
      %v2777 = vunpack.c.l.b16 %v2697
      %v2778 = vunpack.c.l.b16 %v2698
      %v2779 = vunpack.c.l.b16 %v2699
      %v2780 = vunpack.c.l.b16 %v2700
      %v2781 = vunpack.c.l.b16 %v2701
      %v2782 = vunpack.c.l.b16 %v2702
      %v2783 = vunpack.c.l.b16 %v2703
      %v2784 = vunpack.c.l.b16 %v2704
      %v2785 = vunpack.c.l.b16 %v2705
      %v2786 = vunpack.c.l.b16 %v2706
      %v2787 = vunpack.c.l.b16 %v2707
      %v2788 = vunpack.c.l.b16 %v2708
      %v2789 = vunpack.c.l.b16 %v2709
      %v2790 = vunpack.c.l.b16 %v2710
      %v2791 = vpack.c.b16 %v2760, %v2759
      %v2792 = vpack.c.b16 %v2762, %v2761
      %v2793 = vpack.c.b16 %v2764, %v2763
      %v2794 = vpack.c.b16 %v2766, %v2765
      %v2795 = vpack.c.b16 %v2768, %v2767
      %v2796 = vpack.c.b16 %v2770, %v2769
      %v2797 = vpack.c.b16 %v2772, %v2771
      %v2798 = vpack.c.b16 %v2774, %v2773
      %v2799 = vpack.c.b16 %v2776, %v2775
      %v2800 = vpack.c.b16 %v2778, %v2777
      %v2801 = vpack.c.b16 %v2780, %v2779
      %v2802 = vpack.c.b16 %v2782, %v2781
      %v2803 = vpack.c.b16 %v2784, %v2783
      %v2804 = vpack.c.b16 %v2786, %v2785
      %v2805 = vpack.c.b16 %v2788, %v2787
      %v2806 = vpack.c.b16 %v2790, %v2789
      %v2839 = vunpack.c.l.b16 %v2711
      %v2840 = vunpack.c.l.b16 %v2712
      %v2841 = vunpack.c.l.b16 %v2713
      %v2842 = vunpack.c.l.b16 %v2714
      %v2843 = vunpack.c.l.b16 %v2715
      %v2844 = vunpack.c.l.b16 %v2716
      %v2845 = vunpack.c.l.b16 %v2717
      %v2846 = vunpack.c.l.b16 %v2718
      %v2847 = vunpack.c.l.b16 %v2719
      %v2848 = vunpack.c.l.b16 %v2720
      %v2849 = vunpack.c.l.b16 %v2721
      %v2850 = vunpack.c.l.b16 %v2722
      %v2851 = vunpack.c.l.b16 %v2723
      %v2852 = vunpack.c.l.b16 %v2724
      %v2853 = vunpack.c.l.b16 %v2725
      %v2854 = vunpack.c.l.b16 %v2726
      %v2855 = vpack.c.b16 %v2840, %v2839
      %v2856 = vpack.c.b16 %v2842, %v2841
      %v2857 = vpack.c.b16 %v2844, %v2843
      %v2858 = vpack.c.b16 %v2846, %v2845
      %v2859 = vpack.c.b16 %v2848, %v2847
      %v2860 = vpack.c.b16 %v2850, %v2849
      %v2861 = vpack.c.b16 %v2852, %v2851
      %v2862 = vpack.c.b16 %v2854, %v2853
      %2871 = vmatpush.bf16.msra.mxu0 %v2862
      %2872 = vmatpush.bf16.msra.mxu0 %v2861
      %2873 = vmatpush.bf16.msra.mxu0 %v2860
      %2874 = vmatpush.bf16.msra.mxu0 %v2859
      %2875 = vmatpush.bf16.msra.mxu0 %v2858
      %2876 = vmatpush.bf16.msra.mxu0 %v2857
      %2877 = vmatpush.bf16.msra.mxu0 %v2856
      %2878 = vmatpush.bf16.msra.mxu0 %v2855
      %2879 = vmatmul.bf16.gmra.mxu0 %v2791
      %v2880 = vpop.f32.mrf.mxu0
      %v2881 = vadd.f32 0.0, %v2880
      %v2882 = vpop.f32.mrf.mxu0
      %v2883 = vadd.f32 0.0, %v2882
      %2884 = vmatmul.bf16.gmra.mxu0 %v2792
      %v2885 = vpop.f32.mrf.mxu0
      %v2886 = vadd.f32 0.0, %v2885
      %v2887 = vpop.f32.mrf.mxu0
      %v2888 = vadd.f32 0.0, %v2887
      %2889 = vmatmul.bf16.gmra.mxu0 %v2793
      %v2890 = vpop.f32.mrf.mxu0
      %v2891 = vadd.f32 0.0, %v2890
      %v2892 = vpop.f32.mrf.mxu0
      %v2893 = vadd.f32 0.0, %v2892
      %2894 = vmatmul.bf16.gmra.mxu0 %v2794
      %v2895 = vpop.f32.mrf.mxu0
      %v2896 = vadd.f32 0.0, %v2895
      %v2897 = vpop.f32.mrf.mxu0
      %v2898 = vadd.f32 0.0, %v2897
      %2899 = vmatmul.bf16.gmra.mxu0 %v2795
      %v2900 = vpop.f32.mrf.mxu0
      %v2901 = vadd.f32 0.0, %v2900
      %v2902 = vpop.f32.mrf.mxu0
      %v2903 = vadd.f32 0.0, %v2902
      %2904 = vmatmul.bf16.gmra.mxu0 %v2796
      %v2905 = vpop.f32.mrf.mxu0
      %v2906 = vadd.f32 0.0, %v2905
      %v2907 = vpop.f32.mrf.mxu0
      %v2908 = vadd.f32 0.0, %v2907
      %2909 = vmatmul.bf16.gmra.mxu0 %v2797
      %v2910 = vpop.f32.mrf.mxu0
      %v2911 = vadd.f32 0.0, %v2910
      %v2912 = vpop.f32.mrf.mxu0
      %v2913 = vadd.f32 0.0, %v2912
      %2914 = vmatmul.bf16.gmra.mxu0 %v2798
      %v2915 = vpop.f32.mrf.mxu0
      %v2916 = vadd.f32 0.0, %v2915
      %v2917 = vpop.f32.mrf.mxu0
      %v2918 = vadd.f32 0.0, %v2917
      %2919 = vmatmul.bf16.gmra.mxu0 %v2799
      %v2920 = vpop.f32.mrf.mxu0
      %v2921 = vadd.f32 0.0, %v2920
      %v2922 = vpop.f32.mrf.mxu0
      %v2923 = vadd.f32 0.0, %v2922
      %2924 = vmatmul.bf16.gmra.mxu0 %v2800
      %v2925 = vpop.f32.mrf.mxu0
      %v2926 = vadd.f32 0.0, %v2925
      %v2927 = vpop.f32.mrf.mxu0
      %v2928 = vadd.f32 0.0, %v2927
      %2929 = vmatmul.bf16.gmra.mxu0 %v2801
      %v2930 = vpop.f32.mrf.mxu0
      %v2931 = vadd.f32 0.0, %v2930
      %v2932 = vpop.f32.mrf.mxu0
      %v2933 = vadd.f32 0.0, %v2932
      %2934 = vmatmul.bf16.gmra.mxu0 %v2802
      %v2935 = vpop.f32.mrf.mxu0
      %v2936 = vadd.f32 0.0, %v2935
      %v2937 = vpop.f32.mrf.mxu0
      %v2938 = vadd.f32 0.0, %v2937
      %2939 = vmatmul.bf16.gmra.mxu0 %v2803
      %v2940 = vpop.f32.mrf.mxu0
      %v2941 = vadd.f32 0.0, %v2940
      %v2942 = vpop.f32.mrf.mxu0
      %v2943 = vadd.f32 0.0, %v2942
      %2944 = vmatmul.bf16.gmra.mxu0 %v2804
      %v2945 = vpop.f32.mrf.mxu0
      %v2946 = vadd.f32 0.0, %v2945
      %v2947 = vpop.f32.mrf.mxu0
      %v2948 = vadd.f32 0.0, %v2947
      %2949 = vmatmul.bf16.gmra.mxu0 %v2805
      %v2950 = vpop.f32.mrf.mxu0
      %v2951 = vadd.f32 0.0, %v2950
      %v2952 = vpop.f32.mrf.mxu0
      %v2953 = vadd.f32 0.0, %v2952
      %2954 = vmatmul.bf16.gmra.mxu0 %v2806
      %v2955 = vpop.f32.mrf.mxu0
      %v2956 = vadd.f32 0.0, %v2955
      %v2957 = vpop.f32.mrf.mxu0
      %v2958 = vadd.f32 0.0, %v2957
      %2959 = vdwg.mxu0
      %v2960 = vld [vmem:[%s6] sm:$0x1]
      %v2962 = vperm.slane %v2960, 0
      %v2964 = vmul.f32 %v2881, %v2962
      %v2965 = vmul.f32 %v2883, %v2962
      %v2966 = vmul.f32 %v2886, %v2962
      %v2967 = vmul.f32 %v2888, %v2962
      %v2968 = vmul.f32 %v2891, %v2962
      %v2969 = vmul.f32 %v2893, %v2962
      %v2970 = vmul.f32 %v2896, %v2962
      %v2971 = vmul.f32 %v2898, %v2962
      %v2972 = vmul.f32 %v2901, %v2962
      %v2973 = vmul.f32 %v2903, %v2962
      %v2974 = vmul.f32 %v2906, %v2962
      %v2975 = vmul.f32 %v2908, %v2962
      %v2976 = vmul.f32 %v2911, %v2962
      %v2977 = vmul.f32 %v2913, %v2962
      %v2978 = vmul.f32 %v2916, %v2962
      %v2979 = vmul.f32 %v2918, %v2962
      %v2980 = vmul.f32 %v2921, %v2962
      %v2981 = vmul.f32 %v2923, %v2962
      %v2982 = vmul.f32 %v2926, %v2962
      %v2983 = vmul.f32 %v2928, %v2962
      %v2984 = vmul.f32 %v2931, %v2962
      %v2985 = vmul.f32 %v2933, %v2962
      %v2986 = vmul.f32 %v2936, %v2962
      %v2987 = vmul.f32 %v2938, %v2962
      %v2988 = vmul.f32 %v2941, %v2962
      %v2989 = vmul.f32 %v2943, %v2962
      %v2990 = vmul.f32 %v2946, %v2962
      %v2991 = vmul.f32 %v2948, %v2962
      %v2992 = vmul.f32 %v2951, %v2962
      %v2993 = vmul.f32 %v2953, %v2962
      %v2994 = vmul.f32 %v2956, %v2962
      %v2995 = vmul.f32 %v2958, %v2962
      %v2996 = vld [vmem:[%s7] sm:$0x1]
      %v2998 = vperm.slane %v2996, 0
      %v3000 = vadd.f32 %v2964, %v2998
      %v3001 = vadd.f32 %v2965, %v2998
      %v3002 = vadd.f32 %v2966, %v2998
      %v3003 = vadd.f32 %v2967, %v2998
      %v3004 = vadd.f32 %v2968, %v2998
      %v3005 = vadd.f32 %v2969, %v2998
      %v3006 = vadd.f32 %v2970, %v2998
      %v3007 = vadd.f32 %v2971, %v2998
      %v3008 = vadd.f32 %v2972, %v2998
      %v3009 = vadd.f32 %v2973, %v2998
      %v3010 = vadd.f32 %v2974, %v2998
      %v3011 = vadd.f32 %v2975, %v2998
      %v3012 = vadd.f32 %v2976, %v2998
      %v3013 = vadd.f32 %v2977, %v2998
      %v3014 = vadd.f32 %v2978, %v2998
      %v3015 = vadd.f32 %v2979, %v2998
      %v3016 = vadd.f32 %v2980, %v2998
      %v3017 = vadd.f32 %v2981, %v2998
      %v3018 = vadd.f32 %v2982, %v2998
      %v3019 = vadd.f32 %v2983, %v2998
      %v3020 = vadd.f32 %v2984, %v2998
      %v3021 = vadd.f32 %v2985, %v2998
      %v3022 = vadd.f32 %v2986, %v2998
      %v3023 = vadd.f32 %v2987, %v2998
      %v3024 = vadd.f32 %v2988, %v2998
      %v3025 = vadd.f32 %v2989, %v2998
      %v3026 = vadd.f32 %v2990, %v2998
      %v3027 = vadd.f32 %v2991, %v2998
      %v3028 = vadd.f32 %v2992, %v2998
      %v3029 = vadd.f32 %v2993, %v2998
      %v3030 = vadd.f32 %v2994, %v2998
      %v3031 = vadd.f32 %v2995, %v2998
      %v3032 = vadd.f32 %v2647, %v3000
      %v3033 = vadd.f32 %v2648, %v3001
      %v3034 = vadd.f32 %v2649, %v3002
      %v3035 = vadd.f32 %v2650, %v3003
      %v3036 = vadd.f32 %v2651, %v3004
      %v3037 = vadd.f32 %v2652, %v3005
      %v3038 = vadd.f32 %v2653, %v3006
      %v3039 = vadd.f32 %v2654, %v3007
      %v3040 = vadd.f32 %v2655, %v3008
      %v3041 = vadd.f32 %v2656, %v3009
      %v3042 = vadd.f32 %v2657, %v3010
      %v3043 = vadd.f32 %v2658, %v3011
      %v3044 = vadd.f32 %v2659, %v3012
      %v3045 = vadd.f32 %v2660, %v3013
      %v3046 = vadd.f32 %v2661, %v3014
      %v3047 = vadd.f32 %v2662, %v3015
      %v3048 = vadd.f32 %v2663, %v3016
      %v3049 = vadd.f32 %v2664, %v3017
      %v3050 = vadd.f32 %v2665, %v3018
      %v3051 = vadd.f32 %v2666, %v3019
      %v3052 = vadd.f32 %v2667, %v3020
      %v3053 = vadd.f32 %v2668, %v3021
      %v3054 = vadd.f32 %v2669, %v3022
      %v3055 = vadd.f32 %v2670, %v3023
      %v3056 = vadd.f32 %v2671, %v3024
      %v3057 = vadd.f32 %v2672, %v3025
      %v3058 = vadd.f32 %v2673, %v3026
      %v3059 = vadd.f32 %v2674, %v3027
      %v3060 = vadd.f32 %v2675, %v3028
      %v3061 = vadd.f32 %v2676, %v3029
      %v3062 = vadd.f32 %v2677, %v3030
      %v3063 = vadd.f32 %v2678, %v3031
      %v3064 = vmax.f32 %v3032, 0.0
      %v3065 = vmax.f32 %v3033, 0.0
      %v3066 = vmax.f32 %v3034, 0.0
      %v3067 = vmax.f32 %v3035, 0.0
      %v3068 = vmax.f32 %v3036, 0.0
      %v3069 = vmax.f32 %v3037, 0.0
      %v3070 = vmax.f32 %v3038, 0.0
      %v3071 = vmax.f32 %v3039, 0.0
      %v3072 = vmax.f32 %v3040, 0.0
      %v3073 = vmax.f32 %v3041, 0.0
      %v3074 = vmax.f32 %v3042, 0.0
      %v3075 = vmax.f32 %v3043, 0.0
      %v3076 = vmax.f32 %v3044, 0.0
      %v3077 = vmax.f32 %v3045, 0.0
      %v3078 = vmax.f32 %v3046, 0.0
      %v3079 = vmax.f32 %v3047, 0.0
      %v3080 = vmax.f32 %v3048, 0.0
      %v3081 = vmax.f32 %v3049, 0.0
      %v3082 = vmax.f32 %v3050, 0.0
      %v3083 = vmax.f32 %v3051, 0.0
      %v3084 = vmax.f32 %v3052, 0.0
      %v3085 = vmax.f32 %v3053, 0.0
      %v3086 = vmax.f32 %v3054, 0.0
      %v3087 = vmax.f32 %v3055, 0.0
      %v3088 = vmax.f32 %v3056, 0.0
      %v3089 = vmax.f32 %v3057, 0.0
      %v3090 = vmax.f32 %v3058, 0.0
      %v3091 = vmax.f32 %v3059, 0.0
      %v3092 = vmax.f32 %v3060, 0.0
      %v3093 = vmax.f32 %v3061, 0.0
      %v3094 = vmax.f32 %v3062, 0.0
      %v3095 = vmax.f32 %v3063, 0.0
      %3096 = vst [vmem:[%s332] sm:$0xff] %v3064
      %3097 = vst [vmem:[%s332 + $0x8] sm:$0xff] %v3065
      %3098 = vst [vmem:[%s332 + $0x10] sm:$0xff] %v3066
      %3099 = vst [vmem:[%s332 + $0x18] sm:$0xff] %v3067
      %3100 = vst [vmem:[%s332 + $0x20] sm:$0xff] %v3068
      %3101 = vst [vmem:[%s332 + $0x28] sm:$0xff] %v3069
      %3102 = vst [vmem:[%s332 + $0x30] sm:$0xff] %v3070
      %3103 = vst [vmem:[%s332 + $0x38] sm:$0xff] %v3071
      %3104 = vst [vmem:[%s332 + $0x40] sm:$0xff] %v3072
      %3105 = vst [vmem:[%s332 + $0x48] sm:$0xff] %v3073
      %3106 = vst [vmem:[%s332 + $0x50] sm:$0xff] %v3074
      %3107 = vst [vmem:[%s332 + $0x58] sm:$0xff] %v3075
      %3108 = vst [vmem:[%s332 + $0x60] sm:$0xff] %v3076
      %3109 = vst [vmem:[%s332 + $0x68] sm:$0xff] %v3077
      %3110 = vst [vmem:[%s332 + $0x70] sm:$0xff] %v3078
      %3111 = vst [vmem:[%s332 + $0x78] sm:$0xff] %v3079
      %3112 = vst [vmem:[%s332 + $0x80] sm:$0xff] %v3080
      %3113 = vst [vmem:[%s332 + $0x88] sm:$0xff] %v3081
      %3114 = vst [vmem:[%s332 + $0x90] sm:$0xff] %v3082
      %3115 = vst [vmem:[%s332 + $0x98] sm:$0xff] %v3083
      %3116 = vst [vmem:[%s332 + $0xa0] sm:$0xff] %v3084
      %3117 = vst [vmem:[%s332 + $0xa8] sm:$0xff] %v3085
      %3118 = vst [vmem:[%s332 + $0xb0] sm:$0xff] %v3086
      %3119 = vst [vmem:[%s332 + $0xb8] sm:$0xff] %v3087
      %3120 = vst [vmem:[%s332 + $0xc0] sm:$0xff] %v3088
      %3121 = vst [vmem:[%s332 + $0xc8] sm:$0xff] %v3089
      %3122 = vst [vmem:[%s332 + $0xd0] sm:$0xff] %v3090
      %3123 = vst [vmem:[%s332 + $0xd8] sm:$0xff] %v3091
      %3124 = vst [vmem:[%s332 + $0xe0] sm:$0xff] %v3092
      %3125 = vst [vmem:[%s332 + $0xe8] sm:$0xff] %v3093
      %3126 = vst [vmem:[%s332 + $0xf0] sm:$0xff] %v3094
      %3127 = vst [vmem:[%s332 + $0xf8] sm:$0xff] %v3095
      %s3128 = smul.u32 32, %s19
      %p3129 = scmp.lt.s32.totalorder %s3128, 63
      %s3130 = scalar_select %p3129, %s3128, 63
      %s3131 = smul.addr %s3130, 8
      %s3132 = scalar_lea.vmem %s8, %s3131
      // Predicated region
      $region53: #{_lambda_.3} parent=51 // pred_check
        %p3133 = pneg %p215
      $region54: #{_lambda_.3} parent=51 // pred_check_branch
        %3135 = sbr.rel (%p3133) target = $region56
      $region55: #{_lambda_.3} parent=51 // pred_region
        %s3136 = smul.u32 32, %s19
      $region56: #{_lambda_.3} parent=51 // pred_fallthru
        _
    $region52: #{_lambda_.3} parent=5 // pred_fallthru
      _
    %p3137 = scmp.le.s32.totalorder 2, %s14
    // Predicated region
    $region57: #{_lambda_.3} parent=5 // pred_check
      %p3138 = pneg %p3137
    $region58: #{_lambda_.3} parent=5 // pred_check_branch
      %3140 = sbr.rel (%p3138) target = $region60
    $region59: #{_lambda_.3} parent=5 // pred_region
      %s3141 = ssub.s32 %s14, 2
      // Predicated region
      $region61: #{_lambda_.3} parent=59 // pred_check
        %p3142 = pneg %p221
      $region62: #{_lambda_.3} parent=59 // pred_check_branch
        %3144 = sbr.rel (%p3142) target = $region64
      $region63: #{_lambda_.3} parent=59 // pred_region
        %s3145 = smul.u32 32, %s20
        %p3146 = scmp.lt.s32.totalorder %s3145, 63
        %s3147 = scalar_select %p3146, %s3145, 63
        %s3148 = smul.addr %s3147, 8
        %s3149 = scalar_lea.vmem %s8, %s3148
      $region64: #{_lambda_.3} parent=59 // pred_fallthru
        _
    $region60: #{_lambda_.3} parent=5 // pred_fallthru
      _
  $region6: #{_lambda_.3} parent=0 // loop_footer
    %s18 = sadd.s32 1, %s14
  $region7: #{_lambda_.3} parent=0 // loop_footer_branch
    %13 = sbr.rel target = $region3
  $region8: #{_lambda_.3} parent=0 // loop_exit
    _

</llo_original>
